<compile_context>
chip_gen: v5e
topology: v5e:2x2
jax: 0.10.0
libtpu: 0.0.40
codegen_flags: <defaults>
</compile_context>

<pallas_src>
import jax
import jax.numpy as jnp
import numpy as np
from jax.experimental import pallas as pl
from jax.experimental.pallas import tpu as pltpu


# ---------------------------------------------------------------------------
# Fused kernel (one batch block of TB samples per grid step)
# ---------------------------------------------------------------------------
def _lenet_kernel(x_ref, w1_ref, b1_ref, w2_ref, b2_ref,
                  wf1_ref, bf1_ref, wf2_ref, bf2_ref, o_ref, h1_ref, h2_ref):
    tb = o_ref.shape[0]                      # batch tile
    f32 = jnp.float32

    # ---------------- conv1 (Toeplitz along width) + bias + ReLU + 2x2/2 max-pool ---------------
    # x rows: ih*tb + b ; cols: iw*3 + ci (zero-padded 96->128).
    # One (28*tb,128)x(128,256) matmul per kernel row dy -> each weight pushed to the MXU once.
    acc = jnp.dot(x_ref[0:28 * tb, :], w1_ref[0], preferred_element_type=f32)
    for dy in range(1, 5):
        acc += jnp.dot(x_ref[dy * tb:(dy + 28) * tb, :], w1_ref[dy],
                       preferred_element_type=f32)
    # acc rows: oh*tb + b ; cols: (ow%2)*128 + (ow//2)*6 + c1  (84 used per 128-lane half)
    y = jnp.maximum(acc[:, 0:128], acc[:, 128:256])          # width pool (lane halves)
    y = y.reshape(14, 2 * tb, 128)
    y = jnp.maximum(y[:, :tb, :], y[:, tb:, :])              # height pool (row parity, tile-aligned)
    y = y.reshape(14 * tb, 128)
    h1_ref[...] = jnp.maximum(y + b1_ref[...], 0.0).astype(jnp.bfloat16)
    # h1 rows: ohp*tb + b ; cols: owp*6 + c1 (84 used)

    # ---------------- conv2 + bias + ReLU + 2x2/2 max-pool ----------------
    acc = jnp.dot(h1_ref[0:10 * tb, :], w2_ref[0], preferred_element_type=f32)
    for dy in range(1, 5):
        acc += jnp.dot(h1_ref[dy * tb:(dy + 10) * tb, :], w2_ref[dy],
                       preferred_element_type=f32)
    y = jnp.maximum(acc[:, 0:128], acc[:, 128:256])
    y = y.reshape(5, 2 * tb, 128)
    y = jnp.maximum(y[:, :tb, :], y[:, tb:, :])
    y = y.reshape(5 * tb, 128)
    h2_ref[...] = jnp.maximum(y + b2_ref[...], 0.0).astype(jnp.bfloat16)
    # h2 rows: oh2p*tb + b ; cols: ow2p*16 + c2 (80 used)

    # ---------------- fc1 + ReLU, dropout (identity in eval), fc2 ----------------
    acc = jnp.dot(h2_ref[0:tb, :], wf1_ref[0], preferred_element_type=f32)
    for q in range(1, 5):                    # sum over the 5 pooled rows (fc1 split by row)
        acc += jnp.dot(h2_ref[q * tb:(q + 1) * tb, :], wf1_ref[q],
                       preferred_element_type=f32)
    h3 = jnp.maximum(acc + bf1_ref[...], 0.0).astype(jnp.bfloat16)   # (tb, 256)
    # TODO(synk): nn.Dropout(p=0.5) is identity in eval mode; train-mode RNG masking not implemented.
    o_ref[...] = jnp.dot(h3, wf2_ref[...], preferred_element_type=f32) + bf2_ref[...]


# ---------------------------------------------------------------------------
# One-time host-side weight repacking (Toeplitz-along-width, lane-parity cols, padded, bf16)
# ---------------------------------------------------------------------------
def prepare_params(params):
    w1 = np.asarray(params["conv1_w"], np.float32)    # (6, 3, 5, 5)
    b1 = np.asarray(params["conv1_b"], np.float32)
    w2 = np.asarray(params["conv2_w"], np.float32)    # (16, 6, 5, 5)
    b2 = np.asarray(params["conv2_b"], np.float32)
    f1 = np.asarray(params["fc1_w"], np.float32)      # (256, 400)
    fb1 = np.asarray(params["fc1_b"], np.float32)
    f2 = np.asarray(params["fc2_w"], np.float32)      # (10, 256)
    fb2 = np.asarray(params["fc2_b"], np.float32)

    # conv1: rows = iw*3 + ci (pad 96->128), cols = (ow%2)*128 + (ow//2)*6 + c1 (pad 84->128/half)
    W1 = np.zeros((5, 128, 256), np.float32)
    for dy in range(5):
        for dx in range(5):
            for ow in range(28):
                iw = ow + dx
                col0 = (ow % 2) * 128 + (ow // 2) * 6
                W1[dy, iw * 3:iw * 3 + 3, col0:col0 + 6] = w1[:, :, dy, dx].T   # (ci, c1)
    b1t = np.zeros((1, 128), np.float32)
    for owp in range(14):
        b1t[0, owp * 6:owp * 6 + 6] = b1

    # conv2: rows = iwp*6 + c1 (pad 84->128), cols = (ow2%2)*128 + (ow2//2)*16 + c2 (pad 80->128)
    W2 = np.zeros((5, 128, 256), np.float32)
    for dy in range(5):
        for dx in range(5):
            for ow in range(10):
                iwp = ow + dx
                col0 = (ow % 2) * 128 + (ow // 2) * 16
                W2[dy, iwp * 6:iwp * 6 + 6, col0:col0 + 16] = w2[:, :, dy, dx].T  # (c1, c2)
    b2t = np.zeros((1, 128), np.float32)
    for owp in range(5):
        b2t[0, owp * 16:owp * 16 + 16] = b2

    # fc1 split by pooled row q: rows = p*16 + c2 (pad 80->128); torch flatten index = c2*25 + q*5 + p
    Wf1 = np.zeros((5, 128, 256), np.float32)
    for q in range(5):
        for p in range(5):
            for c2 in range(16):
                Wf1[q, p * 16 + c2, :] = f1[:, c2 * 25 + q * 5 + p]
    bf1 = fb1.reshape(1, 256)

    # fc2: logits padded 10 -> 128 lanes (zero weights / zero bias; sliced off in the wrapper)
    Wf2 = np.zeros((256, 128), np.float32)
    Wf2[:, :10] = f2.T
    bf2 = np.zeros((1, 128), np.float32)
    bf2[0, :10] = fb2

    bf = lambda a: jnp.asarray(a, jnp.bfloat16)
    f32 = lambda a: jnp.asarray(a, jnp.float32)
    return {"W1": bf(W1), "b1": f32(b1t), "W2": bf(W2), "b2": f32(b2t),
            "Wf1": bf(Wf1), "bf1": f32(bf1), "Wf2": bf(Wf2), "bf2": f32(bf2)}


# ---------------------------------------------------------------------------
# Wrapper
# ---------------------------------------------------------------------------
def _prep_x(x_nchw, tb):
    """NCHW -> (nb, 32*tb, 128) bf16 blocks: per block, row = ih*tb + b_local, col = iw*3 + ci."""
    n = x_nchw.shape[0]
    nb = pl.cdiv(n, tb)
    npad = nb * tb
    t = jnp.transpose(x_nchw, (0, 2, 3, 1)).reshape(n, 32, 96)       # (n, ih, iw*ci)
    t = jnp.pad(t, ((0, npad - n), (0, 0), (0, 32)))                 # pad batch + contraction dim
    t = t.astype(jnp.bfloat16)
    t = t.reshape(nb, tb, 32, 128).transpose(0, 2, 1, 3)             # (nb, ih, b, 128)
    return t.reshape(nb, 32 * tb, 128), nb, npad


def net_forward(prep, x_nchw, tb=16):
    n = x_nchw.shape[0]
    x_arr, nb, npad = _prep_x(x_nchw, tb)

    wspec3 = pl.BlockSpec((5, 128, 256), lambda i: (0, 0, 0))        # constant: resident weights
    out = pl.pallas_call(
        _lenet_kernel,
        out_shape=jax.ShapeDtypeStruct((npad, 128), jnp.float32),
        grid=(nb,),
        in_specs=[
            pl.BlockSpec((None, 32 * tb, 128), lambda i: (i, 0, 0)),  # streamed input block
            wspec3,                                                   # W1
            pl.BlockSpec((1, 128), lambda i: (0, 0)),                 # b1
            wspec3,                                                   # W2
            pl.BlockSpec((1, 128), lambda i: (0, 0)),                 # b2
            wspec3,                                                   # Wf1
            pl.BlockSpec((1, 256), lambda i: (0, 0)),                 # bf1
            pl.BlockSpec((256, 128), lambda i: (0, 0)),               # Wf2
            pl.BlockSpec((1, 128), lambda i: (0, 0)),                 # bf2
        ],
        out_specs=pl.BlockSpec((tb, 128), lambda i: (i, 0)),
        scratch_shapes=[pltpu.VMEM((14 * tb, 128), jnp.bfloat16),     # h1 (pooled conv1)
                        pltpu.VMEM((5 * tb, 128), jnp.bfloat16)],     # h2 (pooled conv2)
        compiler_params=pltpu.CompilerParams(
            dimension_semantics=("parallel",)),
    )(x_arr, prep["W1"], prep["b1"], prep["W2"], prep["b2"],
      prep["Wf1"], prep["bf1"], prep["Wf2"], prep["bf2"])
    return out[:n, :10]


# ---------------------------------------------------------------------------
# Pure-JAX reference (original params, f32) for self-check
# ---------------------------------------------------------------------------
def reference_forward(params, x_nchw):
    dn = ("NCHW", "OIHW", "NCHW")
    y = jax.lax.conv_general_dilated(x_nchw, params["conv1_w"], (1, 1), "VALID", dimension_numbers=dn)
    y = jax.nn.relu(y + params["conv1_b"][None, :, None, None])
    y = jax.lax.reduce_window(y, -jnp.inf, jax.lax.max, (1, 1, 2, 2), (1, 1, 2, 2), "VALID")
    y = jax.lax.conv_general_dilated(y, params["conv2_w"], (1, 1), "VALID", dimension_numbers=dn)
    y = jax.nn.relu(y + params["conv2_b"][None, :, None, None])
    y = jax.lax.reduce_window(y, -jnp.inf, jax.lax.max, (1, 1, 2, 2), (1, 1, 2, 2), "VALID")
    y = y.reshape(y.shape[0], -1)
    y = jax.nn.relu(y @ params["fc1_w"].T + params["fc1_b"])
    y = y @ params["fc2_w"].T + params["fc2_b"]
    return y


def init_params(key):
    ks = jax.random.split(key, 8)
    s = 0.05
    return {
        "conv1_w": jax.random.normal(ks[0], (6, 3, 5, 5), jnp.float32) * s,
        "conv1_b": jax.random.normal(ks[1], (6,), jnp.float32) * s,
        "conv2_w": jax.random.normal(ks[2], (16, 6, 5, 5), jnp.float32) * s,
        "conv2_b": jax.random.normal(ks[3], (16,), jnp.float32) * s,
        "fc1_w": jax.random.normal(ks[4], (256, 16 * 5 * 5), jnp.float32) * s,
        "fc1_b": jax.random.normal(ks[5], (256,), jnp.float32) * s,
        "fc2_w": jax.random.normal(ks[6], (10, 256), jnp.float32) * s,
        "fc2_b": jax.random.normal(ks[7], (10,), jnp.float32) * s,
    }


if __name__ == "__main__":
    key = jax.random.PRNGKey(0)
    kp, kx = jax.random.split(key)
    params = init_params(kp)
    x = jax.random.normal(kx, (2, 3, 32, 32), jnp.float32)   # NCHW, CIFAR-sized (what the fc1 dims imply)

    prep = prepare_params(params)                            # one-time weight repacking
    out = jax.jit(net_forward)(prep, x)
    out = jax.block_until_ready(out)
    assert out.shape == (2, 10), out.shape

    ref = jax.block_until_ready(reference_forward(params, x))
    assert jnp.allclose(out, ref, atol=2e-2, rtol=2e-2), float(jnp.max(jnp.abs(out - ref)))

    print("KERNEL_OK")
</pallas_src>

<mosaic_0001>
module attributes {stable_mosaic.version = 11 : i64} {
  func.func @_lenet_kernel(%arg0: i32, %arg1: memref<1x512x128xbf16, #tpu.memory_space<vmem>>, %arg2: memref<5x128x256xbf16, #tpu.memory_space<vmem>>, %arg3: memref<1x128xf32, #tpu.memory_space<vmem>>, %arg4: memref<5x128x256xbf16, #tpu.memory_space<vmem>>, %arg5: memref<1x128xf32, #tpu.memory_space<vmem>>, %arg6: memref<5x128x256xbf16, #tpu.memory_space<vmem>>, %arg7: memref<1x256xf32, #tpu.memory_space<vmem>>, %arg8: memref<256x128xbf16, #tpu.memory_space<vmem>>, %arg9: memref<1x128xf32, #tpu.memory_space<vmem>>, %arg10: memref<16x128xf32, #tpu.memory_space<vmem>>, %arg11: memref<224x128xbf16, #tpu.memory_space<vmem>>, %arg12: memref<80x128xbf16, #tpu.memory_space<vmem>>) attributes {dimension_semantics = [#tpu.dimension_semantics<parallel>], iteration_bounds = array<i64: 1>, scalar_prefetch = 0 : i64, scratch_operands = 2 : i64, tpu.core_type = #tpu.core_type<tc>, window_params = [{transform_indices = @transform_0, window_bounds = array<i64: 1, 512, 128>}, {pipeline_mode = #tpu.pipeline_mode<synchronous>, transform_indices = @transform_1, window_bounds = array<i64: 5, 128, 256>}, {pipeline_mode = #tpu.pipeline_mode<synchronous>, transform_indices = @transform_2, window_bounds = array<i64: 1, 128>}, {pipeline_mode = #tpu.pipeline_mode<synchronous>, transform_indices = @transform_3, window_bounds = array<i64: 5, 128, 256>}, {pipeline_mode = #tpu.pipeline_mode<synchronous>, transform_indices = @transform_4, window_bounds = array<i64: 1, 128>}, {pipeline_mode = #tpu.pipeline_mode<synchronous>, transform_indices = @transform_5, window_bounds = array<i64: 5, 128, 256>}, {pipeline_mode = #tpu.pipeline_mode<synchronous>, transform_indices = @transform_6, window_bounds = array<i64: 1, 256>}, {pipeline_mode = #tpu.pipeline_mode<synchronous>, transform_indices = @transform_7, window_bounds = array<i64: 256, 128>}, {pipeline_mode = #tpu.pipeline_mode<synchronous>, transform_indices = @transform_8, window_bounds = array<i64: 1, 128>}, {transform_indices = @transform_9, window_bounds = array<i64: 16, 128>}]} {
    %c0 = arith.constant 0 : index
    %c0_0 = arith.constant 0 : index
    %c0_1 = arith.constant 0 : index
    %0 = vector.load %arg1[%c0, %c0_0, %c0_1] : memref<1x512x128xbf16, #tpu.memory_space<vmem>>, vector<1x448x128xbf16>
    %1 = vector.shape_cast %0 : vector<1x448x128xbf16> to vector<448x128xbf16>
    %c0_2 = arith.constant 0 : index
    %c0_3 = arith.constant 0 : index
    %c0_4 = arith.constant 0 : index
    %2 = vector.load %arg2[%c0_2, %c0_3, %c0_4] : memref<5x128x256xbf16, #tpu.memory_space<vmem>>, vector<1x128x256xbf16>
    %3 = vector.shape_cast %2 : vector<1x128x256xbf16> to vector<128x256xbf16>
    %cst = arith.constant dense<0.000000e+00> : vector<448x256xf32>
    %4 = tpu.matmul %1, %3, %cst {dimension_numbers = #tpu.dot_dimension_numbers<[1], [0], [0], [1], [0, 0, 1, 1], [], []>} : vector<448x128xbf16>, vector<128x256xbf16>, vector<448x256xf32> -> vector<448x256xf32>
    %c0_5 = arith.constant 0 : index
    %c16 = arith.constant 16 : index
    %c0_6 = arith.constant 0 : index
    %5 = vector.load %arg1[%c0_5, %c16, %c0_6] : memref<1x512x128xbf16, #tpu.memory_space<vmem>>, vector<1x448x128xbf16>
    %6 = vector.shape_cast %5 : vector<1x448x128xbf16> to vector<448x128xbf16>
    %c1 = arith.constant 1 : index
    %c0_7 = arith.constant 0 : index
    %c0_8 = arith.constant 0 : index
    %7 = vector.load %arg2[%c1, %c0_7, %c0_8] : memref<5x128x256xbf16, #tpu.memory_space<vmem>>, vector<1x128x256xbf16>
    %8 = vector.shape_cast %7 : vector<1x128x256xbf16> to vector<128x256xbf16>
    %cst_9 = arith.constant dense<0.000000e+00> : vector<448x256xf32>
    %9 = tpu.matmul %6, %8, %cst_9 {dimension_numbers = #tpu.dot_dimension_numbers<[1], [0], [0], [1], [0, 0, 1, 1], [], []>} : vector<448x128xbf16>, vector<128x256xbf16>, vector<448x256xf32> -> vector<448x256xf32>
    %10 = arith.addf %4, %9 : vector<448x256xf32>
    %c0_10 = arith.constant 0 : index
    %c32 = arith.constant 32 : index
    %c0_11 = arith.constant 0 : index
    %11 = vector.load %arg1[%c0_10, %c32, %c0_11] : memref<1x512x128xbf16, #tpu.memory_space<vmem>>, vector<1x448x128xbf16>
    %12 = vector.shape_cast %11 : vector<1x448x128xbf16> to vector<448x128xbf16>
    %c2 = arith.constant 2 : index
    %c0_12 = arith.constant 0 : index
    %c0_13 = arith.constant 0 : index
    %13 = vector.load %arg2[%c2, %c0_12, %c0_13] : memref<5x128x256xbf16, #tpu.memory_space<vmem>>, vector<1x128x256xbf16>
    %14 = vector.shape_cast %13 : vector<1x128x256xbf16> to vector<128x256xbf16>
    %cst_14 = arith.constant dense<0.000000e+00> : vector<448x256xf32>
    %15 = tpu.matmul %12, %14, %cst_14 {dimension_numbers = #tpu.dot_dimension_numbers<[1], [0], [0], [1], [0, 0, 1, 1], [], []>} : vector<448x128xbf16>, vector<128x256xbf16>, vector<448x256xf32> -> vector<448x256xf32>
    %16 = arith.addf %10, %15 : vector<448x256xf32>
    %c0_15 = arith.constant 0 : index
    %c48 = arith.constant 48 : index
    %c0_16 = arith.constant 0 : index
    %17 = vector.load %arg1[%c0_15, %c48, %c0_16] : memref<1x512x128xbf16, #tpu.memory_space<vmem>>, vector<1x448x128xbf16>
    %18 = vector.shape_cast %17 : vector<1x448x128xbf16> to vector<448x128xbf16>
    %c3 = arith.constant 3 : index
    %c0_17 = arith.constant 0 : index
    %c0_18 = arith.constant 0 : index
    %19 = vector.load %arg2[%c3, %c0_17, %c0_18] : memref<5x128x256xbf16, #tpu.memory_space<vmem>>, vector<1x128x256xbf16>
    %20 = vector.shape_cast %19 : vector<1x128x256xbf16> to vector<128x256xbf16>
    %cst_19 = arith.constant dense<0.000000e+00> : vector<448x256xf32>
    %21 = tpu.matmul %18, %20, %cst_19 {dimension_numbers = #tpu.dot_dimension_numbers<[1], [0], [0], [1], [0, 0, 1, 1], [], []>} : vector<448x128xbf16>, vector<128x256xbf16>, vector<448x256xf32> -> vector<448x256xf32>
    %22 = arith.addf %16, %21 : vector<448x256xf32>
    %c0_20 = arith.constant 0 : index
    %c64 = arith.constant 64 : index
    %c0_21 = arith.constant 0 : index
    %23 = vector.load %arg1[%c0_20, %c64, %c0_21] : memref<1x512x128xbf16, #tpu.memory_space<vmem>>, vector<1x448x128xbf16>
    %24 = vector.shape_cast %23 : vector<1x448x128xbf16> to vector<448x128xbf16>
    %c4 = arith.constant 4 : index
    %c0_22 = arith.constant 0 : index
    %c0_23 = arith.constant 0 : index
    %25 = vector.load %arg2[%c4, %c0_22, %c0_23] : memref<5x128x256xbf16, #tpu.memory_space<vmem>>, vector<1x128x256xbf16>
    %26 = vector.shape_cast %25 : vector<1x128x256xbf16> to vector<128x256xbf16>
    %cst_24 = arith.constant dense<0.000000e+00> : vector<448x256xf32>
    %27 = tpu.matmul %24, %26, %cst_24 {dimension_numbers = #tpu.dot_dimension_numbers<[1], [0], [0], [1], [0, 0, 1, 1], [], []>} : vector<448x128xbf16>, vector<128x256xbf16>, vector<448x256xf32> -> vector<448x256xf32>
    %28 = arith.addf %22, %27 : vector<448x256xf32>
    %29 = vector.extract_strided_slice %28 {offsets = [0, 0], sizes = [448, 128], strides = [1, 1]} : vector<448x256xf32> to vector<448x128xf32>
    %30 = vector.extract_strided_slice %28 {offsets = [0, 128], sizes = [448, 128], strides = [1, 1]} : vector<448x256xf32> to vector<448x128xf32>
    %31 = arith.maximumf %29, %30 : vector<448x128xf32>
    %32 = vector.shape_cast %31 : vector<448x128xf32> to vector<14x32x128xf32>
    %33 = vector.extract_strided_slice %32 {offsets = [0, 0, 0], sizes = [14, 16, 128], strides = [1, 1, 1]} : vector<14x32x128xf32> to vector<14x16x128xf32>
    %34 = vector.extract_strided_slice %32 {offsets = [0, 16, 0], sizes = [14, 16, 128], strides = [1, 1, 1]} : vector<14x32x128xf32> to vector<14x16x128xf32>
    %35 = arith.maximumf %33, %34 : vector<14x16x128xf32>
    %36 = vector.shape_cast %35 : vector<14x16x128xf32> to vector<224x128xf32>
    %c0_25 = arith.constant 0 : index
    %c0_26 = arith.constant 0 : index
    %37 = vector.load %arg3[%c0_25, %c0_26] : memref<1x128xf32, #tpu.memory_space<vmem>>, vector<1x128xf32>
    %38 = vector.broadcast %37 : vector<1x128xf32> to vector<224x128xf32>
    %39 = arith.addf %36, %38 : vector<224x128xf32>
    %cst_27 = arith.constant 0.000000e+00 : f32
    %40 = vector.broadcast %cst_27 : f32 to vector<224x128xf32>
    %41 = arith.maximumf %39, %40 : vector<224x128xf32>
    %42 = arith.truncf %41 : vector<224x128xf32> to vector<224x128xbf16>
    %c0_28 = arith.constant 0 : index
    %c0_29 = arith.constant 0 : index
    %43 = vector.load %arg11[%c0_28, %c0_29] : memref<224x128xbf16, #tpu.memory_space<vmem>>, vector<224x128xbf16>
    tpu.vector_store %arg11[%c0_28, %c0_29], %42 {strides = array<i32>} : memref<224x128xbf16, #tpu.memory_space<vmem>>, vector<224x128xbf16>,
    %c0_30 = arith.constant 0 : index
    %c0_31 = arith.constant 0 : index
    %44 = vector.load %arg11[%c0_30, %c0_31] : memref<224x128xbf16, #tpu.memory_space<vmem>>, vector<160x128xbf16>
    %c0_32 = arith.constant 0 : index
    %c0_33 = arith.constant 0 : index
    %c0_34 = arith.constant 0 : index
    %45 = vector.load %arg4[%c0_32, %c0_33, %c0_34] : memref<5x128x256xbf16, #tpu.memory_space<vmem>>, vector<1x128x256xbf16>
    %46 = vector.shape_cast %45 : vector<1x128x256xbf16> to vector<128x256xbf16>
    %cst_35 = arith.constant dense<0.000000e+00> : vector<160x256xf32>
    %47 = tpu.matmul %44, %46, %cst_35 {dimension_numbers = #tpu.dot_dimension_numbers<[1], [0], [0], [1], [0, 0, 1, 1], [], []>} : vector<160x128xbf16>, vector<128x256xbf16>, vector<160x256xf32> -> vector<160x256xf32>
    %c16_36 = arith.constant 16 : index
    %c0_37 = arith.constant 0 : index
    %48 = vector.load %arg11[%c16_36, %c0_37] : memref<224x128xbf16, #tpu.memory_space<vmem>>, vector<160x128xbf16>
    %c1_38 = arith.constant 1 : index
    %c0_39 = arith.constant 0 : index
    %c0_40 = arith.constant 0 : index
    %49 = vector.load %arg4[%c1_38, %c0_39, %c0_40] : memref<5x128x256xbf16, #tpu.memory_space<vmem>>, vector<1x128x256xbf16>
    %50 = vector.shape_cast %49 : vector<1x128x256xbf16> to vector<128x256xbf16>
    %cst_41 = arith.constant dense<0.000000e+00> : vector<160x256xf32>
    %51 = tpu.matmul %48, %50, %cst_41 {dimension_numbers = #tpu.dot_dimension_numbers<[1], [0], [0], [1], [0, 0, 1, 1], [], []>} : vector<160x128xbf16>, vector<128x256xbf16>, vector<160x256xf32> -> vector<160x256xf32>
    %52 = arith.addf %47, %51 : vector<160x256xf32>
    %c32_42 = arith.constant 32 : index
    %c0_43 = arith.constant 0 : index
    %53 = vector.load %arg11[%c32_42, %c0_43] : memref<224x128xbf16, #tpu.memory_space<vmem>>, vector<160x128xbf16>
    %c2_44 = arith.constant 2 : index
    %c0_45 = arith.constant 0 : index
    %c0_46 = arith.constant 0 : index
    %54 = vector.load %arg4[%c2_44, %c0_45, %c0_46] : memref<5x128x256xbf16, #tpu.memory_space<vmem>>, vector<1x128x256xbf16>
    %55 = vector.shape_cast %54 : vector<1x128x256xbf16> to vector<128x256xbf16>
    %cst_47 = arith.constant dense<0.000000e+00> : vector<160x256xf32>
    %56 = tpu.matmul %53, %55, %cst_47 {dimension_numbers = #tpu.dot_dimension_numbers<[1], [0], [0], [1], [0, 0, 1, 1], [], []>} : vector<160x128xbf16>, vector<128x256xbf16>, vector<160x256xf32> -> vector<160x256xf32>
    %57 = arith.addf %52, %56 : vector<160x256xf32>
    %c48_48 = arith.constant 48 : index
    %c0_49 = arith.constant 0 : index
    %58 = vector.load %arg11[%c48_48, %c0_49] : memref<224x128xbf16, #tpu.memory_space<vmem>>, vector<160x128xbf16>
    %c3_50 = arith.constant 3 : index
    %c0_51 = arith.constant 0 : index
    %c0_52 = arith.constant 0 : index
    %59 = vector.load %arg4[%c3_50, %c0_51, %c0_52] : memref<5x128x256xbf16, #tpu.memory_space<vmem>>, vector<1x128x256xbf16>
    %60 = vector.shape_cast %59 : vector<1x128x256xbf16> to vector<128x256xbf16>
    %cst_53 = arith.constant dense<0.000000e+00> : vector<160x256xf32>
    %61 = tpu.matmul %58, %60, %cst_53 {dimension_numbers = #tpu.dot_dimension_numbers<[1], [0], [0], [1], [0, 0, 1, 1], [], []>} : vector<160x128xbf16>, vector<128x256xbf16>, vector<160x256xf32> -> vector<160x256xf32>
    %62 = arith.addf %57, %61 : vector<160x256xf32>
    %c64_54 = arith.constant 64 : index
    %c0_55 = arith.constant 0 : index
    %63 = vector.load %arg11[%c64_54, %c0_55] : memref<224x128xbf16, #tpu.memory_space<vmem>>, vector<160x128xbf16>
    %c4_56 = arith.constant 4 : index
    %c0_57 = arith.constant 0 : index
    %c0_58 = arith.constant 0 : index
    %64 = vector.load %arg4[%c4_56, %c0_57, %c0_58] : memref<5x128x256xbf16, #tpu.memory_space<vmem>>, vector<1x128x256xbf16>
    %65 = vector.shape_cast %64 : vector<1x128x256xbf16> to vector<128x256xbf16>
    %cst_59 = arith.constant dense<0.000000e+00> : vector<160x256xf32>
    %66 = tpu.matmul %63, %65, %cst_59 {dimension_numbers = #tpu.dot_dimension_numbers<[1], [0], [0], [1], [0, 0, 1, 1], [], []>} : vector<160x128xbf16>, vector<128x256xbf16>, vector<160x256xf32> -> vector<160x256xf32>
    %67 = arith.addf %62, %66 : vector<160x256xf32>
    %68 = vector.extract_strided_slice %67 {offsets = [0, 0], sizes = [160, 128], strides = [1, 1]} : vector<160x256xf32> to vector<160x128xf32>
    %69 = vector.extract_strided_slice %67 {offsets = [0, 128], sizes = [160, 128], strides = [1, 1]} : vector<160x256xf32> to vector<160x128xf32>
    %70 = arith.maximumf %68, %69 : vector<160x128xf32>
    %71 = vector.shape_cast %70 : vector<160x128xf32> to vector<5x32x128xf32>
    %72 = vector.extract_strided_slice %71 {offsets = [0, 0, 0], sizes = [5, 16, 128], strides = [1, 1, 1]} : vector<5x32x128xf32> to vector<5x16x128xf32>
    %73 = vector.extract_strided_slice %71 {offsets = [0, 16, 0], sizes = [5, 16, 128], strides = [1, 1, 1]} : vector<5x32x128xf32> to vector<5x16x128xf32>
    %74 = arith.maximumf %72, %73 : vector<5x16x128xf32>
    %75 = vector.shape_cast %74 : vector<5x16x128xf32> to vector<80x128xf32>
    %c0_60 = arith.constant 0 : index
    %c0_61 = arith.constant 0 : index
    %76 = vector.load %arg5[%c0_60, %c0_61] : memref<1x128xf32, #tpu.memory_space<vmem>>, vector<1x128xf32>
    %77 = vector.broadcast %76 : vector<1x128xf32> to vector<80x128xf32>
    %78 = arith.addf %75, %77 : vector<80x128xf32>
    %cst_62 = arith.constant 0.000000e+00 : f32
    %79 = vector.broadcast %cst_62 : f32 to vector<80x128xf32>
    %80 = arith.maximumf %78, %79 : vector<80x128xf32>
    %81 = arith.truncf %80 : vector<80x128xf32> to vector<80x128xbf16>
    %c0_63 = arith.constant 0 : index
    %c0_64 = arith.constant 0 : index
    %82 = vector.load %arg12[%c0_63, %c0_64] : memref<80x128xbf16, #tpu.memory_space<vmem>>, vector<80x128xbf16>
    tpu.vector_store %arg12[%c0_63, %c0_64], %81 {strides = array<i32>} : memref<80x128xbf16, #tpu.memory_space<vmem>>, vector<80x128xbf16>,
    %c0_65 = arith.constant 0 : index
    %c0_66 = arith.constant 0 : index
    %83 = vector.load %arg12[%c0_65, %c0_66] : memref<80x128xbf16, #tpu.memory_space<vmem>>, vector<16x128xbf16>
    %c0_67 = arith.constant 0 : index
    %c0_68 = arith.constant 0 : index
    %c0_69 = arith.constant 0 : index
    %84 = vector.load %arg6[%c0_67, %c0_68, %c0_69] : memref<5x128x256xbf16, #tpu.memory_space<vmem>>, vector<1x128x256xbf16>
    %85 = vector.shape_cast %84 : vector<1x128x256xbf16> to vector<128x256xbf16>
    %cst_70 = arith.constant dense<0.000000e+00> : vector<16x256xf32>
    %86 = tpu.matmul %83, %85, %cst_70 {dimension_numbers = #tpu.dot_dimension_numbers<[1], [0], [0], [1], [0, 0, 1, 1], [], []>} : vector<16x128xbf16>, vector<128x256xbf16>, vector<16x256xf32> -> vector<16x256xf32>
    %c16_71 = arith.constant 16 : index
    %c0_72 = arith.constant 0 : index
    %87 = vector.load %arg12[%c16_71, %c0_72] : memref<80x128xbf16, #tpu.memory_space<vmem>>, vector<16x128xbf16>
    %c1_73 = arith.constant 1 : index
    %c0_74 = arith.constant 0 : index
    %c0_75 = arith.constant 0 : index
    %88 = vector.load %arg6[%c1_73, %c0_74, %c0_75] : memref<5x128x256xbf16, #tpu.memory_space<vmem>>, vector<1x128x256xbf16>
    %89 = vector.shape_cast %88 : vector<1x128x256xbf16> to vector<128x256xbf16>
    %cst_76 = arith.constant dense<0.000000e+00> : vector<16x256xf32>
    %90 = tpu.matmul %87, %89, %cst_76 {dimension_numbers = #tpu.dot_dimension_numbers<[1], [0], [0], [1], [0, 0, 1, 1], [], []>} : vector<16x128xbf16>, vector<128x256xbf16>, vector<16x256xf32> -> vector<16x256xf32>
    %91 = arith.addf %86, %90 : vector<16x256xf32>
    %c32_77 = arith.constant 32 : index
    %c0_78 = arith.constant 0 : index
    %92 = vector.load %arg12[%c32_77, %c0_78] : memref<80x128xbf16, #tpu.memory_space<vmem>>, vector<16x128xbf16>
    %c2_79 = arith.constant 2 : index
    %c0_80 = arith.constant 0 : index
    %c0_81 = arith.constant 0 : index
    %93 = vector.load %arg6[%c2_79, %c0_80, %c0_81] : memref<5x128x256xbf16, #tpu.memory_space<vmem>>, vector<1x128x256xbf16>
    %94 = vector.shape_cast %93 : vector<1x128x256xbf16> to vector<128x256xbf16>
    %cst_82 = arith.constant dense<0.000000e+00> : vector<16x256xf32>
    %95 = tpu.matmul %92, %94, %cst_82 {dimension_numbers = #tpu.dot_dimension_numbers<[1], [0], [0], [1], [0, 0, 1, 1], [], []>} : vector<16x128xbf16>, vector<128x256xbf16>, vector<16x256xf32> -> vector<16x256xf32>
    %96 = arith.addf %91, %95 : vector<16x256xf32>
    %c48_83 = arith.constant 48 : index
    %c0_84 = arith.constant 0 : index
    %97 = vector.load %arg12[%c48_83, %c0_84] : memref<80x128xbf16, #tpu.memory_space<vmem>>, vector<16x128xbf16>
    %c3_85 = arith.constant 3 : index
    %c0_86 = arith.constant 0 : index
    %c0_87 = arith.constant 0 : index
    %98 = vector.load %arg6[%c3_85, %c0_86, %c0_87] : memref<5x128x256xbf16, #tpu.memory_space<vmem>>, vector<1x128x256xbf16>
    %99 = vector.shape_cast %98 : vector<1x128x256xbf16> to vector<128x256xbf16>
    %cst_88 = arith.constant dense<0.000000e+00> : vector<16x256xf32>
    %100 = tpu.matmul %97, %99, %cst_88 {dimension_numbers = #tpu.dot_dimension_numbers<[1], [0], [0], [1], [0, 0, 1, 1], [], []>} : vector<16x128xbf16>, vector<128x256xbf16>, vector<16x256xf32> -> vector<16x256xf32>
    %101 = arith.addf %96, %100 : vector<16x256xf32>
    %c64_89 = arith.constant 64 : index
    %c0_90 = arith.constant 0 : index
    %102 = vector.load %arg12[%c64_89, %c0_90] : memref<80x128xbf16, #tpu.memory_space<vmem>>, vector<16x128xbf16>
    %c4_91 = arith.constant 4 : index
    %c0_92 = arith.constant 0 : index
    %c0_93 = arith.constant 0 : index
    %103 = vector.load %arg6[%c4_91, %c0_92, %c0_93] : memref<5x128x256xbf16, #tpu.memory_space<vmem>>, vector<1x128x256xbf16>
    %104 = vector.shape_cast %103 : vector<1x128x256xbf16> to vector<128x256xbf16>
    %cst_94 = arith.constant dense<0.000000e+00> : vector<16x256xf32>
    %105 = tpu.matmul %102, %104, %cst_94 {dimension_numbers = #tpu.dot_dimension_numbers<[1], [0], [0], [1], [0, 0, 1, 1], [], []>} : vector<16x128xbf16>, vector<128x256xbf16>, vector<16x256xf32> -> vector<16x256xf32>
    %106 = arith.addf %101, %105 : vector<16x256xf32>
    %c0_95 = arith.constant 0 : index
    %c0_96 = arith.constant 0 : index
    %107 = vector.load %arg7[%c0_95, %c0_96] : memref<1x256xf32, #tpu.memory_space<vmem>>, vector<1x256xf32>
    %108 = vector.broadcast %107 : vector<1x256xf32> to vector<16x256xf32>
    %109 = arith.addf %106, %108 : vector<16x256xf32>
    %cst_97 = arith.constant 0.000000e+00 : f32
    %110 = vector.broadcast %cst_97 : f32 to vector<16x256xf32>
    %111 = arith.maximumf %109, %110 : vector<16x256xf32>
    %112 = arith.truncf %111 : vector<16x256xf32> to vector<16x256xbf16>
    %c0_98 = arith.constant 0 : index
    %c0_99 = arith.constant 0 : index
    %113 = vector.load %arg8[%c0_98, %c0_99] : memref<256x128xbf16, #tpu.memory_space<vmem>>, vector<256x128xbf16>
    %cst_100 = arith.constant dense<0.000000e+00> : vector<16x128xf32>
    %114 = tpu.matmul %112, %113, %cst_100 {dimension_numbers = #tpu.dot_dimension_numbers<[1], [0], [0], [1], [0, 0, 1, 1], [], []>} : vector<16x256xbf16>, vector<256x128xbf16>, vector<16x128xf32> -> vector<16x128xf32>
    %c0_101 = arith.constant 0 : index
    %c0_102 = arith.constant 0 : index
    %115 = vector.load %arg9[%c0_101, %c0_102] : memref<1x128xf32, #tpu.memory_space<vmem>>, vector<1x128xf32>
    %116 = vector.broadcast %115 : vector<1x128xf32> to vector<16x128xf32>
    %117 = arith.addf %114, %116 : vector<16x128xf32>
    %c0_103 = arith.constant 0 : index
    %c0_104 = arith.constant 0 : index
    %118 = vector.load %arg10[%c0_103, %c0_104] : memref<16x128xf32, #tpu.memory_space<vmem>>, vector<16x128xf32>
    tpu.vector_store %arg10[%c0_103, %c0_104], %117 {strides = array<i32>} : memref<16x128xf32, #tpu.memory_space<vmem>>, vector<16x128xf32>,
    return
  }
  func.func @transform_0(%arg0: i32) -> (i32, i32, i32) {
    %c0_i32 = arith.constant 0 : i32
    %c0_i32_0 = arith.constant 0 : i32
    %c0_i32_1 = arith.constant 0 : i32
    return %arg0, %c0_i32, %c0_i32_0 : i32, i32, i32
  }
  func.func @transform_1(%arg0: i32) -> (i32, i32, i32) {
    %c0_i32 = arith.constant 0 : i32
    %c0_i32_0 = arith.constant 0 : i32
    %c0_i32_1 = arith.constant 0 : i32
    %c0_i32_2 = arith.constant 0 : i32
    return %c0_i32, %c0_i32_0, %c0_i32_1 : i32, i32, i32
  }
  func.func @transform_2(%arg0: i32) -> (i32, i32) {
    %c0_i32 = arith.constant 0 : i32
    %c0_i32_0 = arith.constant 0 : i32
    %c0_i32_1 = arith.constant 0 : i32
    return %c0_i32, %c0_i32_0 : i32, i32
  }
  func.func @transform_3(%arg0: i32) -> (i32, i32, i32) {
    %c0_i32 = arith.constant 0 : i32
    %c0_i32_0 = arith.constant 0 : i32
    %c0_i32_1 = arith.constant 0 : i32
    %c0_i32_2 = arith.constant 0 : i32
    return %c0_i32, %c0_i32_0, %c0_i32_1 : i32, i32, i32
  }
  func.func @transform_4(%arg0: i32) -> (i32, i32) {
    %c0_i32 = arith.constant 0 : i32
    %c0_i32_0 = arith.constant 0 : i32
    %c0_i32_1 = arith.constant 0 : i32
    return %c0_i32, %c0_i32_0 : i32, i32
  }
  func.func @transform_5(%arg0: i32) -> (i32, i32, i32) {
    %c0_i32 = arith.constant 0 : i32
    %c0_i32_0 = arith.constant 0 : i32
    %c0_i32_1 = arith.constant 0 : i32
    %c0_i32_2 = arith.constant 0 : i32
    return %c0_i32, %c0_i32_0, %c0_i32_1 : i32, i32, i32
  }
  func.func @transform_6(%arg0: i32) -> (i32, i32) {
    %c0_i32 = arith.constant 0 : i32
    %c0_i32_0 = arith.constant 0 : i32
    %c0_i32_1 = arith.constant 0 : i32
    return %c0_i32, %c0_i32_0 : i32, i32
  }
  func.func @transform_7(%arg0: i32) -> (i32, i32) {
    %c0_i32 = arith.constant 0 : i32
    %c0_i32_0 = arith.constant 0 : i32
    %c0_i32_1 = arith.constant 0 : i32
    return %c0_i32, %c0_i32_0 : i32, i32
  }
  func.func @transform_8(%arg0: i32) -> (i32, i32) {
    %c0_i32 = arith.constant 0 : i32
    %c0_i32_0 = arith.constant 0 : i32
    %c0_i32_1 = arith.constant 0 : i32
    return %c0_i32, %c0_i32_0 : i32, i32
  }
  func.func @transform_9(%arg0: i32) -> (i32, i32) {
    %c0_i32 = arith.constant 0 : i32
    %c0_i32_0 = arith.constant 0 : i32
    return %arg0, %c0_i32 : i32, i32
  }
}

</mosaic_0001>

<llo_original>
// kernel: net_forward.1
$region0: #{net_forward.1}
  #allocation0 [shape = 'u32[]', space=smem, size = 0x4, offset = 0x4, fixed_abs, tag = 'smem constant byte address 0x4 - core index']
  #allocation1 [shape = 'u32[72,128]{1,0:T(1,128)}', space=vmem, size = 0x9000, scoped, tag = 'internal scratch']
  #allocation2 [shape = 'bf16[224,128]{1,0:T(8,128)(2,1)}', space=vmem, size = 0xe000, scoped, tag = 'scratch operand']
  #allocation3 [shape = 'bf16[80,128]{1,0:T(8,128)(2,1)}', space=vmem, size = 0x5000, scoped, tag = 'scratch operand']
  %s0 = inlined_call_operand.vmem [shape: bf16[1,512,128], index: 0, kind: input, shape index: {}]
  %s1 = inlined_call_operand.vmem [shape: bf16[5,128,256], index: 1, kind: input, shape index: {}]
  %s2 = inlined_call_operand.vmem [shape: f32[1,128], index: 2, kind: input, shape index: {}]
  %s3 = inlined_call_operand.vmem [shape: bf16[5,128,256], index: 3, kind: input, shape index: {}]
  %s4 = inlined_call_operand.vmem [shape: f32[1,128], index: 4, kind: input, shape index: {}]
  %s5 = inlined_call_operand.vmem [shape: bf16[5,128,256], index: 5, kind: input, shape index: {}]
  %s6 = inlined_call_operand.vmem [shape: f32[1,256], index: 6, kind: input, shape index: {}]
  %s7 = inlined_call_operand.vmem [shape: bf16[256,128], index: 7, kind: input, shape index: {}]
  %s8 = inlined_call_operand.vmem [shape: f32[1,128], index: 8, kind: input, shape index: {}]
  %s9 = inlined_call_operand.vmem [shape: f32[16,128], index: 9, kind: output, shape index: {}]
  %s10 = sld [smem:[#allocation0]]
  $region46: #{net_forward.1} parent=0
    _
  %s12 = ssub.s32 1, %s10
  %s13 = scalar_select 0, %s12, %s10
  // Predicated region
  $region2: #{net_forward.1} parent=0 // pred_check
    _
  $region3: #{net_forward.1} parent=0 // pred_check_branch
    %15 = sbr.rel (0) target = $region5
  $region4: #{net_forward.1} parent=0 // pred_region
    _
  $region5: #{net_forward.1} parent=0 // pred_fallthru
    _
  // Predicated region
  $region6: #{net_forward.1} parent=0 // pred_check
    _
  $region7: #{net_forward.1} parent=0 // pred_check_branch
    %17 = sbr.rel (0) target = $region9
  $region8: #{net_forward.1} parent=0 // pred_region
    _
  $region9: #{net_forward.1} parent=0 // pred_fallthru
    _
  // Predicated region
  $region10: #{net_forward.1} parent=0 // pred_check
    _
  $region11: #{net_forward.1} parent=0 // pred_check_branch
    %19 = sbr.rel (0) target = $region13
  $region12: #{net_forward.1} parent=0 // pred_region
    _
  $region13: #{net_forward.1} parent=0 // pred_fallthru
    _
  // Predicated region
  $region14: #{net_forward.1} parent=0 // pred_check
    _
  $region15: #{net_forward.1} parent=0 // pred_check_branch
    %21 = sbr.rel (0) target = $region17
  $region16: #{net_forward.1} parent=0 // pred_region
    _
  $region17: #{net_forward.1} parent=0 // pred_fallthru
    _
  // Predicated region
  $region18: #{net_forward.1} parent=0 // pred_check
    _
  $region19: #{net_forward.1} parent=0 // pred_check_branch
    %23 = sbr.rel (0) target = $region21
  $region20: #{net_forward.1} parent=0 // pred_region
    _
  $region21: #{net_forward.1} parent=0 // pred_fallthru
    _
  // Predicated region
  $region22: #{net_forward.1} parent=0 // pred_check
    _
  $region23: #{net_forward.1} parent=0 // pred_check_branch
    %25 = sbr.rel (0) target = $region25
  $region24: #{net_forward.1} parent=0 // pred_region
    _
  $region25: #{net_forward.1} parent=0 // pred_fallthru
    _
  // Predicated region
  $region26: #{net_forward.1} parent=0 // pred_check
    _
  $region27: #{net_forward.1} parent=0 // pred_check_branch
    %27 = sbr.rel (0) target = $region29
  $region28: #{net_forward.1} parent=0 // pred_region
    _
  $region29: #{net_forward.1} parent=0 // pred_fallthru
    _
  // Predicated region
  $region30: #{net_forward.1} parent=0 // pred_check
    _
  $region31: #{net_forward.1} parent=0 // pred_check_branch
    %29 = sbr.rel (0) target = $region33
  $region32: #{net_forward.1} parent=0 // pred_region
    _
  $region33: #{net_forward.1} parent=0 // pred_fallthru
    _
  // Predicated region
  $region34: #{net_forward.1} parent=0 // pred_check
    _
  $region35: #{net_forward.1} parent=0 // pred_check_branch
    %31 = sbr.rel (0) target = $region37
  $region36: #{net_forward.1} parent=0 // pred_region
    _
  $region37: #{net_forward.1} parent=0 // pred_fallthru
    _
  %v32 = vld [vmem:[%s0] sm:$0xf]
  %v33 = vld [vmem:[%s0 + $0x4] sm:$0xf]
  %v34 = vld [vmem:[%s0 + $0x8] sm:$0xf]
  %v35 = vld [vmem:[%s0 + $0xc] sm:$0xf]
  %v36 = vld [vmem:[%s0 + $0x10] sm:$0xf]
  %v37 = vld [vmem:[%s0 + $0x14] sm:$0xf]
  %v38 = vld [vmem:[%s0 + $0x18] sm:$0xf]
  %v39 = vld [vmem:[%s0 + $0x1c] sm:$0xf]
  %v40 = vld [vmem:[%s0 + $0x20] sm:$0xf]
  %v41 = vld [vmem:[%s0 + $0x24] sm:$0xf]
  %v42 = vld [vmem:[%s0 + $0x28] sm:$0xf]
  %v43 = vld [vmem:[%s0 + $0x2c] sm:$0xf]
  %v44 = vld [vmem:[%s0 + $0x30] sm:$0xf]
  %v45 = vld [vmem:[%s0 + $0x34] sm:$0xf]
  %v46 = vld [vmem:[%s0 + $0x38] sm:$0xf]
  %v47 = vld [vmem:[%s0 + $0x3c] sm:$0xf]
  %v48 = vld [vmem:[%s0 + $0x40] sm:$0xf]
  %v49 = vld [vmem:[%s0 + $0x44] sm:$0xf]
  %v50 = vld [vmem:[%s0 + $0x48] sm:$0xf]
  %v51 = vld [vmem:[%s0 + $0x4c] sm:$0xf]
  %v52 = vld [vmem:[%s0 + $0x50] sm:$0xf]
  %v53 = vld [vmem:[%s0 + $0x54] sm:$0xf]
  %v54 = vld [vmem:[%s0 + $0x58] sm:$0xf]
  %v55 = vld [vmem:[%s0 + $0x5c] sm:$0xf]
  %v56 = vld [vmem:[%s0 + $0x60] sm:$0xf]
  %v57 = vld [vmem:[%s0 + $0x64] sm:$0xf]
  %v58 = vld [vmem:[%s0 + $0x68] sm:$0xf]
  %v59 = vld [vmem:[%s0 + $0x6c] sm:$0xf]
  %v60 = vld [vmem:[%s0 + $0x70] sm:$0xf]
  %v61 = vld [vmem:[%s0 + $0x74] sm:$0xf]
  %v62 = vld [vmem:[%s0 + $0x78] sm:$0xf]
  %v63 = vld [vmem:[%s0 + $0x7c] sm:$0xf]
  %v64 = vld [vmem:[%s0 + $0x80] sm:$0xf]
  %v65 = vld [vmem:[%s0 + $0x84] sm:$0xf]
  %v66 = vld [vmem:[%s0 + $0x88] sm:$0xf]
  %v67 = vld [vmem:[%s0 + $0x8c] sm:$0xf]
  %v68 = vld [vmem:[%s0 + $0x90] sm:$0xf]
  %v69 = vld [vmem:[%s0 + $0x94] sm:$0xf]
  %v70 = vld [vmem:[%s0 + $0x98] sm:$0xf]
  %v71 = vld [vmem:[%s0 + $0x9c] sm:$0xf]
  %v72 = vld [vmem:[%s0 + $0xa0] sm:$0xf]
  %v73 = vld [vmem:[%s0 + $0xa4] sm:$0xf]
  %v74 = vld [vmem:[%s0 + $0xa8] sm:$0xf]
  %v75 = vld [vmem:[%s0 + $0xac] sm:$0xf]
  %v76 = vld [vmem:[%s0 + $0xb0] sm:$0xf]
  %v77 = vld [vmem:[%s0 + $0xb4] sm:$0xf]
  %v78 = vld [vmem:[%s0 + $0xb8] sm:$0xf]
  %v79 = vld [vmem:[%s0 + $0xbc] sm:$0xf]
  %v80 = vld [vmem:[%s0 + $0xc0] sm:$0xf]
  %v81 = vld [vmem:[%s0 + $0xc4] sm:$0xf]
  %v82 = vld [vmem:[%s0 + $0xc8] sm:$0xf]
  %v83 = vld [vmem:[%s0 + $0xcc] sm:$0xf]
  %v84 = vld [vmem:[%s0 + $0xd0] sm:$0xf]
  %v85 = vld [vmem:[%s0 + $0xd4] sm:$0xf]
  %v86 = vld [vmem:[%s0 + $0xd8] sm:$0xf]
  %v87 = vld [vmem:[%s0 + $0xdc] sm:$0xf]
  %v88 = vld [vmem:[%s1] sm:$0xff]
  %v89 = vld [vmem:[%s1 + $0x8] sm:$0xff]
  %v90 = vld [vmem:[%s1 + $0x10] sm:$0xff]
  %v91 = vld [vmem:[%s1 + $0x18] sm:$0xff]
  %v92 = vld [vmem:[%s1 + $0x20] sm:$0xff]
  %v93 = vld [vmem:[%s1 + $0x28] sm:$0xff]
  %v94 = vld [vmem:[%s1 + $0x30] sm:$0xff]
  %v95 = vld [vmem:[%s1 + $0x38] sm:$0xff]
  %v96 = vld [vmem:[%s1 + $0x40] sm:$0xff]
  %v97 = vld [vmem:[%s1 + $0x48] sm:$0xff]
  %v98 = vld [vmem:[%s1 + $0x50] sm:$0xff]
  %v99 = vld [vmem:[%s1 + $0x58] sm:$0xff]
  %v100 = vld [vmem:[%s1 + $0x60] sm:$0xff]
  %v101 = vld [vmem:[%s1 + $0x68] sm:$0xff]
  %v102 = vld [vmem:[%s1 + $0x70] sm:$0xff]
  %v103 = vld [vmem:[%s1 + $0x78] sm:$0xff]
  %v104 = vld [vmem:[%s0 + $0xe0] sm:$0xf]
  %v105 = vld [vmem:[%s0 + $0xe4] sm:$0xf]
  %s106 = scalar_lea.vmem %s1, 128
  %v107 = vld [vmem:[%s106] sm:$0xff]
  %v108 = vld [vmem:[%s106 + $0x8] sm:$0xff]
  %v109 = vld [vmem:[%s106 + $0x10] sm:$0xff]
  %v110 = vld [vmem:[%s106 + $0x18] sm:$0xff]
  %v111 = vld [vmem:[%s106 + $0x20] sm:$0xff]
  %v112 = vld [vmem:[%s106 + $0x28] sm:$0xff]
  %v113 = vld [vmem:[%s106 + $0x30] sm:$0xff]
  %v114 = vld [vmem:[%s106 + $0x38] sm:$0xff]
  %v115 = vld [vmem:[%s106 + $0x40] sm:$0xff]
  %v116 = vld [vmem:[%s106 + $0x48] sm:$0xff]
  %v117 = vld [vmem:[%s106 + $0x50] sm:$0xff]
  %v118 = vld [vmem:[%s106 + $0x58] sm:$0xff]
  %v119 = vld [vmem:[%s106 + $0x60] sm:$0xff]
  %v120 = vld [vmem:[%s106 + $0x68] sm:$0xff]
  %v121 = vld [vmem:[%s106 + $0x70] sm:$0xff]
  %v122 = vld [vmem:[%s106 + $0x78] sm:$0xff]
  %v179 = vunpack.c.l.b16 %v34
  %v180 = vunpack.c.l.b16 %v35
  %v181 = vunpack.c.l.b16 %v36
  %v182 = vunpack.c.l.b16 %v37
  %v183 = vunpack.c.l.b16 %v38
  %v184 = vunpack.c.l.b16 %v39
  %v185 = vunpack.c.l.b16 %v40
  %v186 = vunpack.c.l.b16 %v41
  %v187 = vunpack.c.l.b16 %v42
  %v188 = vunpack.c.l.b16 %v43
  %v189 = vunpack.c.l.b16 %v44
  %v190 = vunpack.c.l.b16 %v45
  %v191 = vunpack.c.l.b16 %v46
  %v192 = vunpack.c.l.b16 %v47
  %v193 = vunpack.c.l.b16 %v48
  %v194 = vunpack.c.l.b16 %v49
  %v195 = vunpack.c.l.b16 %v50
  %v196 = vunpack.c.l.b16 %v51
  %v197 = vunpack.c.l.b16 %v52
  %v198 = vunpack.c.l.b16 %v53
  %v199 = vunpack.c.l.b16 %v54
  %v200 = vunpack.c.l.b16 %v55
  %v201 = vunpack.c.l.b16 %v56
  %v202 = vunpack.c.l.b16 %v57
  %v203 = vunpack.c.l.b16 %v58
  %v204 = vunpack.c.l.b16 %v59
  %v205 = vunpack.c.l.b16 %v60
  %v206 = vunpack.c.l.b16 %v61
  %v207 = vunpack.c.l.b16 %v62
  %v208 = vunpack.c.l.b16 %v63
  %v209 = vunpack.c.l.b16 %v64
  %v210 = vunpack.c.l.b16 %v65
  %v211 = vunpack.c.l.b16 %v66
  %v212 = vunpack.c.l.b16 %v67
  %v213 = vunpack.c.l.b16 %v68
  %v214 = vunpack.c.l.b16 %v69
  %v215 = vunpack.c.l.b16 %v70
  %v216 = vunpack.c.l.b16 %v71
  %v217 = vunpack.c.l.b16 %v72
  %v218 = vunpack.c.l.b16 %v73
  %v219 = vunpack.c.l.b16 %v74
  %v220 = vunpack.c.l.b16 %v75
  %v221 = vunpack.c.l.b16 %v76
  %v222 = vunpack.c.l.b16 %v77
  %v223 = vunpack.c.l.b16 %v78
  %v224 = vunpack.c.l.b16 %v79
  %v225 = vunpack.c.l.b16 %v80
  %v226 = vunpack.c.l.b16 %v81
  %v227 = vunpack.c.l.b16 %v82
  %v228 = vunpack.c.l.b16 %v83
  %v229 = vunpack.c.l.b16 %v84
  %v230 = vunpack.c.l.b16 %v85
  %v231 = vunpack.c.l.b16 %v86
  %v232 = vunpack.c.l.b16 %v87
  %v233 = vunpack.c.l.b16 %v104
  %v234 = vunpack.c.l.b16 %v105
  %v235 = vpack.c.b16 %v180, %v179
  %v236 = vpack.c.b16 %v182, %v181
  %v237 = vpack.c.b16 %v184, %v183
  %v238 = vpack.c.b16 %v186, %v185
  %v239 = vpack.c.b16 %v188, %v187
  %v240 = vpack.c.b16 %v190, %v189
  %v241 = vpack.c.b16 %v192, %v191
  %v242 = vpack.c.b16 %v194, %v193
  %v243 = vpack.c.b16 %v196, %v195
  %v244 = vpack.c.b16 %v198, %v197
  %v245 = vpack.c.b16 %v200, %v199
  %v246 = vpack.c.b16 %v202, %v201
  %v247 = vpack.c.b16 %v204, %v203
  %v248 = vpack.c.b16 %v206, %v205
  %v249 = vpack.c.b16 %v208, %v207
  %v250 = vpack.c.b16 %v210, %v209
  %v251 = vpack.c.b16 %v212, %v211
  %v252 = vpack.c.b16 %v214, %v213
  %v253 = vpack.c.b16 %v216, %v215
  %v254 = vpack.c.b16 %v218, %v217
  %v255 = vpack.c.b16 %v220, %v219
  %v256 = vpack.c.b16 %v222, %v221
  %v257 = vpack.c.b16 %v224, %v223
  %v258 = vpack.c.b16 %v226, %v225
  %v259 = vpack.c.b16 %v228, %v227
  %v260 = vpack.c.b16 %v230, %v229
  %v261 = vpack.c.b16 %v232, %v231
  %v262 = vpack.c.b16 %v234, %v233
  %v307 = vunpack.c.l.b16 %v107
  %v308 = vunpack.c.h.b16 %v107
  %v309 = vunpack.c.l.b16 %v108
  %v310 = vunpack.c.h.b16 %v108
  %v311 = vunpack.c.l.b16 %v109
  %v312 = vunpack.c.h.b16 %v109
  %v313 = vunpack.c.l.b16 %v110
  %v314 = vunpack.c.h.b16 %v110
  %v315 = vunpack.c.l.b16 %v111
  %v316 = vunpack.c.h.b16 %v111
  %v317 = vunpack.c.l.b16 %v112
  %v318 = vunpack.c.h.b16 %v112
  %v319 = vunpack.c.l.b16 %v113
  %v320 = vunpack.c.h.b16 %v113
  %v321 = vunpack.c.l.b16 %v114
  %v322 = vunpack.c.h.b16 %v114
  %v323 = vunpack.c.l.b16 %v115
  %v324 = vunpack.c.h.b16 %v115
  %v325 = vunpack.c.l.b16 %v116
  %v326 = vunpack.c.h.b16 %v116
  %v327 = vunpack.c.l.b16 %v117
  %v328 = vunpack.c.h.b16 %v117
  %v329 = vunpack.c.l.b16 %v118
  %v330 = vunpack.c.h.b16 %v118
  %v331 = vunpack.c.l.b16 %v119
  %v332 = vunpack.c.h.b16 %v119
  %v333 = vunpack.c.l.b16 %v120
  %v334 = vunpack.c.h.b16 %v120
  %v335 = vunpack.c.l.b16 %v121
  %v336 = vunpack.c.h.b16 %v121
  %v337 = vunpack.c.l.b16 %v122
  %v338 = vunpack.c.h.b16 %v122
  %v339 = vpack.c.b16 %v309, %v307
  %v340 = vpack.c.b16 %v310, %v308
  %v341 = vpack.c.b16 %v313, %v311
  %v342 = vpack.c.b16 %v314, %v312
  %v343 = vpack.c.b16 %v317, %v315
  %v344 = vpack.c.b16 %v318, %v316
  %v345 = vpack.c.b16 %v321, %v319
  %v346 = vpack.c.b16 %v322, %v320
  %v347 = vpack.c.b16 %v325, %v323
  %v348 = vpack.c.b16 %v326, %v324
  %v349 = vpack.c.b16 %v329, %v327
  %v350 = vpack.c.b16 %v330, %v328
  %v351 = vpack.c.b16 %v333, %v331
  %v352 = vpack.c.b16 %v334, %v332
  %v353 = vpack.c.b16 %v337, %v335
  %v354 = vpack.c.b16 %v338, %v336
  %371 = vmatpush.bf16.msra.mxu0 %v353
  %372 = vmatpush.bf16.msra.mxu0 %v351
  %373 = vmatpush.bf16.msra.mxu0 %v349
  %374 = vmatpush.bf16.msra.mxu0 %v347
  %375 = vmatpush.bf16.msra.mxu0 %v345
  %376 = vmatpush.bf16.msra.mxu0 %v343
  %377 = vmatpush.bf16.msra.mxu0 %v341
  %378 = vmatpush.bf16.msra.mxu0 %v339
  %379 = vmatmul.bf16.gmra.mxu0 %v235
  %v380 = vpop.f32.mrf.mxu0
  %v381 = vadd.f32 0.0, %v380
  %v382 = vpop.f32.mrf.mxu0
  %v383 = vadd.f32 0.0, %v382
  %384 = vmatmul.bf16.gmra.mxu0 %v236
  %v385 = vpop.f32.mrf.mxu0
  %v386 = vadd.f32 0.0, %v385
  %v387 = vpop.f32.mrf.mxu0
  %v388 = vadd.f32 0.0, %v387
  %389 = vmatmul.bf16.gmra.mxu0 %v237
  %v390 = vpop.f32.mrf.mxu0
  %v391 = vadd.f32 0.0, %v390
  %v392 = vpop.f32.mrf.mxu0
  %v393 = vadd.f32 0.0, %v392
  %394 = vmatmul.bf16.gmra.mxu0 %v238
  %v395 = vpop.f32.mrf.mxu0
  %v396 = vadd.f32 0.0, %v395
  %v397 = vpop.f32.mrf.mxu0
  %v398 = vadd.f32 0.0, %v397
  %399 = vmatmul.bf16.gmra.mxu0 %v239
  %v400 = vpop.f32.mrf.mxu0
  %v401 = vadd.f32 0.0, %v400
  %v402 = vpop.f32.mrf.mxu0
  %v403 = vadd.f32 0.0, %v402
  %404 = vmatmul.bf16.gmra.mxu0 %v240
  %v405 = vpop.f32.mrf.mxu0
  %v406 = vadd.f32 0.0, %v405
  %v407 = vpop.f32.mrf.mxu0
  %v408 = vadd.f32 0.0, %v407
  %409 = vmatmul.bf16.gmra.mxu0 %v241
  %v410 = vpop.f32.mrf.mxu0
  %v411 = vadd.f32 0.0, %v410
  %v412 = vpop.f32.mrf.mxu0
  %v413 = vadd.f32 0.0, %v412
  %414 = vmatmul.bf16.gmra.mxu0 %v242
  %v415 = vpop.f32.mrf.mxu0
  %v416 = vadd.f32 0.0, %v415
  %v417 = vpop.f32.mrf.mxu0
  %v418 = vadd.f32 0.0, %v417
  %419 = vmatmul.bf16.gmra.mxu0 %v243
  %v420 = vpop.f32.mrf.mxu0
  %v421 = vadd.f32 0.0, %v420
  %v422 = vpop.f32.mrf.mxu0
  %v423 = vadd.f32 0.0, %v422
  %424 = vmatmul.bf16.gmra.mxu0 %v244
  %v425 = vpop.f32.mrf.mxu0
  %v426 = vadd.f32 0.0, %v425
  %v427 = vpop.f32.mrf.mxu0
  %v428 = vadd.f32 0.0, %v427
  %429 = vmatmul.bf16.gmra.mxu0 %v245
  %v430 = vpop.f32.mrf.mxu0
  %v431 = vadd.f32 0.0, %v430
  %v432 = vpop.f32.mrf.mxu0
  %v433 = vadd.f32 0.0, %v432
  %434 = vmatmul.bf16.gmra.mxu0 %v246
  %v435 = vpop.f32.mrf.mxu0
  %v436 = vadd.f32 0.0, %v435
  %v437 = vpop.f32.mrf.mxu0
  %v438 = vadd.f32 0.0, %v437
  %439 = vmatmul.bf16.gmra.mxu0 %v247
  %v440 = vpop.f32.mrf.mxu0
  %v441 = vadd.f32 0.0, %v440
  %v442 = vpop.f32.mrf.mxu0
  %v443 = vadd.f32 0.0, %v442
  %444 = vmatmul.bf16.gmra.mxu0 %v248
  %v445 = vpop.f32.mrf.mxu0
  %v446 = vadd.f32 0.0, %v445
  %v447 = vpop.f32.mrf.mxu0
  %v448 = vadd.f32 0.0, %v447
  %449 = vmatmul.bf16.gmra.mxu0 %v249
  %v450 = vpop.f32.mrf.mxu0
  %v451 = vadd.f32 0.0, %v450
  %v452 = vpop.f32.mrf.mxu0
  %v453 = vadd.f32 0.0, %v452
  %454 = vmatmul.bf16.gmra.mxu0 %v250
  %v455 = vpop.f32.mrf.mxu0
  %v456 = vadd.f32 0.0, %v455
  %v457 = vpop.f32.mrf.mxu0
  %v458 = vadd.f32 0.0, %v457
  %459 = vmatmul.bf16.gmra.mxu0 %v251
  %v460 = vpop.f32.mrf.mxu0
  %v461 = vadd.f32 0.0, %v460
  %v462 = vpop.f32.mrf.mxu0
  %v463 = vadd.f32 0.0, %v462
  %464 = vmatmul.bf16.gmra.mxu0 %v252
  %v465 = vpop.f32.mrf.mxu0
  %v466 = vadd.f32 0.0, %v465
  %v467 = vpop.f32.mrf.mxu0
  %v468 = vadd.f32 0.0, %v467
  %469 = vmatmul.bf16.gmra.mxu0 %v253
  %v470 = vpop.f32.mrf.mxu0
  %v471 = vadd.f32 0.0, %v470
  %v472 = vpop.f32.mrf.mxu0
  %v473 = vadd.f32 0.0, %v472
  %474 = vmatmul.bf16.gmra.mxu0 %v254
  %v475 = vpop.f32.mrf.mxu0
  %v476 = vadd.f32 0.0, %v475
  %v477 = vpop.f32.mrf.mxu0
  %v478 = vadd.f32 0.0, %v477
  %479 = vmatmul.bf16.gmra.mxu0 %v255
  %v480 = vpop.f32.mrf.mxu0
  %v481 = vadd.f32 0.0, %v480
  %v482 = vpop.f32.mrf.mxu0
  %v483 = vadd.f32 0.0, %v482
  %484 = vmatmul.bf16.gmra.mxu0 %v256
  %v485 = vpop.f32.mrf.mxu0
  %v486 = vadd.f32 0.0, %v485
  %v487 = vpop.f32.mrf.mxu0
  %v488 = vadd.f32 0.0, %v487
  %489 = vmatmul.bf16.gmra.mxu0 %v257
  %v490 = vpop.f32.mrf.mxu0
  %v491 = vadd.f32 0.0, %v490
  %v492 = vpop.f32.mrf.mxu0
  %v493 = vadd.f32 0.0, %v492
  %494 = vmatmul.bf16.gmra.mxu0 %v258
  %v495 = vpop.f32.mrf.mxu0
  %v496 = vadd.f32 0.0, %v495
  %v497 = vpop.f32.mrf.mxu0
  %v498 = vadd.f32 0.0, %v497
  %499 = vmatmul.bf16.gmra.mxu0 %v259
  %v500 = vpop.f32.mrf.mxu0
  %v501 = vadd.f32 0.0, %v500
  %v502 = vpop.f32.mrf.mxu0
  %v503 = vadd.f32 0.0, %v502
  %504 = vmatmul.bf16.gmra.mxu0 %v260
  %v505 = vpop.f32.mrf.mxu0
  %v506 = vadd.f32 0.0, %v505
  %v507 = vpop.f32.mrf.mxu0
  %v508 = vadd.f32 0.0, %v507
  %509 = vmatmul.bf16.gmra.mxu0 %v261
  %v510 = vpop.f32.mrf.mxu0
  %v511 = vadd.f32 0.0, %v510
  %v512 = vpop.f32.mrf.mxu0
  %v513 = vadd.f32 0.0, %v512
  %514 = vmatmul.bf16.gmra.mxu0 %v262
  %v515 = vpop.f32.mrf.mxu0
  %v516 = vadd.f32 0.0, %v515
  %v517 = vpop.f32.mrf.mxu0
  %v518 = vadd.f32 0.0, %v517
  %519 = vdwg.mxu0
  %520 = vmatpush.bf16.msra.mxu0 %v354
  %521 = vmatpush.bf16.msra.mxu0 %v352
  %522 = vmatpush.bf16.msra.mxu0 %v350
  %523 = vmatpush.bf16.msra.mxu0 %v348
  %524 = vmatpush.bf16.msra.mxu0 %v346
  %525 = vmatpush.bf16.msra.mxu0 %v344
  %526 = vmatpush.bf16.msra.mxu0 %v342
  %527 = vmatpush.bf16.msra.mxu0 %v340
  %528 = vmatmul.bf16.gmra.mxu0 %v235
  %v529 = vpop.f32.mrf.mxu0
  %v530 = vadd.f32 0.0, %v529
  %v531 = vpop.f32.mrf.mxu0
  %v532 = vadd.f32 0.0, %v531
  %533 = vmatmul.bf16.gmra.mxu0 %v236
  %v534 = vpop.f32.mrf.mxu0
  %v535 = vadd.f32 0.0, %v534
  %v536 = vpop.f32.mrf.mxu0
  %v537 = vadd.f32 0.0, %v536
  %538 = vmatmul.bf16.gmra.mxu0 %v237
  %v539 = vpop.f32.mrf.mxu0
  %v540 = vadd.f32 0.0, %v539
  %v541 = vpop.f32.mrf.mxu0
  %v542 = vadd.f32 0.0, %v541
  %543 = vmatmul.bf16.gmra.mxu0 %v238
  %v544 = vpop.f32.mrf.mxu0
  %v545 = vadd.f32 0.0, %v544
  %v546 = vpop.f32.mrf.mxu0
  %v547 = vadd.f32 0.0, %v546
  %548 = vmatmul.bf16.gmra.mxu0 %v239
  %v549 = vpop.f32.mrf.mxu0
  %v550 = vadd.f32 0.0, %v549
  %v551 = vpop.f32.mrf.mxu0
  %v552 = vadd.f32 0.0, %v551
  %553 = vmatmul.bf16.gmra.mxu0 %v240
  %v554 = vpop.f32.mrf.mxu0
  %v555 = vadd.f32 0.0, %v554
  %v556 = vpop.f32.mrf.mxu0
  %v557 = vadd.f32 0.0, %v556
  %558 = vmatmul.bf16.gmra.mxu0 %v241
  %v559 = vpop.f32.mrf.mxu0
  %v560 = vadd.f32 0.0, %v559
  %v561 = vpop.f32.mrf.mxu0
  %v562 = vadd.f32 0.0, %v561
  %563 = vmatmul.bf16.gmra.mxu0 %v242
  %v564 = vpop.f32.mrf.mxu0
  %v565 = vadd.f32 0.0, %v564
  %v566 = vpop.f32.mrf.mxu0
  %v567 = vadd.f32 0.0, %v566
  %568 = vmatmul.bf16.gmra.mxu0 %v243
  %v569 = vpop.f32.mrf.mxu0
  %v570 = vadd.f32 0.0, %v569
  %v571 = vpop.f32.mrf.mxu0
  %v572 = vadd.f32 0.0, %v571
  %573 = vmatmul.bf16.gmra.mxu0 %v244
  %v574 = vpop.f32.mrf.mxu0
  %v575 = vadd.f32 0.0, %v574
  %v576 = vpop.f32.mrf.mxu0
  %v577 = vadd.f32 0.0, %v576
  %578 = vmatmul.bf16.gmra.mxu0 %v245
  %v579 = vpop.f32.mrf.mxu0
  %v580 = vadd.f32 0.0, %v579
  %v581 = vpop.f32.mrf.mxu0
  %v582 = vadd.f32 0.0, %v581
  %583 = vmatmul.bf16.gmra.mxu0 %v246
  %v584 = vpop.f32.mrf.mxu0
  %v585 = vadd.f32 0.0, %v584
  %v586 = vpop.f32.mrf.mxu0
  %v587 = vadd.f32 0.0, %v586
  %588 = vmatmul.bf16.gmra.mxu0 %v247
  %v589 = vpop.f32.mrf.mxu0
  %v590 = vadd.f32 0.0, %v589
  %v591 = vpop.f32.mrf.mxu0
  %v592 = vadd.f32 0.0, %v591
  %593 = vmatmul.bf16.gmra.mxu0 %v248
  %v594 = vpop.f32.mrf.mxu0
  %v595 = vadd.f32 0.0, %v594
  %v596 = vpop.f32.mrf.mxu0
  %v597 = vadd.f32 0.0, %v596
  %598 = vmatmul.bf16.gmra.mxu0 %v249
  %v599 = vpop.f32.mrf.mxu0
  %v600 = vadd.f32 0.0, %v599
  %v601 = vpop.f32.mrf.mxu0
  %v602 = vadd.f32 0.0, %v601
  %603 = vmatmul.bf16.gmra.mxu0 %v250
  %v604 = vpop.f32.mrf.mxu0
  %v605 = vadd.f32 0.0, %v604
  %v606 = vpop.f32.mrf.mxu0
  %v607 = vadd.f32 0.0, %v606
  %608 = vmatmul.bf16.gmra.mxu0 %v251
  %v609 = vpop.f32.mrf.mxu0
  %v610 = vadd.f32 0.0, %v609
  %v611 = vpop.f32.mrf.mxu0
  %v612 = vadd.f32 0.0, %v611
  %613 = vmatmul.bf16.gmra.mxu0 %v252
  %v614 = vpop.f32.mrf.mxu0
  %v615 = vadd.f32 0.0, %v614
  %v616 = vpop.f32.mrf.mxu0
  %v617 = vadd.f32 0.0, %v616
  %618 = vmatmul.bf16.gmra.mxu0 %v253
  %v619 = vpop.f32.mrf.mxu0
  %v620 = vadd.f32 0.0, %v619
  %v621 = vpop.f32.mrf.mxu0
  %v622 = vadd.f32 0.0, %v621
  %623 = vmatmul.bf16.gmra.mxu0 %v254
  %v624 = vpop.f32.mrf.mxu0
  %v625 = vadd.f32 0.0, %v624
  %v626 = vpop.f32.mrf.mxu0
  %v627 = vadd.f32 0.0, %v626
  %628 = vmatmul.bf16.gmra.mxu0 %v255
  %v629 = vpop.f32.mrf.mxu0
  %v630 = vadd.f32 0.0, %v629
  %v631 = vpop.f32.mrf.mxu0
  %v632 = vadd.f32 0.0, %v631
  %633 = vmatmul.bf16.gmra.mxu0 %v256
  %v634 = vpop.f32.mrf.mxu0
  %v635 = vadd.f32 0.0, %v634
  %v636 = vpop.f32.mrf.mxu0
  %v637 = vadd.f32 0.0, %v636
  %638 = vmatmul.bf16.gmra.mxu0 %v257
  %v639 = vpop.f32.mrf.mxu0
  %v640 = vadd.f32 0.0, %v639
  %v641 = vpop.f32.mrf.mxu0
  %v642 = vadd.f32 0.0, %v641
  %643 = vmatmul.bf16.gmra.mxu0 %v258
  %v644 = vpop.f32.mrf.mxu0
  %v645 = vadd.f32 0.0, %v644
  %v646 = vpop.f32.mrf.mxu0
  %v647 = vadd.f32 0.0, %v646
  %648 = vmatmul.bf16.gmra.mxu0 %v259
  %v649 = vpop.f32.mrf.mxu0
  %v650 = vadd.f32 0.0, %v649
  %v651 = vpop.f32.mrf.mxu0
  %v652 = vadd.f32 0.0, %v651
  %653 = vmatmul.bf16.gmra.mxu0 %v260
  %v654 = vpop.f32.mrf.mxu0
  %v655 = vadd.f32 0.0, %v654
  %v656 = vpop.f32.mrf.mxu0
  %v657 = vadd.f32 0.0, %v656
  %658 = vmatmul.bf16.gmra.mxu0 %v261
  %v659 = vpop.f32.mrf.mxu0
  %v660 = vadd.f32 0.0, %v659
  %v661 = vpop.f32.mrf.mxu0
  %v662 = vadd.f32 0.0, %v661
  %663 = vmatmul.bf16.gmra.mxu0 %v262
  %v664 = vpop.f32.mrf.mxu0
  %v665 = vadd.f32 0.0, %v664
  %v666 = vpop.f32.mrf.mxu0
  %v667 = vadd.f32 0.0, %v666
  %668 = vdwg.mxu0
  %v671 = vunpack.c.l.b16 %v32
  %v672 = vunpack.c.l.b16 %v33
  %v673 = vpack.c.b16 %v672, %v671
  %v691 = vunpack.c.l.b16 %v88
  %v692 = vunpack.c.h.b16 %v88
  %v693 = vunpack.c.l.b16 %v89
  %v694 = vunpack.c.h.b16 %v89
  %v695 = vunpack.c.l.b16 %v90
  %v696 = vunpack.c.h.b16 %v90
  %v697 = vunpack.c.l.b16 %v91
  %v698 = vunpack.c.h.b16 %v91
  %v699 = vunpack.c.l.b16 %v92
  %v700 = vunpack.c.h.b16 %v92
  %v701 = vunpack.c.l.b16 %v93
  %v702 = vunpack.c.h.b16 %v93
  %v703 = vunpack.c.l.b16 %v94
  %v704 = vunpack.c.h.b16 %v94
  %v705 = vunpack.c.l.b16 %v95
  %v706 = vunpack.c.h.b16 %v95
  %v707 = vunpack.c.l.b16 %v96
  %v708 = vunpack.c.h.b16 %v96
  %v709 = vunpack.c.l.b16 %v97
  %v710 = vunpack.c.h.b16 %v97
  %v711 = vunpack.c.l.b16 %v98
  %v712 = vunpack.c.h.b16 %v98
  %v713 = vunpack.c.l.b16 %v99
  %v714 = vunpack.c.h.b16 %v99
  %v715 = vunpack.c.l.b16 %v100
  %v716 = vunpack.c.h.b16 %v100
  %v717 = vunpack.c.l.b16 %v101
  %v718 = vunpack.c.h.b16 %v101
  %v719 = vunpack.c.l.b16 %v102
  %v720 = vunpack.c.h.b16 %v102
  %v721 = vunpack.c.l.b16 %v103
  %v722 = vunpack.c.h.b16 %v103
  %v723 = vpack.c.b16 %v693, %v691
  %v724 = vpack.c.b16 %v694, %v692
  %v725 = vpack.c.b16 %v697, %v695
  %v726 = vpack.c.b16 %v698, %v696
  %v727 = vpack.c.b16 %v701, %v699
  %v728 = vpack.c.b16 %v702, %v700
  %v729 = vpack.c.b16 %v705, %v703
  %v730 = vpack.c.b16 %v706, %v704
  %v731 = vpack.c.b16 %v709, %v707
  %v732 = vpack.c.b16 %v710, %v708
  %v733 = vpack.c.b16 %v713, %v711
  %v734 = vpack.c.b16 %v714, %v712
  %v735 = vpack.c.b16 %v717, %v715
  %v736 = vpack.c.b16 %v718, %v716
  %v737 = vpack.c.b16 %v721, %v719
  %v738 = vpack.c.b16 %v722, %v720
  %755 = vmatpush.bf16.msra.mxu0 %v737
  %756 = vmatpush.bf16.msra.mxu0 %v735
  %757 = vmatpush.bf16.msra.mxu0 %v733
  %758 = vmatpush.bf16.msra.mxu0 %v731
  %759 = vmatpush.bf16.msra.mxu0 %v729
  %760 = vmatpush.bf16.msra.mxu0 %v727
  %761 = vmatpush.bf16.msra.mxu0 %v725
  %762 = vmatpush.bf16.msra.mxu0 %v723
  %763 = vmatmul.bf16.gmra.mxu0 %v673
  %v764 = vpop.f32.mrf.mxu0
  %v765 = vadd.f32 %v381, %v764
  %v766 = vpop.f32.mrf.mxu0
  %v767 = vadd.f32 %v383, %v766
  %768 = vmatmul.bf16.gmra.mxu0 %v235
  %v769 = vpop.f32.mrf.mxu0
  %v770 = vadd.f32 %v386, %v769
  %v771 = vpop.f32.mrf.mxu0
  %v772 = vadd.f32 %v388, %v771
  %773 = vmatmul.bf16.gmra.mxu0 %v236
  %v774 = vpop.f32.mrf.mxu0
  %v775 = vadd.f32 %v391, %v774
  %v776 = vpop.f32.mrf.mxu0
  %v777 = vadd.f32 %v393, %v776
  %778 = vmatmul.bf16.gmra.mxu0 %v237
  %v779 = vpop.f32.mrf.mxu0
  %v780 = vadd.f32 %v396, %v779
  %v781 = vpop.f32.mrf.mxu0
  %v782 = vadd.f32 %v398, %v781
  %783 = vmatmul.bf16.gmra.mxu0 %v238
  %v784 = vpop.f32.mrf.mxu0
  %v785 = vadd.f32 %v401, %v784
  %v786 = vpop.f32.mrf.mxu0
  %v787 = vadd.f32 %v403, %v786
  %788 = vmatmul.bf16.gmra.mxu0 %v239
  %v789 = vpop.f32.mrf.mxu0
  %v790 = vadd.f32 %v406, %v789
  %v791 = vpop.f32.mrf.mxu0
  %v792 = vadd.f32 %v408, %v791
  %793 = vmatmul.bf16.gmra.mxu0 %v240
  %v794 = vpop.f32.mrf.mxu0
  %v795 = vadd.f32 %v411, %v794
  %v796 = vpop.f32.mrf.mxu0
  %v797 = vadd.f32 %v413, %v796
  %798 = vmatmul.bf16.gmra.mxu0 %v241
  %v799 = vpop.f32.mrf.mxu0
  %v800 = vadd.f32 %v416, %v799
  %v801 = vpop.f32.mrf.mxu0
  %v802 = vadd.f32 %v418, %v801
  %803 = vmatmul.bf16.gmra.mxu0 %v242
  %v804 = vpop.f32.mrf.mxu0
  %v805 = vadd.f32 %v421, %v804
  %v806 = vpop.f32.mrf.mxu0
  %v807 = vadd.f32 %v423, %v806
  %808 = vmatmul.bf16.gmra.mxu0 %v243
  %v809 = vpop.f32.mrf.mxu0
  %v810 = vadd.f32 %v426, %v809
  %v811 = vpop.f32.mrf.mxu0
  %v812 = vadd.f32 %v428, %v811
  %813 = vmatmul.bf16.gmra.mxu0 %v244
  %v814 = vpop.f32.mrf.mxu0
  %v815 = vadd.f32 %v431, %v814
  %v816 = vpop.f32.mrf.mxu0
  %v817 = vadd.f32 %v433, %v816
  %818 = vmatmul.bf16.gmra.mxu0 %v245
  %v819 = vpop.f32.mrf.mxu0
  %v820 = vadd.f32 %v436, %v819
  %v821 = vpop.f32.mrf.mxu0
  %v822 = vadd.f32 %v438, %v821
  %823 = vmatmul.bf16.gmra.mxu0 %v246
  %v824 = vpop.f32.mrf.mxu0
  %v825 = vadd.f32 %v441, %v824
  %v826 = vpop.f32.mrf.mxu0
  %v827 = vadd.f32 %v443, %v826
  %828 = vmatmul.bf16.gmra.mxu0 %v247
  %v829 = vpop.f32.mrf.mxu0
  %v830 = vadd.f32 %v446, %v829
  %v831 = vpop.f32.mrf.mxu0
  %v832 = vadd.f32 %v448, %v831
  %833 = vmatmul.bf16.gmra.mxu0 %v248
  %v834 = vpop.f32.mrf.mxu0
  %v835 = vadd.f32 %v451, %v834
  %v836 = vpop.f32.mrf.mxu0
  %v837 = vadd.f32 %v453, %v836
  %838 = vmatmul.bf16.gmra.mxu0 %v249
  %v839 = vpop.f32.mrf.mxu0
  %v840 = vadd.f32 %v456, %v839
  %v841 = vpop.f32.mrf.mxu0
  %v842 = vadd.f32 %v458, %v841
  %843 = vmatmul.bf16.gmra.mxu0 %v250
  %v844 = vpop.f32.mrf.mxu0
  %v845 = vadd.f32 %v461, %v844
  %v846 = vpop.f32.mrf.mxu0
  %v847 = vadd.f32 %v463, %v846
  %848 = vmatmul.bf16.gmra.mxu0 %v251
  %v849 = vpop.f32.mrf.mxu0
  %v850 = vadd.f32 %v466, %v849
  %v851 = vpop.f32.mrf.mxu0
  %v852 = vadd.f32 %v468, %v851
  %853 = vmatmul.bf16.gmra.mxu0 %v252
  %v854 = vpop.f32.mrf.mxu0
  %v855 = vadd.f32 %v471, %v854
  %v856 = vpop.f32.mrf.mxu0
  %v857 = vadd.f32 %v473, %v856
  %858 = vmatmul.bf16.gmra.mxu0 %v253
  %v859 = vpop.f32.mrf.mxu0
  %v860 = vadd.f32 %v476, %v859
  %v861 = vpop.f32.mrf.mxu0
  %v862 = vadd.f32 %v478, %v861
  %863 = vmatmul.bf16.gmra.mxu0 %v254
  %v864 = vpop.f32.mrf.mxu0
  %v865 = vadd.f32 %v481, %v864
  %v866 = vpop.f32.mrf.mxu0
  %v867 = vadd.f32 %v483, %v866
  %868 = vmatmul.bf16.gmra.mxu0 %v255
  %v869 = vpop.f32.mrf.mxu0
  %v870 = vadd.f32 %v486, %v869
  %v871 = vpop.f32.mrf.mxu0
  %v872 = vadd.f32 %v488, %v871
  %873 = vmatmul.bf16.gmra.mxu0 %v256
  %v874 = vpop.f32.mrf.mxu0
  %v875 = vadd.f32 %v491, %v874
  %v876 = vpop.f32.mrf.mxu0
  %v877 = vadd.f32 %v493, %v876
  %878 = vmatmul.bf16.gmra.mxu0 %v257
  %v879 = vpop.f32.mrf.mxu0
  %v880 = vadd.f32 %v496, %v879
  %v881 = vpop.f32.mrf.mxu0
  %v882 = vadd.f32 %v498, %v881
  %883 = vmatmul.bf16.gmra.mxu0 %v258
  %v884 = vpop.f32.mrf.mxu0
  %v885 = vadd.f32 %v501, %v884
  %v886 = vpop.f32.mrf.mxu0
  %v887 = vadd.f32 %v503, %v886
  %888 = vmatmul.bf16.gmra.mxu0 %v259
  %v889 = vpop.f32.mrf.mxu0
  %v890 = vadd.f32 %v506, %v889
  %v891 = vpop.f32.mrf.mxu0
  %v892 = vadd.f32 %v508, %v891
  %893 = vmatmul.bf16.gmra.mxu0 %v260
  %v894 = vpop.f32.mrf.mxu0
  %v895 = vadd.f32 %v511, %v894
  %v896 = vpop.f32.mrf.mxu0
  %v897 = vadd.f32 %v513, %v896
  %898 = vmatmul.bf16.gmra.mxu0 %v261
  %v899 = vpop.f32.mrf.mxu0
  %v900 = vadd.f32 %v516, %v899
  %v901 = vpop.f32.mrf.mxu0
  %v902 = vadd.f32 %v518, %v901
  %903 = vdwg.mxu0
  %904 = vmatpush.bf16.msra.mxu0 %v738
  %905 = vmatpush.bf16.msra.mxu0 %v736
  %906 = vmatpush.bf16.msra.mxu0 %v734
  %907 = vmatpush.bf16.msra.mxu0 %v732
  %908 = vmatpush.bf16.msra.mxu0 %v730
  %909 = vmatpush.bf16.msra.mxu0 %v728
  %910 = vmatpush.bf16.msra.mxu0 %v726
  %911 = vmatpush.bf16.msra.mxu0 %v724
  %912 = vmatmul.bf16.gmra.mxu0 %v673
  %v913 = vpop.f32.mrf.mxu0
  %v914 = vadd.f32 %v530, %v913
  %v915 = vpop.f32.mrf.mxu0
  %v916 = vadd.f32 %v532, %v915
  %917 = vmatmul.bf16.gmra.mxu0 %v235
  %v918 = vpop.f32.mrf.mxu0
  %v919 = vadd.f32 %v535, %v918
  %v920 = vpop.f32.mrf.mxu0
  %v921 = vadd.f32 %v537, %v920
  %922 = vmatmul.bf16.gmra.mxu0 %v236
  %v923 = vpop.f32.mrf.mxu0
  %v924 = vadd.f32 %v540, %v923
  %v925 = vpop.f32.mrf.mxu0
  %v926 = vadd.f32 %v542, %v925
  %927 = vmatmul.bf16.gmra.mxu0 %v237
  %v928 = vpop.f32.mrf.mxu0
  %v929 = vadd.f32 %v545, %v928
  %v930 = vpop.f32.mrf.mxu0
  %v931 = vadd.f32 %v547, %v930
  %932 = vmatmul.bf16.gmra.mxu0 %v238
  %v933 = vpop.f32.mrf.mxu0
  %v934 = vadd.f32 %v550, %v933
  %v935 = vpop.f32.mrf.mxu0
  %v936 = vadd.f32 %v552, %v935
  %937 = vmatmul.bf16.gmra.mxu0 %v239
  %v938 = vpop.f32.mrf.mxu0
  %v939 = vadd.f32 %v555, %v938
  %v940 = vpop.f32.mrf.mxu0
  %v941 = vadd.f32 %v557, %v940
  %942 = vmatmul.bf16.gmra.mxu0 %v240
  %v943 = vpop.f32.mrf.mxu0
  %v944 = vadd.f32 %v560, %v943
  %v945 = vpop.f32.mrf.mxu0
  %v946 = vadd.f32 %v562, %v945
  %947 = vmatmul.bf16.gmra.mxu0 %v241
  %v948 = vpop.f32.mrf.mxu0
  %v949 = vadd.f32 %v565, %v948
  %v950 = vpop.f32.mrf.mxu0
  %v951 = vadd.f32 %v567, %v950
  %952 = vmatmul.bf16.gmra.mxu0 %v242
  %v953 = vpop.f32.mrf.mxu0
  %v954 = vadd.f32 %v570, %v953
  %v955 = vpop.f32.mrf.mxu0
  %v956 = vadd.f32 %v572, %v955
  %957 = vmatmul.bf16.gmra.mxu0 %v243
  %v958 = vpop.f32.mrf.mxu0
  %v959 = vadd.f32 %v575, %v958
  %v960 = vpop.f32.mrf.mxu0
  %v961 = vadd.f32 %v577, %v960
  %962 = vmatmul.bf16.gmra.mxu0 %v244
  %v963 = vpop.f32.mrf.mxu0
  %v964 = vadd.f32 %v580, %v963
  %v965 = vpop.f32.mrf.mxu0
  %v966 = vadd.f32 %v582, %v965
  %967 = vmatmul.bf16.gmra.mxu0 %v245
  %v968 = vpop.f32.mrf.mxu0
  %v969 = vadd.f32 %v585, %v968
  %v970 = vpop.f32.mrf.mxu0
  %v971 = vadd.f32 %v587, %v970
  %972 = vmatmul.bf16.gmra.mxu0 %v246
  %v973 = vpop.f32.mrf.mxu0
  %v974 = vadd.f32 %v590, %v973
  %v975 = vpop.f32.mrf.mxu0
  %v976 = vadd.f32 %v592, %v975
  %977 = vmatmul.bf16.gmra.mxu0 %v247
  %v978 = vpop.f32.mrf.mxu0
  %v979 = vadd.f32 %v595, %v978
  %v980 = vpop.f32.mrf.mxu0
  %v981 = vadd.f32 %v597, %v980
  %982 = vmatmul.bf16.gmra.mxu0 %v248
  %v983 = vpop.f32.mrf.mxu0
  %v984 = vadd.f32 %v600, %v983
  %v985 = vpop.f32.mrf.mxu0
  %v986 = vadd.f32 %v602, %v985
  %987 = vmatmul.bf16.gmra.mxu0 %v249
  %v988 = vpop.f32.mrf.mxu0
  %v989 = vadd.f32 %v605, %v988
  %v990 = vpop.f32.mrf.mxu0
  %v991 = vadd.f32 %v607, %v990
  %992 = vmatmul.bf16.gmra.mxu0 %v250
  %v993 = vpop.f32.mrf.mxu0
  %v994 = vadd.f32 %v610, %v993
  %v995 = vpop.f32.mrf.mxu0
  %v996 = vadd.f32 %v612, %v995
  %997 = vmatmul.bf16.gmra.mxu0 %v251
  %v998 = vpop.f32.mrf.mxu0
  %v999 = vadd.f32 %v615, %v998
  %v1000 = vpop.f32.mrf.mxu0
  %v1001 = vadd.f32 %v617, %v1000
  %1002 = vmatmul.bf16.gmra.mxu0 %v252
  %v1003 = vpop.f32.mrf.mxu0
  %v1004 = vadd.f32 %v620, %v1003
  %v1005 = vpop.f32.mrf.mxu0
  %v1006 = vadd.f32 %v622, %v1005
  %1007 = vmatmul.bf16.gmra.mxu0 %v253
  %v1008 = vpop.f32.mrf.mxu0
  %v1009 = vadd.f32 %v625, %v1008
  %v1010 = vpop.f32.mrf.mxu0
  %v1011 = vadd.f32 %v627, %v1010
  %1012 = vmatmul.bf16.gmra.mxu0 %v254
  %v1013 = vpop.f32.mrf.mxu0
  %v1014 = vadd.f32 %v630, %v1013
  %v1015 = vpop.f32.mrf.mxu0
  %v1016 = vadd.f32 %v632, %v1015
  %1017 = vmatmul.bf16.gmra.mxu0 %v255
  %v1018 = vpop.f32.mrf.mxu0
  %v1019 = vadd.f32 %v635, %v1018
  %v1020 = vpop.f32.mrf.mxu0
  %v1021 = vadd.f32 %v637, %v1020
  %1022 = vmatmul.bf16.gmra.mxu0 %v256
  %v1023 = vpop.f32.mrf.mxu0
  %v1024 = vadd.f32 %v640, %v1023
  %v1025 = vpop.f32.mrf.mxu0
  %v1026 = vadd.f32 %v642, %v1025
  %1027 = vmatmul.bf16.gmra.mxu0 %v257
  %v1028 = vpop.f32.mrf.mxu0
  %v1029 = vadd.f32 %v645, %v1028
  %v1030 = vpop.f32.mrf.mxu0
  %v1031 = vadd.f32 %v647, %v1030
  %1032 = vmatmul.bf16.gmra.mxu0 %v258
  %v1033 = vpop.f32.mrf.mxu0
  %v1034 = vadd.f32 %v650, %v1033
  %v1035 = vpop.f32.mrf.mxu0
  %v1036 = vadd.f32 %v652, %v1035
  %1037 = vmatmul.bf16.gmra.mxu0 %v259
  %v1038 = vpop.f32.mrf.mxu0
  %v1039 = vadd.f32 %v655, %v1038
  %v1040 = vpop.f32.mrf.mxu0
  %v1041 = vadd.f32 %v657, %v1040
  %1042 = vmatmul.bf16.gmra.mxu0 %v260
  %v1043 = vpop.f32.mrf.mxu0
  %v1044 = vadd.f32 %v660, %v1043
  %v1045 = vpop.f32.mrf.mxu0
  %v1046 = vadd.f32 %v662, %v1045
  %1047 = vmatmul.bf16.gmra.mxu0 %v261
  %v1048 = vpop.f32.mrf.mxu0
  %v1049 = vadd.f32 %v665, %v1048
  %v1050 = vpop.f32.mrf.mxu0
  %v1051 = vadd.f32 %v667, %v1050
  %1052 = vdwg.mxu0
  %v1053 = vld [vmem:[%s0 + $0x10] sm:$0xf]
  %v1054 = vld [vmem:[%s0 + $0x14] sm:$0xf]
  %v1055 = vld [vmem:[%s0 + $0x18] sm:$0xf]
  %v1056 = vld [vmem:[%s0 + $0x1c] sm:$0xf]
  %v1057 = vld [vmem:[%s0 + $0x20] sm:$0xf]
  %v1058 = vld [vmem:[%s0 + $0x24] sm:$0xf]
  %v1059 = vld [vmem:[%s0 + $0x28] sm:$0xf]
  %v1060 = vld [vmem:[%s0 + $0x2c] sm:$0xf]
  %v1061 = vld [vmem:[%s0 + $0x30] sm:$0xf]
  %v1062 = vld [vmem:[%s0 + $0x34] sm:$0xf]
  %v1063 = vld [vmem:[%s0 + $0x38] sm:$0xf]
  %v1064 = vld [vmem:[%s0 + $0x3c] sm:$0xf]
  %v1065 = vld [vmem:[%s0 + $0x40] sm:$0xf]
  %v1066 = vld [vmem:[%s0 + $0x44] sm:$0xf]
  %v1067 = vld [vmem:[%s0 + $0x48] sm:$0xf]
  %v1068 = vld [vmem:[%s0 + $0x4c] sm:$0xf]
  %v1069 = vld [vmem:[%s0 + $0x50] sm:$0xf]
  %v1070 = vld [vmem:[%s0 + $0x54] sm:$0xf]
  %v1071 = vld [vmem:[%s0 + $0x58] sm:$0xf]
  %v1072 = vld [vmem:[%s0 + $0x5c] sm:$0xf]
  %v1073 = vld [vmem:[%s0 + $0x60] sm:$0xf]
  %v1074 = vld [vmem:[%s0 + $0x64] sm:$0xf]
  %v1075 = vld [vmem:[%s0 + $0x68] sm:$0xf]
  %v1076 = vld [vmem:[%s0 + $0x6c] sm:$0xf]
  %v1077 = vld [vmem:[%s0 + $0x70] sm:$0xf]
  %v1078 = vld [vmem:[%s0 + $0x74] sm:$0xf]
  %v1079 = vld [vmem:[%s0 + $0x78] sm:$0xf]
  %v1080 = vld [vmem:[%s0 + $0x7c] sm:$0xf]
  %v1081 = vld [vmem:[%s0 + $0x80] sm:$0xf]
  %v1082 = vld [vmem:[%s0 + $0x84] sm:$0xf]
  %v1083 = vld [vmem:[%s0 + $0x88] sm:$0xf]
  %v1084 = vld [vmem:[%s0 + $0x8c] sm:$0xf]
  %v1085 = vld [vmem:[%s0 + $0x90] sm:$0xf]
  %v1086 = vld [vmem:[%s0 + $0x94] sm:$0xf]
  %v1087 = vld [vmem:[%s0 + $0x98] sm:$0xf]
  %v1088 = vld [vmem:[%s0 + $0x9c] sm:$0xf]
  %v1089 = vld [vmem:[%s0 + $0xa0] sm:$0xf]
  %v1090 = vld [vmem:[%s0 + $0xa4] sm:$0xf]
  %v1091 = vld [vmem:[%s0 + $0xa8] sm:$0xf]
  %v1092 = vld [vmem:[%s0 + $0xac] sm:$0xf]
  %v1093 = vld [vmem:[%s0 + $0xb0] sm:$0xf]
  %v1094 = vld [vmem:[%s0 + $0xb4] sm:$0xf]
  %v1095 = vld [vmem:[%s0 + $0xb8] sm:$0xf]
  %v1096 = vld [vmem:[%s0 + $0xbc] sm:$0xf]
  %v1097 = vld [vmem:[%s0 + $0xc0] sm:$0xf]
  %v1098 = vld [vmem:[%s0 + $0xc4] sm:$0xf]
  %v1099 = vld [vmem:[%s0 + $0xc8] sm:$0xf]
  %v1100 = vld [vmem:[%s0 + $0xcc] sm:$0xf]
  %v1101 = vld [vmem:[%s0 + $0xd0] sm:$0xf]
  %v1102 = vld [vmem:[%s0 + $0xd4] sm:$0xf]
  %v1103 = vld [vmem:[%s0 + $0xd8] sm:$0xf]
  %v1104 = vld [vmem:[%s0 + $0xdc] sm:$0xf]
  %v1105 = vld [vmem:[%s0 + $0xe0] sm:$0xf]
  %v1106 = vld [vmem:[%s0 + $0xe4] sm:$0xf]
  %v1107 = vld [vmem:[%s0 + $0xe8] sm:$0xf]
  %v1108 = vld [vmem:[%s0 + $0xec] sm:$0xf]
  %s1109 = scalar_lea.vmem %s1, 256
  %v1110 = vld [vmem:[%s1109] sm:$0xff]
  %v1111 = vld [vmem:[%s1109 + $0x8] sm:$0xff]
  %v1112 = vld [vmem:[%s1109 + $0x10] sm:$0xff]
  %v1113 = vld [vmem:[%s1109 + $0x18] sm:$0xff]
  %v1114 = vld [vmem:[%s1109 + $0x20] sm:$0xff]
  %v1115 = vld [vmem:[%s1109 + $0x28] sm:$0xff]
  %v1116 = vld [vmem:[%s1109 + $0x30] sm:$0xff]
  %v1117 = vld [vmem:[%s1109 + $0x38] sm:$0xff]
  %v1118 = vld [vmem:[%s1109 + $0x40] sm:$0xff]
  %v1119 = vld [vmem:[%s1109 + $0x48] sm:$0xff]
  %v1120 = vld [vmem:[%s1109 + $0x50] sm:$0xff]
  %v1121 = vld [vmem:[%s1109 + $0x58] sm:$0xff]
  %v1122 = vld [vmem:[%s1109 + $0x60] sm:$0xff]
  %v1123 = vld [vmem:[%s1109 + $0x68] sm:$0xff]
  %v1124 = vld [vmem:[%s1109 + $0x70] sm:$0xff]
  %v1125 = vld [vmem:[%s1109 + $0x78] sm:$0xff]
  %v1182 = vunpack.c.l.b16 %v1053
  %v1183 = vunpack.c.l.b16 %v1054
  %v1184 = vunpack.c.l.b16 %v1055
  %v1185 = vunpack.c.l.b16 %v1056
  %v1186 = vunpack.c.l.b16 %v1057
  %v1187 = vunpack.c.l.b16 %v1058
  %v1188 = vunpack.c.l.b16 %v1059
  %v1189 = vunpack.c.l.b16 %v1060
  %v1190 = vunpack.c.l.b16 %v1061
  %v1191 = vunpack.c.l.b16 %v1062
  %v1192 = vunpack.c.l.b16 %v1063
  %v1193 = vunpack.c.l.b16 %v1064
  %v1194 = vunpack.c.l.b16 %v1065
  %v1195 = vunpack.c.l.b16 %v1066
  %v1196 = vunpack.c.l.b16 %v1067
  %v1197 = vunpack.c.l.b16 %v1068
  %v1198 = vunpack.c.l.b16 %v1069
  %v1199 = vunpack.c.l.b16 %v1070
  %v1200 = vunpack.c.l.b16 %v1071
  %v1201 = vunpack.c.l.b16 %v1072
  %v1202 = vunpack.c.l.b16 %v1073
  %v1203 = vunpack.c.l.b16 %v1074
  %v1204 = vunpack.c.l.b16 %v1075
  %v1205 = vunpack.c.l.b16 %v1076
  %v1206 = vunpack.c.l.b16 %v1077
  %v1207 = vunpack.c.l.b16 %v1078
  %v1208 = vunpack.c.l.b16 %v1079
  %v1209 = vunpack.c.l.b16 %v1080
  %v1210 = vunpack.c.l.b16 %v1081
  %v1211 = vunpack.c.l.b16 %v1082
  %v1212 = vunpack.c.l.b16 %v1083
  %v1213 = vunpack.c.l.b16 %v1084
  %v1214 = vunpack.c.l.b16 %v1085
  %v1215 = vunpack.c.l.b16 %v1086
  %v1216 = vunpack.c.l.b16 %v1087
  %v1217 = vunpack.c.l.b16 %v1088
  %v1218 = vunpack.c.l.b16 %v1089
  %v1219 = vunpack.c.l.b16 %v1090
  %v1220 = vunpack.c.l.b16 %v1091
  %v1221 = vunpack.c.l.b16 %v1092
  %v1222 = vunpack.c.l.b16 %v1093
  %v1223 = vunpack.c.l.b16 %v1094
  %v1224 = vunpack.c.l.b16 %v1095
  %v1225 = vunpack.c.l.b16 %v1096
  %v1226 = vunpack.c.l.b16 %v1097
  %v1227 = vunpack.c.l.b16 %v1098
  %v1228 = vunpack.c.l.b16 %v1099
  %v1229 = vunpack.c.l.b16 %v1100
  %v1230 = vunpack.c.l.b16 %v1101
  %v1231 = vunpack.c.l.b16 %v1102
  %v1232 = vunpack.c.l.b16 %v1103
  %v1233 = vunpack.c.l.b16 %v1104
  %v1234 = vunpack.c.l.b16 %v1105
  %v1235 = vunpack.c.l.b16 %v1106
  %v1236 = vunpack.c.l.b16 %v1107
  %v1237 = vunpack.c.l.b16 %v1108
  %v1238 = vpack.c.b16 %v1183, %v1182
  %v1239 = vpack.c.b16 %v1185, %v1184
  %v1240 = vpack.c.b16 %v1187, %v1186
  %v1241 = vpack.c.b16 %v1189, %v1188
  %v1242 = vpack.c.b16 %v1191, %v1190
  %v1243 = vpack.c.b16 %v1193, %v1192
  %v1244 = vpack.c.b16 %v1195, %v1194
  %v1245 = vpack.c.b16 %v1197, %v1196
  %v1246 = vpack.c.b16 %v1199, %v1198
  %v1247 = vpack.c.b16 %v1201, %v1200
  %v1248 = vpack.c.b16 %v1203, %v1202
  %v1249 = vpack.c.b16 %v1205, %v1204
  %v1250 = vpack.c.b16 %v1207, %v1206
  %v1251 = vpack.c.b16 %v1209, %v1208
  %v1252 = vpack.c.b16 %v1211, %v1210
  %v1253 = vpack.c.b16 %v1213, %v1212
  %v1254 = vpack.c.b16 %v1215, %v1214
  %v1255 = vpack.c.b16 %v1217, %v1216
  %v1256 = vpack.c.b16 %v1219, %v1218
  %v1257 = vpack.c.b16 %v1221, %v1220
  %v1258 = vpack.c.b16 %v1223, %v1222
  %v1259 = vpack.c.b16 %v1225, %v1224
  %v1260 = vpack.c.b16 %v1227, %v1226
  %v1261 = vpack.c.b16 %v1229, %v1228
  %v1262 = vpack.c.b16 %v1231, %v1230
  %v1263 = vpack.c.b16 %v1233, %v1232
  %v1264 = vpack.c.b16 %v1235, %v1234
  %v1265 = vpack.c.b16 %v1237, %v1236
  %v1310 = vunpack.c.l.b16 %v1110
  %v1311 = vunpack.c.h.b16 %v1110
  %v1312 = vunpack.c.l.b16 %v1111
  %v1313 = vunpack.c.h.b16 %v1111
  %v1314 = vunpack.c.l.b16 %v1112
  %v1315 = vunpack.c.h.b16 %v1112
  %v1316 = vunpack.c.l.b16 %v1113
  %v1317 = vunpack.c.h.b16 %v1113
  %v1318 = vunpack.c.l.b16 %v1114
  %v1319 = vunpack.c.h.b16 %v1114
  %v1320 = vunpack.c.l.b16 %v1115
  %v1321 = vunpack.c.h.b16 %v1115
  %v1322 = vunpack.c.l.b16 %v1116
  %v1323 = vunpack.c.h.b16 %v1116
  %v1324 = vunpack.c.l.b16 %v1117
  %v1325 = vunpack.c.h.b16 %v1117
  %v1326 = vunpack.c.l.b16 %v1118
  %v1327 = vunpack.c.h.b16 %v1118
  %v1328 = vunpack.c.l.b16 %v1119
  %v1329 = vunpack.c.h.b16 %v1119
  %v1330 = vunpack.c.l.b16 %v1120
  %v1331 = vunpack.c.h.b16 %v1120
  %v1332 = vunpack.c.l.b16 %v1121
  %v1333 = vunpack.c.h.b16 %v1121
  %v1334 = vunpack.c.l.b16 %v1122
  %v1335 = vunpack.c.h.b16 %v1122
  %v1336 = vunpack.c.l.b16 %v1123
  %v1337 = vunpack.c.h.b16 %v1123
  %v1338 = vunpack.c.l.b16 %v1124
  %v1339 = vunpack.c.h.b16 %v1124
  %v1340 = vunpack.c.l.b16 %v1125
  %v1341 = vunpack.c.h.b16 %v1125
  %v1342 = vpack.c.b16 %v1312, %v1310
  %v1343 = vpack.c.b16 %v1313, %v1311
  %v1344 = vpack.c.b16 %v1316, %v1314
  %v1345 = vpack.c.b16 %v1317, %v1315
  %v1346 = vpack.c.b16 %v1320, %v1318
  %v1347 = vpack.c.b16 %v1321, %v1319
  %v1348 = vpack.c.b16 %v1324, %v1322
  %v1349 = vpack.c.b16 %v1325, %v1323
  %v1350 = vpack.c.b16 %v1328, %v1326
  %v1351 = vpack.c.b16 %v1329, %v1327
  %v1352 = vpack.c.b16 %v1332, %v1330
  %v1353 = vpack.c.b16 %v1333, %v1331
  %v1354 = vpack.c.b16 %v1336, %v1334
  %v1355 = vpack.c.b16 %v1337, %v1335
  %v1356 = vpack.c.b16 %v1340, %v1338
  %v1357 = vpack.c.b16 %v1341, %v1339
  %1374 = vmatpush.bf16.msra.mxu0 %v1356
  %1375 = vmatpush.bf16.msra.mxu0 %v1354
  %1376 = vmatpush.bf16.msra.mxu0 %v1352
  %1377 = vmatpush.bf16.msra.mxu0 %v1350
  %1378 = vmatpush.bf16.msra.mxu0 %v1348
  %1379 = vmatpush.bf16.msra.mxu0 %v1346
  %1380 = vmatpush.bf16.msra.mxu0 %v1344
  %1381 = vmatpush.bf16.msra.mxu0 %v1342
  %1382 = vmatmul.bf16.gmra.mxu0 %v1238
  %v1383 = vpop.f32.mrf.mxu0
  %v1384 = vadd.f32 0.0, %v1383
  %v1385 = vpop.f32.mrf.mxu0
  %v1386 = vadd.f32 0.0, %v1385
  %1387 = vmatmul.bf16.gmra.mxu0 %v1239
  %v1388 = vpop.f32.mrf.mxu0
  %v1389 = vadd.f32 0.0, %v1388
  %v1390 = vpop.f32.mrf.mxu0
  %v1391 = vadd.f32 0.0, %v1390
  %1392 = vmatmul.bf16.gmra.mxu0 %v1240
  %v1393 = vpop.f32.mrf.mxu0
  %v1394 = vadd.f32 0.0, %v1393
  %v1395 = vpop.f32.mrf.mxu0
  %v1396 = vadd.f32 0.0, %v1395
  %1397 = vmatmul.bf16.gmra.mxu0 %v1241
  %v1398 = vpop.f32.mrf.mxu0
  %v1399 = vadd.f32 0.0, %v1398
  %v1400 = vpop.f32.mrf.mxu0
  %v1401 = vadd.f32 0.0, %v1400
  %1402 = vmatmul.bf16.gmra.mxu0 %v1242
  %v1403 = vpop.f32.mrf.mxu0
  %v1404 = vadd.f32 0.0, %v1403
  %v1405 = vpop.f32.mrf.mxu0
  %v1406 = vadd.f32 0.0, %v1405
  %1407 = vmatmul.bf16.gmra.mxu0 %v1243
  %v1408 = vpop.f32.mrf.mxu0
  %v1409 = vadd.f32 0.0, %v1408
  %v1410 = vpop.f32.mrf.mxu0
  %v1411 = vadd.f32 0.0, %v1410
  %1412 = vmatmul.bf16.gmra.mxu0 %v1244
  %v1413 = vpop.f32.mrf.mxu0
  %v1414 = vadd.f32 0.0, %v1413
  %v1415 = vpop.f32.mrf.mxu0
  %v1416 = vadd.f32 0.0, %v1415
  %1417 = vmatmul.bf16.gmra.mxu0 %v1245
  %v1418 = vpop.f32.mrf.mxu0
  %v1419 = vadd.f32 0.0, %v1418
  %v1420 = vpop.f32.mrf.mxu0
  %v1421 = vadd.f32 0.0, %v1420
  %1422 = vmatmul.bf16.gmra.mxu0 %v1246
  %v1423 = vpop.f32.mrf.mxu0
  %v1424 = vadd.f32 0.0, %v1423
  %v1425 = vpop.f32.mrf.mxu0
  %v1426 = vadd.f32 0.0, %v1425
  %1427 = vmatmul.bf16.gmra.mxu0 %v1247
  %v1428 = vpop.f32.mrf.mxu0
  %v1429 = vadd.f32 0.0, %v1428
  %v1430 = vpop.f32.mrf.mxu0
  %v1431 = vadd.f32 0.0, %v1430
  %1432 = vmatmul.bf16.gmra.mxu0 %v1248
  %v1433 = vpop.f32.mrf.mxu0
  %v1434 = vadd.f32 0.0, %v1433
  %v1435 = vpop.f32.mrf.mxu0
  %v1436 = vadd.f32 0.0, %v1435
  %1437 = vmatmul.bf16.gmra.mxu0 %v1249
  %v1438 = vpop.f32.mrf.mxu0
  %v1439 = vadd.f32 0.0, %v1438
  %v1440 = vpop.f32.mrf.mxu0
  %v1441 = vadd.f32 0.0, %v1440
  %1442 = vmatmul.bf16.gmra.mxu0 %v1250
  %v1443 = vpop.f32.mrf.mxu0
  %v1444 = vadd.f32 0.0, %v1443
  %v1445 = vpop.f32.mrf.mxu0
  %v1446 = vadd.f32 0.0, %v1445
  %1447 = vmatmul.bf16.gmra.mxu0 %v1251
  %v1448 = vpop.f32.mrf.mxu0
  %v1449 = vadd.f32 0.0, %v1448
  %v1450 = vpop.f32.mrf.mxu0
  %v1451 = vadd.f32 0.0, %v1450
  %1452 = vmatmul.bf16.gmra.mxu0 %v1252
  %v1453 = vpop.f32.mrf.mxu0
  %v1454 = vadd.f32 0.0, %v1453
  %v1455 = vpop.f32.mrf.mxu0
  %v1456 = vadd.f32 0.0, %v1455
  %1457 = vmatmul.bf16.gmra.mxu0 %v1253
  %v1458 = vpop.f32.mrf.mxu0
  %v1459 = vadd.f32 0.0, %v1458
  %v1460 = vpop.f32.mrf.mxu0
  %v1461 = vadd.f32 0.0, %v1460
  %1462 = vmatmul.bf16.gmra.mxu0 %v1254
  %v1463 = vpop.f32.mrf.mxu0
  %v1464 = vadd.f32 0.0, %v1463
  %v1465 = vpop.f32.mrf.mxu0
  %v1466 = vadd.f32 0.0, %v1465
  %1467 = vmatmul.bf16.gmra.mxu0 %v1255
  %v1468 = vpop.f32.mrf.mxu0
  %v1469 = vadd.f32 0.0, %v1468
  %v1470 = vpop.f32.mrf.mxu0
  %v1471 = vadd.f32 0.0, %v1470
  %1472 = vmatmul.bf16.gmra.mxu0 %v1256
  %v1473 = vpop.f32.mrf.mxu0
  %v1474 = vadd.f32 0.0, %v1473
  %v1475 = vpop.f32.mrf.mxu0
  %v1476 = vadd.f32 0.0, %v1475
  %1477 = vmatmul.bf16.gmra.mxu0 %v1257
  %v1478 = vpop.f32.mrf.mxu0
  %v1479 = vadd.f32 0.0, %v1478
  %v1480 = vpop.f32.mrf.mxu0
  %v1481 = vadd.f32 0.0, %v1480
  %1482 = vmatmul.bf16.gmra.mxu0 %v1258
  %v1483 = vpop.f32.mrf.mxu0
  %v1484 = vadd.f32 0.0, %v1483
  %v1485 = vpop.f32.mrf.mxu0
  %v1486 = vadd.f32 0.0, %v1485
  %1487 = vmatmul.bf16.gmra.mxu0 %v1259
  %v1488 = vpop.f32.mrf.mxu0
  %v1489 = vadd.f32 0.0, %v1488
  %v1490 = vpop.f32.mrf.mxu0
  %v1491 = vadd.f32 0.0, %v1490
  %1492 = vmatmul.bf16.gmra.mxu0 %v1260
  %v1493 = vpop.f32.mrf.mxu0
  %v1494 = vadd.f32 0.0, %v1493
  %v1495 = vpop.f32.mrf.mxu0
  %v1496 = vadd.f32 0.0, %v1495
  %1497 = vmatmul.bf16.gmra.mxu0 %v1261
  %v1498 = vpop.f32.mrf.mxu0
  %v1499 = vadd.f32 0.0, %v1498
  %v1500 = vpop.f32.mrf.mxu0
  %v1501 = vadd.f32 0.0, %v1500
  %1502 = vmatmul.bf16.gmra.mxu0 %v1262
  %v1503 = vpop.f32.mrf.mxu0
  %v1504 = vadd.f32 0.0, %v1503
  %v1505 = vpop.f32.mrf.mxu0
  %v1506 = vadd.f32 0.0, %v1505
  %1507 = vmatmul.bf16.gmra.mxu0 %v1263
  %v1508 = vpop.f32.mrf.mxu0
  %v1509 = vadd.f32 0.0, %v1508
  %v1510 = vpop.f32.mrf.mxu0
  %v1511 = vadd.f32 0.0, %v1510
  %1512 = vmatmul.bf16.gmra.mxu0 %v1264
  %v1513 = vpop.f32.mrf.mxu0
  %v1514 = vadd.f32 0.0, %v1513
  %v1515 = vpop.f32.mrf.mxu0
  %v1516 = vadd.f32 0.0, %v1515
  %1517 = vmatmul.bf16.gmra.mxu0 %v1265
  %v1518 = vpop.f32.mrf.mxu0
  %v1519 = vadd.f32 0.0, %v1518
  %v1520 = vpop.f32.mrf.mxu0
  %v1521 = vadd.f32 0.0, %v1520
  %1522 = vdwg.mxu0
  %1523 = vmatpush.bf16.msra.mxu0 %v1357
  %1524 = vmatpush.bf16.msra.mxu0 %v1355
  %1525 = vmatpush.bf16.msra.mxu0 %v1353
  %1526 = vmatpush.bf16.msra.mxu0 %v1351
  %1527 = vmatpush.bf16.msra.mxu0 %v1349
  %1528 = vmatpush.bf16.msra.mxu0 %v1347
  %1529 = vmatpush.bf16.msra.mxu0 %v1345
  %1530 = vmatpush.bf16.msra.mxu0 %v1343
  %1531 = vmatmul.bf16.gmra.mxu0 %v1238
  %v1532 = vpop.f32.mrf.mxu0
  %v1533 = vadd.f32 0.0, %v1532
  %v1534 = vpop.f32.mrf.mxu0
  %v1535 = vadd.f32 0.0, %v1534
  %1536 = vmatmul.bf16.gmra.mxu0 %v1239
  %v1537 = vpop.f32.mrf.mxu0
  %v1538 = vadd.f32 0.0, %v1537
  %v1539 = vpop.f32.mrf.mxu0
  %v1540 = vadd.f32 0.0, %v1539
  %1541 = vmatmul.bf16.gmra.mxu0 %v1240
  %v1542 = vpop.f32.mrf.mxu0
  %v1543 = vadd.f32 0.0, %v1542
  %v1544 = vpop.f32.mrf.mxu0
  %v1545 = vadd.f32 0.0, %v1544
  %1546 = vmatmul.bf16.gmra.mxu0 %v1241
  %v1547 = vpop.f32.mrf.mxu0
  %v1548 = vadd.f32 0.0, %v1547
  %v1549 = vpop.f32.mrf.mxu0
  %v1550 = vadd.f32 0.0, %v1549
  %1551 = vmatmul.bf16.gmra.mxu0 %v1242
  %v1552 = vpop.f32.mrf.mxu0
  %v1553 = vadd.f32 0.0, %v1552
  %v1554 = vpop.f32.mrf.mxu0
  %v1555 = vadd.f32 0.0, %v1554
  %1556 = vmatmul.bf16.gmra.mxu0 %v1243
  %v1557 = vpop.f32.mrf.mxu0
  %v1558 = vadd.f32 0.0, %v1557
  %v1559 = vpop.f32.mrf.mxu0
  %v1560 = vadd.f32 0.0, %v1559
  %1561 = vmatmul.bf16.gmra.mxu0 %v1244
  %v1562 = vpop.f32.mrf.mxu0
  %v1563 = vadd.f32 0.0, %v1562
  %v1564 = vpop.f32.mrf.mxu0
  %v1565 = vadd.f32 0.0, %v1564
  %1566 = vmatmul.bf16.gmra.mxu0 %v1245
  %v1567 = vpop.f32.mrf.mxu0
  %v1568 = vadd.f32 0.0, %v1567
  %v1569 = vpop.f32.mrf.mxu0
  %v1570 = vadd.f32 0.0, %v1569
  %1571 = vmatmul.bf16.gmra.mxu0 %v1246
  %v1572 = vpop.f32.mrf.mxu0
  %v1573 = vadd.f32 0.0, %v1572
  %v1574 = vpop.f32.mrf.mxu0
  %v1575 = vadd.f32 0.0, %v1574
  %1576 = vmatmul.bf16.gmra.mxu0 %v1247
  %v1577 = vpop.f32.mrf.mxu0
  %v1578 = vadd.f32 0.0, %v1577
  %v1579 = vpop.f32.mrf.mxu0
  %v1580 = vadd.f32 0.0, %v1579
  %1581 = vmatmul.bf16.gmra.mxu0 %v1248
  %v1582 = vpop.f32.mrf.mxu0
  %v1583 = vadd.f32 0.0, %v1582
  %v1584 = vpop.f32.mrf.mxu0
  %v1585 = vadd.f32 0.0, %v1584
  %1586 = vmatmul.bf16.gmra.mxu0 %v1249
  %v1587 = vpop.f32.mrf.mxu0
  %v1588 = vadd.f32 0.0, %v1587
  %v1589 = vpop.f32.mrf.mxu0
  %v1590 = vadd.f32 0.0, %v1589
  %1591 = vmatmul.bf16.gmra.mxu0 %v1250
  %v1592 = vpop.f32.mrf.mxu0
  %v1593 = vadd.f32 0.0, %v1592
  %v1594 = vpop.f32.mrf.mxu0
  %v1595 = vadd.f32 0.0, %v1594
  %1596 = vmatmul.bf16.gmra.mxu0 %v1251
  %v1597 = vpop.f32.mrf.mxu0
  %v1598 = vadd.f32 0.0, %v1597
  %v1599 = vpop.f32.mrf.mxu0
  %v1600 = vadd.f32 0.0, %v1599
  %1601 = vmatmul.bf16.gmra.mxu0 %v1252
  %v1602 = vpop.f32.mrf.mxu0
  %v1603 = vadd.f32 0.0, %v1602
  %v1604 = vpop.f32.mrf.mxu0
  %v1605 = vadd.f32 0.0, %v1604
  %1606 = vmatmul.bf16.gmra.mxu0 %v1253
  %v1607 = vpop.f32.mrf.mxu0
  %v1608 = vadd.f32 0.0, %v1607
  %v1609 = vpop.f32.mrf.mxu0
  %v1610 = vadd.f32 0.0, %v1609
  %1611 = vmatmul.bf16.gmra.mxu0 %v1254
  %v1612 = vpop.f32.mrf.mxu0
  %v1613 = vadd.f32 0.0, %v1612
  %v1614 = vpop.f32.mrf.mxu0
  %v1615 = vadd.f32 0.0, %v1614
  %1616 = vmatmul.bf16.gmra.mxu0 %v1255
  %v1617 = vpop.f32.mrf.mxu0
  %v1618 = vadd.f32 0.0, %v1617
  %v1619 = vpop.f32.mrf.mxu0
  %v1620 = vadd.f32 0.0, %v1619
  %1621 = vmatmul.bf16.gmra.mxu0 %v1256
  %v1622 = vpop.f32.mrf.mxu0
  %v1623 = vadd.f32 0.0, %v1622
  %v1624 = vpop.f32.mrf.mxu0
  %v1625 = vadd.f32 0.0, %v1624
  %1626 = vmatmul.bf16.gmra.mxu0 %v1257
  %v1627 = vpop.f32.mrf.mxu0
  %v1628 = vadd.f32 0.0, %v1627
  %v1629 = vpop.f32.mrf.mxu0
  %v1630 = vadd.f32 0.0, %v1629
  %1631 = vmatmul.bf16.gmra.mxu0 %v1258
  %v1632 = vpop.f32.mrf.mxu0
  %v1633 = vadd.f32 0.0, %v1632
  %v1634 = vpop.f32.mrf.mxu0
  %v1635 = vadd.f32 0.0, %v1634
  %1636 = vmatmul.bf16.gmra.mxu0 %v1259
  %v1637 = vpop.f32.mrf.mxu0
  %v1638 = vadd.f32 0.0, %v1637
  %v1639 = vpop.f32.mrf.mxu0
  %v1640 = vadd.f32 0.0, %v1639
  %1641 = vmatmul.bf16.gmra.mxu0 %v1260
  %v1642 = vpop.f32.mrf.mxu0
  %v1643 = vadd.f32 0.0, %v1642
  %v1644 = vpop.f32.mrf.mxu0
  %v1645 = vadd.f32 0.0, %v1644
  %1646 = vmatmul.bf16.gmra.mxu0 %v1261
  %v1647 = vpop.f32.mrf.mxu0
  %v1648 = vadd.f32 0.0, %v1647
  %v1649 = vpop.f32.mrf.mxu0
  %v1650 = vadd.f32 0.0, %v1649
  %1651 = vmatmul.bf16.gmra.mxu0 %v1262
  %v1652 = vpop.f32.mrf.mxu0
  %v1653 = vadd.f32 0.0, %v1652
  %v1654 = vpop.f32.mrf.mxu0
  %v1655 = vadd.f32 0.0, %v1654
  %1656 = vmatmul.bf16.gmra.mxu0 %v1263
  %v1657 = vpop.f32.mrf.mxu0
  %v1658 = vadd.f32 0.0, %v1657
  %v1659 = vpop.f32.mrf.mxu0
  %v1660 = vadd.f32 0.0, %v1659
  %1661 = vmatmul.bf16.gmra.mxu0 %v1264
  %v1662 = vpop.f32.mrf.mxu0
  %v1663 = vadd.f32 0.0, %v1662
  %v1664 = vpop.f32.mrf.mxu0
  %v1665 = vadd.f32 0.0, %v1664
  %1666 = vmatmul.bf16.gmra.mxu0 %v1265
  %v1667 = vpop.f32.mrf.mxu0
  %v1668 = vadd.f32 0.0, %v1667
  %v1669 = vpop.f32.mrf.mxu0
  %v1670 = vadd.f32 0.0, %v1669
  %1671 = vdwg.mxu0
  %v1672 = vadd.f32 %v765, %v1384
  %v1673 = vadd.f32 %v914, %v1533
  %v1674 = vadd.f32 %v767, %v1386
  %v1675 = vadd.f32 %v916, %v1535
  %v1676 = vadd.f32 %v770, %v1389
  %v1677 = vadd.f32 %v919, %v1538
  %v1678 = vadd.f32 %v772, %v1391
  %v1679 = vadd.f32 %v921, %v1540
  %v1680 = vadd.f32 %v775, %v1394
  %v1681 = vadd.f32 %v924, %v1543
  %v1682 = vadd.f32 %v777, %v1396
  %v1683 = vadd.f32 %v926, %v1545
  %v1684 = vadd.f32 %v780, %v1399
  %v1685 = vadd.f32 %v929, %v1548
  %v1686 = vadd.f32 %v782, %v1401
  %v1687 = vadd.f32 %v931, %v1550
  %v1688 = vadd.f32 %v785, %v1404
  %v1689 = vadd.f32 %v934, %v1553
  %v1690 = vadd.f32 %v787, %v1406
  %v1691 = vadd.f32 %v936, %v1555
  %v1692 = vadd.f32 %v790, %v1409
  %v1693 = vadd.f32 %v939, %v1558
  %v1694 = vadd.f32 %v792, %v1411
  %v1695 = vadd.f32 %v941, %v1560
  %v1696 = vadd.f32 %v795, %v1414
  %v1697 = vadd.f32 %v944, %v1563
  %v1698 = vadd.f32 %v797, %v1416
  %v1699 = vadd.f32 %v946, %v1565
  %v1700 = vadd.f32 %v800, %v1419
  %v1701 = vadd.f32 %v949, %v1568
  %v1702 = vadd.f32 %v802, %v1421
  %v1703 = vadd.f32 %v951, %v1570
  %v1704 = vadd.f32 %v805, %v1424
  %v1705 = vadd.f32 %v954, %v1573
  %v1706 = vadd.f32 %v807, %v1426
  %v1707 = vadd.f32 %v956, %v1575
  %v1708 = vadd.f32 %v810, %v1429
  %v1709 = vadd.f32 %v959, %v1578
  %v1710 = vadd.f32 %v812, %v1431
  %v1711 = vadd.f32 %v961, %v1580
  %v1712 = vadd.f32 %v815, %v1434
  %v1713 = vadd.f32 %v964, %v1583
  %v1714 = vadd.f32 %v817, %v1436
  %v1715 = vadd.f32 %v966, %v1585
  %v1716 = vadd.f32 %v820, %v1439
  %v1717 = vadd.f32 %v969, %v1588
  %v1718 = vadd.f32 %v822, %v1441
  %v1719 = vadd.f32 %v971, %v1590
  %v1720 = vadd.f32 %v825, %v1444
  %v1721 = vadd.f32 %v974, %v1593
  %v1722 = vadd.f32 %v827, %v1446
  %v1723 = vadd.f32 %v976, %v1595
  %v1724 = vadd.f32 %v830, %v1449
  %v1725 = vadd.f32 %v979, %v1598
  %v1726 = vadd.f32 %v832, %v1451
  %v1727 = vadd.f32 %v981, %v1600
  %v1728 = vadd.f32 %v835, %v1454
  %v1729 = vadd.f32 %v984, %v1603
  %v1730 = vadd.f32 %v837, %v1456
  %v1731 = vadd.f32 %v986, %v1605
  %v1732 = vadd.f32 %v840, %v1459
  %v1733 = vadd.f32 %v989, %v1608
  %v1734 = vadd.f32 %v842, %v1461
  %v1735 = vadd.f32 %v991, %v1610
  %v1736 = vadd.f32 %v845, %v1464
  %v1737 = vadd.f32 %v994, %v1613
  %v1738 = vadd.f32 %v847, %v1466
  %v1739 = vadd.f32 %v996, %v1615
  %v1740 = vadd.f32 %v850, %v1469
  %v1741 = vadd.f32 %v999, %v1618
  %v1742 = vadd.f32 %v852, %v1471
  %v1743 = vadd.f32 %v1001, %v1620
  %v1744 = vadd.f32 %v855, %v1474
  %v1745 = vadd.f32 %v1004, %v1623
  %v1746 = vadd.f32 %v857, %v1476
  %v1747 = vadd.f32 %v1006, %v1625
  %v1748 = vadd.f32 %v860, %v1479
  %v1749 = vadd.f32 %v1009, %v1628
  %v1750 = vadd.f32 %v862, %v1481
  %v1751 = vadd.f32 %v1011, %v1630
  %v1752 = vadd.f32 %v865, %v1484
  %v1753 = vadd.f32 %v1014, %v1633
  %v1754 = vadd.f32 %v867, %v1486
  %v1755 = vadd.f32 %v1016, %v1635
  %v1756 = vadd.f32 %v870, %v1489
  %v1757 = vadd.f32 %v1019, %v1638
  %v1758 = vadd.f32 %v872, %v1491
  %v1759 = vadd.f32 %v1021, %v1640
  %v1760 = vadd.f32 %v875, %v1494
  %v1761 = vadd.f32 %v1024, %v1643
  %v1762 = vadd.f32 %v877, %v1496
  %v1763 = vadd.f32 %v1026, %v1645
  %v1764 = vadd.f32 %v880, %v1499
  %v1765 = vadd.f32 %v1029, %v1648
  %v1766 = vadd.f32 %v882, %v1501
  %v1767 = vadd.f32 %v1031, %v1650
  %v1768 = vadd.f32 %v885, %v1504
  %v1769 = vadd.f32 %v1034, %v1653
  %v1770 = vadd.f32 %v887, %v1506
  %v1771 = vadd.f32 %v1036, %v1655
  %v1772 = vadd.f32 %v890, %v1509
  %v1773 = vadd.f32 %v1039, %v1658
  %v1774 = vadd.f32 %v892, %v1511
  %v1775 = vadd.f32 %v1041, %v1660
  %v1776 = vadd.f32 %v895, %v1514
  %v1777 = vadd.f32 %v1044, %v1663
  %v1778 = vadd.f32 %v897, %v1516
  %v1779 = vadd.f32 %v1046, %v1665
  %v1780 = vadd.f32 %v900, %v1519
  %v1781 = vadd.f32 %v1049, %v1668
  %v1782 = vadd.f32 %v902, %v1521
  %v1783 = vadd.f32 %v1051, %v1670
  %v1784 = vld [vmem:[%s0 + $0x18] sm:$0xf]
  %v1785 = vld [vmem:[%s0 + $0x1c] sm:$0xf]
  %v1786 = vld [vmem:[%s0 + $0x20] sm:$0xf]
  %v1787 = vld [vmem:[%s0 + $0x24] sm:$0xf]
  %v1788 = vld [vmem:[%s0 + $0x28] sm:$0xf]
  %v1789 = vld [vmem:[%s0 + $0x2c] sm:$0xf]
  %v1790 = vld [vmem:[%s0 + $0x30] sm:$0xf]
  %v1791 = vld [vmem:[%s0 + $0x34] sm:$0xf]
  %v1792 = vld [vmem:[%s0 + $0x38] sm:$0xf]
  %v1793 = vld [vmem:[%s0 + $0x3c] sm:$0xf]
  %v1794 = vld [vmem:[%s0 + $0x40] sm:$0xf]
  %v1795 = vld [vmem:[%s0 + $0x44] sm:$0xf]
  %v1796 = vld [vmem:[%s0 + $0x48] sm:$0xf]
  %v1797 = vld [vmem:[%s0 + $0x4c] sm:$0xf]
  %v1798 = vld [vmem:[%s0 + $0x50] sm:$0xf]
  %v1799 = vld [vmem:[%s0 + $0x54] sm:$0xf]
  %v1800 = vld [vmem:[%s0 + $0x58] sm:$0xf]
  %v1801 = vld [vmem:[%s0 + $0x5c] sm:$0xf]
  %v1802 = vld [vmem:[%s0 + $0x60] sm:$0xf]
  %v1803 = vld [vmem:[%s0 + $0x64] sm:$0xf]
  %v1804 = vld [vmem:[%s0 + $0x68] sm:$0xf]
  %v1805 = vld [vmem:[%s0 + $0x6c] sm:$0xf]
  %v1806 = vld [vmem:[%s0 + $0x70] sm:$0xf]
  %v1807 = vld [vmem:[%s0 + $0x74] sm:$0xf]
  %v1808 = vld [vmem:[%s0 + $0x78] sm:$0xf]
  %v1809 = vld [vmem:[%s0 + $0x7c] sm:$0xf]
  %v1810 = vld [vmem:[%s0 + $0x80] sm:$0xf]
  %v1811 = vld [vmem:[%s0 + $0x84] sm:$0xf]
  %v1812 = vld [vmem:[%s0 + $0x88] sm:$0xf]
  %v1813 = vld [vmem:[%s0 + $0x8c] sm:$0xf]
  %v1814 = vld [vmem:[%s0 + $0x90] sm:$0xf]
  %v1815 = vld [vmem:[%s0 + $0x94] sm:$0xf]
  %v1816 = vld [vmem:[%s0 + $0x98] sm:$0xf]
  %v1817 = vld [vmem:[%s0 + $0x9c] sm:$0xf]
  %v1818 = vld [vmem:[%s0 + $0xa0] sm:$0xf]
  %v1819 = vld [vmem:[%s0 + $0xa4] sm:$0xf]
  %v1820 = vld [vmem:[%s0 + $0xa8] sm:$0xf]
  %v1821 = vld [vmem:[%s0 + $0xac] sm:$0xf]
  %v1822 = vld [vmem:[%s0 + $0xb0] sm:$0xf]
  %v1823 = vld [vmem:[%s0 + $0xb4] sm:$0xf]
  %v1824 = vld [vmem:[%s0 + $0xb8] sm:$0xf]
  %v1825 = vld [vmem:[%s0 + $0xbc] sm:$0xf]
  %v1826 = vld [vmem:[%s0 + $0xc0] sm:$0xf]
  %v1827 = vld [vmem:[%s0 + $0xc4] sm:$0xf]
  %v1828 = vld [vmem:[%s0 + $0xc8] sm:$0xf]
  %v1829 = vld [vmem:[%s0 + $0xcc] sm:$0xf]
  %v1830 = vld [vmem:[%s0 + $0xd0] sm:$0xf]
  %v1831 = vld [vmem:[%s0 + $0xd4] sm:$0xf]
  %v1832 = vld [vmem:[%s0 + $0xd8] sm:$0xf]
  %v1833 = vld [vmem:[%s0 + $0xdc] sm:$0xf]
  %v1834 = vld [vmem:[%s0 + $0xe0] sm:$0xf]
  %v1835 = vld [vmem:[%s0 + $0xe4] sm:$0xf]
  %v1836 = vld [vmem:[%s0 + $0xe8] sm:$0xf]
  %v1837 = vld [vmem:[%s0 + $0xec] sm:$0xf]
  %v1838 = vld [vmem:[%s0 + $0xf0] sm:$0xf]
  %v1839 = vld [vmem:[%s0 + $0xf4] sm:$0xf]
  %s1840 = scalar_lea.vmem %s1, 384
  %v1841 = vld [vmem:[%s1840] sm:$0xff]
  %v1842 = vld [vmem:[%s1840 + $0x8] sm:$0xff]
  %v1843 = vld [vmem:[%s1840 + $0x10] sm:$0xff]
  %v1844 = vld [vmem:[%s1840 + $0x18] sm:$0xff]
  %v1845 = vld [vmem:[%s1840 + $0x20] sm:$0xff]
  %v1846 = vld [vmem:[%s1840 + $0x28] sm:$0xff]
  %v1847 = vld [vmem:[%s1840 + $0x30] sm:$0xff]
  %v1848 = vld [vmem:[%s1840 + $0x38] sm:$0xff]
  %v1849 = vld [vmem:[%s1840 + $0x40] sm:$0xff]
  %v1850 = vld [vmem:[%s1840 + $0x48] sm:$0xff]
  %v1851 = vld [vmem:[%s1840 + $0x50] sm:$0xff]
  %v1852 = vld [vmem:[%s1840 + $0x58] sm:$0xff]
  %v1853 = vld [vmem:[%s1840 + $0x60] sm:$0xff]
  %v1854 = vld [vmem:[%s1840 + $0x68] sm:$0xff]
  %v1855 = vld [vmem:[%s1840 + $0x70] sm:$0xff]
  %v1856 = vld [vmem:[%s1840 + $0x78] sm:$0xff]
  %v1913 = vunpack.c.l.b16 %v1784
  %v1914 = vunpack.c.l.b16 %v1785
  %v1915 = vunpack.c.l.b16 %v1786
  %v1916 = vunpack.c.l.b16 %v1787
  %v1917 = vunpack.c.l.b16 %v1788
  %v1918 = vunpack.c.l.b16 %v1789
  %v1919 = vunpack.c.l.b16 %v1790
  %v1920 = vunpack.c.l.b16 %v1791
  %v1921 = vunpack.c.l.b16 %v1792
  %v1922 = vunpack.c.l.b16 %v1793
  %v1923 = vunpack.c.l.b16 %v1794
  %v1924 = vunpack.c.l.b16 %v1795
  %v1925 = vunpack.c.l.b16 %v1796
  %v1926 = vunpack.c.l.b16 %v1797
  %v1927 = vunpack.c.l.b16 %v1798
  %v1928 = vunpack.c.l.b16 %v1799
  %v1929 = vunpack.c.l.b16 %v1800
  %v1930 = vunpack.c.l.b16 %v1801
  %v1931 = vunpack.c.l.b16 %v1802
  %v1932 = vunpack.c.l.b16 %v1803
  %v1933 = vunpack.c.l.b16 %v1804
  %v1934 = vunpack.c.l.b16 %v1805
  %v1935 = vunpack.c.l.b16 %v1806
  %v1936 = vunpack.c.l.b16 %v1807
  %v1937 = vunpack.c.l.b16 %v1808
  %v1938 = vunpack.c.l.b16 %v1809
  %v1939 = vunpack.c.l.b16 %v1810
  %v1940 = vunpack.c.l.b16 %v1811
  %v1941 = vunpack.c.l.b16 %v1812
  %v1942 = vunpack.c.l.b16 %v1813
  %v1943 = vunpack.c.l.b16 %v1814
  %v1944 = vunpack.c.l.b16 %v1815
  %v1945 = vunpack.c.l.b16 %v1816
  %v1946 = vunpack.c.l.b16 %v1817
  %v1947 = vunpack.c.l.b16 %v1818
  %v1948 = vunpack.c.l.b16 %v1819
  %v1949 = vunpack.c.l.b16 %v1820
  %v1950 = vunpack.c.l.b16 %v1821
  %v1951 = vunpack.c.l.b16 %v1822
  %v1952 = vunpack.c.l.b16 %v1823
  %v1953 = vunpack.c.l.b16 %v1824
  %v1954 = vunpack.c.l.b16 %v1825
  %v1955 = vunpack.c.l.b16 %v1826
  %v1956 = vunpack.c.l.b16 %v1827
  %v1957 = vunpack.c.l.b16 %v1828
  %v1958 = vunpack.c.l.b16 %v1829
  %v1959 = vunpack.c.l.b16 %v1830
  %v1960 = vunpack.c.l.b16 %v1831
  %v1961 = vunpack.c.l.b16 %v1832
  %v1962 = vunpack.c.l.b16 %v1833
  %v1963 = vunpack.c.l.b16 %v1834
  %v1964 = vunpack.c.l.b16 %v1835
  %v1965 = vunpack.c.l.b16 %v1836
  %v1966 = vunpack.c.l.b16 %v1837
  %v1967 = vunpack.c.l.b16 %v1838
  %v1968 = vunpack.c.l.b16 %v1839
  %v1969 = vpack.c.b16 %v1914, %v1913
  %v1970 = vpack.c.b16 %v1916, %v1915
  %v1971 = vpack.c.b16 %v1918, %v1917
  %v1972 = vpack.c.b16 %v1920, %v1919
  %v1973 = vpack.c.b16 %v1922, %v1921
  %v1974 = vpack.c.b16 %v1924, %v1923
  %v1975 = vpack.c.b16 %v1926, %v1925
  %v1976 = vpack.c.b16 %v1928, %v1927
  %v1977 = vpack.c.b16 %v1930, %v1929
  %v1978 = vpack.c.b16 %v1932, %v1931
  %v1979 = vpack.c.b16 %v1934, %v1933
  %v1980 = vpack.c.b16 %v1936, %v1935
  %v1981 = vpack.c.b16 %v1938, %v1937
  %v1982 = vpack.c.b16 %v1940, %v1939
  %v1983 = vpack.c.b16 %v1942, %v1941
  %v1984 = vpack.c.b16 %v1944, %v1943
  %v1985 = vpack.c.b16 %v1946, %v1945
  %v1986 = vpack.c.b16 %v1948, %v1947
  %v1987 = vpack.c.b16 %v1950, %v1949
  %v1988 = vpack.c.b16 %v1952, %v1951
  %v1989 = vpack.c.b16 %v1954, %v1953
  %v1990 = vpack.c.b16 %v1956, %v1955
  %v1991 = vpack.c.b16 %v1958, %v1957
  %v1992 = vpack.c.b16 %v1960, %v1959
  %v1993 = vpack.c.b16 %v1962, %v1961
  %v1994 = vpack.c.b16 %v1964, %v1963
  %v1995 = vpack.c.b16 %v1966, %v1965
  %v1996 = vpack.c.b16 %v1968, %v1967
  %v2041 = vunpack.c.l.b16 %v1841
  %v2042 = vunpack.c.h.b16 %v1841
  %v2043 = vunpack.c.l.b16 %v1842
  %v2044 = vunpack.c.h.b16 %v1842
  %v2045 = vunpack.c.l.b16 %v1843
  %v2046 = vunpack.c.h.b16 %v1843
  %v2047 = vunpack.c.l.b16 %v1844
  %v2048 = vunpack.c.h.b16 %v1844
  %v2049 = vunpack.c.l.b16 %v1845
  %v2050 = vunpack.c.h.b16 %v1845
  %v2051 = vunpack.c.l.b16 %v1846
  %v2052 = vunpack.c.h.b16 %v1846
  %v2053 = vunpack.c.l.b16 %v1847
  %v2054 = vunpack.c.h.b16 %v1847
  %v2055 = vunpack.c.l.b16 %v1848
  %v2056 = vunpack.c.h.b16 %v1848
  %v2057 = vunpack.c.l.b16 %v1849
  %v2058 = vunpack.c.h.b16 %v1849
  %v2059 = vunpack.c.l.b16 %v1850
  %v2060 = vunpack.c.h.b16 %v1850
  %v2061 = vunpack.c.l.b16 %v1851
  %v2062 = vunpack.c.h.b16 %v1851
  %v2063 = vunpack.c.l.b16 %v1852
  %v2064 = vunpack.c.h.b16 %v1852
  %v2065 = vunpack.c.l.b16 %v1853
  %v2066 = vunpack.c.h.b16 %v1853
  %v2067 = vunpack.c.l.b16 %v1854
  %v2068 = vunpack.c.h.b16 %v1854
  %v2069 = vunpack.c.l.b16 %v1855
  %v2070 = vunpack.c.h.b16 %v1855
  %v2071 = vunpack.c.l.b16 %v1856
  %v2072 = vunpack.c.h.b16 %v1856
  %v2073 = vpack.c.b16 %v2043, %v2041
  %v2074 = vpack.c.b16 %v2044, %v2042
  %v2075 = vpack.c.b16 %v2047, %v2045
  %v2076 = vpack.c.b16 %v2048, %v2046
  %v2077 = vpack.c.b16 %v2051, %v2049
  %v2078 = vpack.c.b16 %v2052, %v2050
  %v2079 = vpack.c.b16 %v2055, %v2053
  %v2080 = vpack.c.b16 %v2056, %v2054
  %v2081 = vpack.c.b16 %v2059, %v2057
  %v2082 = vpack.c.b16 %v2060, %v2058
  %v2083 = vpack.c.b16 %v2063, %v2061
  %v2084 = vpack.c.b16 %v2064, %v2062
  %v2085 = vpack.c.b16 %v2067, %v2065
  %v2086 = vpack.c.b16 %v2068, %v2066
  %v2087 = vpack.c.b16 %v2071, %v2069
  %v2088 = vpack.c.b16 %v2072, %v2070
  %2105 = vmatpush.bf16.msra.mxu0 %v2087
  %2106 = vmatpush.bf16.msra.mxu0 %v2085
  %2107 = vmatpush.bf16.msra.mxu0 %v2083
  %2108 = vmatpush.bf16.msra.mxu0 %v2081
  %2109 = vmatpush.bf16.msra.mxu0 %v2079
  %2110 = vmatpush.bf16.msra.mxu0 %v2077
  %2111 = vmatpush.bf16.msra.mxu0 %v2075
  %2112 = vmatpush.bf16.msra.mxu0 %v2073
  %2113 = vmatmul.bf16.gmra.mxu0 %v1969
  %v2114 = vpop.f32.mrf.mxu0
  %v2115 = vadd.f32 0.0, %v2114
  %v2116 = vpop.f32.mrf.mxu0
  %v2117 = vadd.f32 0.0, %v2116
  %2118 = vmatmul.bf16.gmra.mxu0 %v1970
  %v2119 = vpop.f32.mrf.mxu0
  %v2120 = vadd.f32 0.0, %v2119
  %v2121 = vpop.f32.mrf.mxu0
  %v2122 = vadd.f32 0.0, %v2121
  %2123 = vmatmul.bf16.gmra.mxu0 %v1971
  %v2124 = vpop.f32.mrf.mxu0
  %v2125 = vadd.f32 0.0, %v2124
  %v2126 = vpop.f32.mrf.mxu0
  %v2127 = vadd.f32 0.0, %v2126
  %2128 = vmatmul.bf16.gmra.mxu0 %v1972
  %v2129 = vpop.f32.mrf.mxu0
  %v2130 = vadd.f32 0.0, %v2129
  %v2131 = vpop.f32.mrf.mxu0
  %v2132 = vadd.f32 0.0, %v2131
  %2133 = vmatmul.bf16.gmra.mxu0 %v1973
  %v2134 = vpop.f32.mrf.mxu0
  %v2135 = vadd.f32 0.0, %v2134
  %v2136 = vpop.f32.mrf.mxu0
  %v2137 = vadd.f32 0.0, %v2136
  %2138 = vmatmul.bf16.gmra.mxu0 %v1974
  %v2139 = vpop.f32.mrf.mxu0
  %v2140 = vadd.f32 0.0, %v2139
  %v2141 = vpop.f32.mrf.mxu0
  %v2142 = vadd.f32 0.0, %v2141
  %2143 = vmatmul.bf16.gmra.mxu0 %v1975
  %v2144 = vpop.f32.mrf.mxu0
  %v2145 = vadd.f32 0.0, %v2144
  %v2146 = vpop.f32.mrf.mxu0
  %v2147 = vadd.f32 0.0, %v2146
  %2148 = vmatmul.bf16.gmra.mxu0 %v1976
  %v2149 = vpop.f32.mrf.mxu0
  %v2150 = vadd.f32 0.0, %v2149
  %v2151 = vpop.f32.mrf.mxu0
  %v2152 = vadd.f32 0.0, %v2151
  %2153 = vmatmul.bf16.gmra.mxu0 %v1977
  %v2154 = vpop.f32.mrf.mxu0
  %v2155 = vadd.f32 0.0, %v2154
  %v2156 = vpop.f32.mrf.mxu0
  %v2157 = vadd.f32 0.0, %v2156
  %2158 = vmatmul.bf16.gmra.mxu0 %v1978
  %v2159 = vpop.f32.mrf.mxu0
  %v2160 = vadd.f32 0.0, %v2159
  %v2161 = vpop.f32.mrf.mxu0
  %v2162 = vadd.f32 0.0, %v2161
  %2163 = vmatmul.bf16.gmra.mxu0 %v1979
  %v2164 = vpop.f32.mrf.mxu0
  %v2165 = vadd.f32 0.0, %v2164
  %v2166 = vpop.f32.mrf.mxu0
  %v2167 = vadd.f32 0.0, %v2166
  %2168 = vmatmul.bf16.gmra.mxu0 %v1980
  %v2169 = vpop.f32.mrf.mxu0
  %v2170 = vadd.f32 0.0, %v2169
  %v2171 = vpop.f32.mrf.mxu0
  %v2172 = vadd.f32 0.0, %v2171
  %2173 = vmatmul.bf16.gmra.mxu0 %v1981
  %v2174 = vpop.f32.mrf.mxu0
  %v2175 = vadd.f32 0.0, %v2174
  %v2176 = vpop.f32.mrf.mxu0
  %v2177 = vadd.f32 0.0, %v2176
  %2178 = vmatmul.bf16.gmra.mxu0 %v1982
  %v2179 = vpop.f32.mrf.mxu0
  %v2180 = vadd.f32 0.0, %v2179
  %v2181 = vpop.f32.mrf.mxu0
  %v2182 = vadd.f32 0.0, %v2181
  %2183 = vmatmul.bf16.gmra.mxu0 %v1983
  %v2184 = vpop.f32.mrf.mxu0
  %v2185 = vadd.f32 0.0, %v2184
  %v2186 = vpop.f32.mrf.mxu0
  %v2187 = vadd.f32 0.0, %v2186
  %2188 = vmatmul.bf16.gmra.mxu0 %v1984
  %v2189 = vpop.f32.mrf.mxu0
  %v2190 = vadd.f32 0.0, %v2189
  %v2191 = vpop.f32.mrf.mxu0
  %v2192 = vadd.f32 0.0, %v2191
  %2193 = vmatmul.bf16.gmra.mxu0 %v1985
  %v2194 = vpop.f32.mrf.mxu0
  %v2195 = vadd.f32 0.0, %v2194
  %v2196 = vpop.f32.mrf.mxu0
  %v2197 = vadd.f32 0.0, %v2196
  %2198 = vmatmul.bf16.gmra.mxu0 %v1986
  %v2199 = vpop.f32.mrf.mxu0
  %v2200 = vadd.f32 0.0, %v2199
  %v2201 = vpop.f32.mrf.mxu0
  %v2202 = vadd.f32 0.0, %v2201
  %2203 = vmatmul.bf16.gmra.mxu0 %v1987
  %v2204 = vpop.f32.mrf.mxu0
  %v2205 = vadd.f32 0.0, %v2204
  %v2206 = vpop.f32.mrf.mxu0
  %v2207 = vadd.f32 0.0, %v2206
  %2208 = vmatmul.bf16.gmra.mxu0 %v1988
  %v2209 = vpop.f32.mrf.mxu0
  %v2210 = vadd.f32 0.0, %v2209
  %v2211 = vpop.f32.mrf.mxu0
  %v2212 = vadd.f32 0.0, %v2211
  %2213 = vmatmul.bf16.gmra.mxu0 %v1989
  %v2214 = vpop.f32.mrf.mxu0
  %v2215 = vadd.f32 0.0, %v2214
  %v2216 = vpop.f32.mrf.mxu0
  %v2217 = vadd.f32 0.0, %v2216
  %2218 = vmatmul.bf16.gmra.mxu0 %v1990
  %v2219 = vpop.f32.mrf.mxu0
  %v2220 = vadd.f32 0.0, %v2219
  %v2221 = vpop.f32.mrf.mxu0
  %v2222 = vadd.f32 0.0, %v2221
  %2223 = vmatmul.bf16.gmra.mxu0 %v1991
  %v2224 = vpop.f32.mrf.mxu0
  %v2225 = vadd.f32 0.0, %v2224
  %v2226 = vpop.f32.mrf.mxu0
  %v2227 = vadd.f32 0.0, %v2226
  %2228 = vmatmul.bf16.gmra.mxu0 %v1992
  %v2229 = vpop.f32.mrf.mxu0
  %v2230 = vadd.f32 0.0, %v2229
  %v2231 = vpop.f32.mrf.mxu0
  %v2232 = vadd.f32 0.0, %v2231
  %2233 = vmatmul.bf16.gmra.mxu0 %v1993
  %v2234 = vpop.f32.mrf.mxu0
  %v2235 = vadd.f32 0.0, %v2234
  %v2236 = vpop.f32.mrf.mxu0
  %v2237 = vadd.f32 0.0, %v2236
  %2238 = vmatmul.bf16.gmra.mxu0 %v1994
  %v2239 = vpop.f32.mrf.mxu0
  %v2240 = vadd.f32 0.0, %v2239
  %v2241 = vpop.f32.mrf.mxu0
  %v2242 = vadd.f32 0.0, %v2241
  %2243 = vmatmul.bf16.gmra.mxu0 %v1995
  %v2244 = vpop.f32.mrf.mxu0
  %v2245 = vadd.f32 0.0, %v2244
  %v2246 = vpop.f32.mrf.mxu0
  %v2247 = vadd.f32 0.0, %v2246
  %2248 = vmatmul.bf16.gmra.mxu0 %v1996
  %v2249 = vpop.f32.mrf.mxu0
  %v2250 = vadd.f32 0.0, %v2249
  %v2251 = vpop.f32.mrf.mxu0
  %v2252 = vadd.f32 0.0, %v2251
  %2253 = vdwg.mxu0
  %2254 = vmatpush.bf16.msra.mxu0 %v2088
  %2255 = vmatpush.bf16.msra.mxu0 %v2086
  %2256 = vmatpush.bf16.msra.mxu0 %v2084
  %2257 = vmatpush.bf16.msra.mxu0 %v2082
  %2258 = vmatpush.bf16.msra.mxu0 %v2080
  %2259 = vmatpush.bf16.msra.mxu0 %v2078
  %2260 = vmatpush.bf16.msra.mxu0 %v2076
  %2261 = vmatpush.bf16.msra.mxu0 %v2074
  %2262 = vmatmul.bf16.gmra.mxu0 %v1969
  %v2263 = vpop.f32.mrf.mxu0
  %v2264 = vadd.f32 0.0, %v2263
  %v2265 = vpop.f32.mrf.mxu0
  %v2266 = vadd.f32 0.0, %v2265
  %2267 = vmatmul.bf16.gmra.mxu0 %v1970
  %v2268 = vpop.f32.mrf.mxu0
  %v2269 = vadd.f32 0.0, %v2268
  %v2270 = vpop.f32.mrf.mxu0
  %v2271 = vadd.f32 0.0, %v2270
  %2272 = vmatmul.bf16.gmra.mxu0 %v1971
  %v2273 = vpop.f32.mrf.mxu0
  %v2274 = vadd.f32 0.0, %v2273
  %v2275 = vpop.f32.mrf.mxu0
  %v2276 = vadd.f32 0.0, %v2275
  %2277 = vmatmul.bf16.gmra.mxu0 %v1972
  %v2278 = vpop.f32.mrf.mxu0
  %v2279 = vadd.f32 0.0, %v2278
  %v2280 = vpop.f32.mrf.mxu0
  %v2281 = vadd.f32 0.0, %v2280
  %2282 = vmatmul.bf16.gmra.mxu0 %v1973
  %v2283 = vpop.f32.mrf.mxu0
  %v2284 = vadd.f32 0.0, %v2283
  %v2285 = vpop.f32.mrf.mxu0
  %v2286 = vadd.f32 0.0, %v2285
  %2287 = vmatmul.bf16.gmra.mxu0 %v1974
  %v2288 = vpop.f32.mrf.mxu0
  %v2289 = vadd.f32 0.0, %v2288
  %v2290 = vpop.f32.mrf.mxu0
  %v2291 = vadd.f32 0.0, %v2290
  %2292 = vmatmul.bf16.gmra.mxu0 %v1975
  %v2293 = vpop.f32.mrf.mxu0
  %v2294 = vadd.f32 0.0, %v2293
  %v2295 = vpop.f32.mrf.mxu0
  %v2296 = vadd.f32 0.0, %v2295
  %2297 = vmatmul.bf16.gmra.mxu0 %v1976
  %v2298 = vpop.f32.mrf.mxu0
  %v2299 = vadd.f32 0.0, %v2298
  %v2300 = vpop.f32.mrf.mxu0
  %v2301 = vadd.f32 0.0, %v2300
  %2302 = vmatmul.bf16.gmra.mxu0 %v1977
  %v2303 = vpop.f32.mrf.mxu0
  %v2304 = vadd.f32 0.0, %v2303
  %v2305 = vpop.f32.mrf.mxu0
  %v2306 = vadd.f32 0.0, %v2305
  %2307 = vmatmul.bf16.gmra.mxu0 %v1978
  %v2308 = vpop.f32.mrf.mxu0
  %v2309 = vadd.f32 0.0, %v2308
  %v2310 = vpop.f32.mrf.mxu0
  %v2311 = vadd.f32 0.0, %v2310
  %2312 = vmatmul.bf16.gmra.mxu0 %v1979
  %v2313 = vpop.f32.mrf.mxu0
  %v2314 = vadd.f32 0.0, %v2313
  %v2315 = vpop.f32.mrf.mxu0
  %v2316 = vadd.f32 0.0, %v2315
  %2317 = vmatmul.bf16.gmra.mxu0 %v1980
  %v2318 = vpop.f32.mrf.mxu0
  %v2319 = vadd.f32 0.0, %v2318
  %v2320 = vpop.f32.mrf.mxu0
  %v2321 = vadd.f32 0.0, %v2320
  %2322 = vmatmul.bf16.gmra.mxu0 %v1981
  %v2323 = vpop.f32.mrf.mxu0
  %v2324 = vadd.f32 0.0, %v2323
  %v2325 = vpop.f32.mrf.mxu0
  %v2326 = vadd.f32 0.0, %v2325
  %2327 = vmatmul.bf16.gmra.mxu0 %v1982
  %v2328 = vpop.f32.mrf.mxu0
  %v2329 = vadd.f32 0.0, %v2328
  %v2330 = vpop.f32.mrf.mxu0
  %v2331 = vadd.f32 0.0, %v2330
  %2332 = vmatmul.bf16.gmra.mxu0 %v1983
  %v2333 = vpop.f32.mrf.mxu0
  %v2334 = vadd.f32 0.0, %v2333
  %v2335 = vpop.f32.mrf.mxu0
  %v2336 = vadd.f32 0.0, %v2335
  %2337 = vmatmul.bf16.gmra.mxu0 %v1984
  %v2338 = vpop.f32.mrf.mxu0
  %v2339 = vadd.f32 0.0, %v2338
  %v2340 = vpop.f32.mrf.mxu0
  %v2341 = vadd.f32 0.0, %v2340
  %2342 = vmatmul.bf16.gmra.mxu0 %v1985
  %v2343 = vpop.f32.mrf.mxu0
  %v2344 = vadd.f32 0.0, %v2343
  %v2345 = vpop.f32.mrf.mxu0
  %v2346 = vadd.f32 0.0, %v2345
  %2347 = vmatmul.bf16.gmra.mxu0 %v1986
  %v2348 = vpop.f32.mrf.mxu0
  %v2349 = vadd.f32 0.0, %v2348
  %v2350 = vpop.f32.mrf.mxu0
  %v2351 = vadd.f32 0.0, %v2350
  %2352 = vmatmul.bf16.gmra.mxu0 %v1987
  %v2353 = vpop.f32.mrf.mxu0
  %v2354 = vadd.f32 0.0, %v2353
  %v2355 = vpop.f32.mrf.mxu0
  %v2356 = vadd.f32 0.0, %v2355
  %2357 = vmatmul.bf16.gmra.mxu0 %v1988
  %v2358 = vpop.f32.mrf.mxu0
  %v2359 = vadd.f32 0.0, %v2358
  %v2360 = vpop.f32.mrf.mxu0
  %v2361 = vadd.f32 0.0, %v2360
  %2362 = vmatmul.bf16.gmra.mxu0 %v1989
  %v2363 = vpop.f32.mrf.mxu0
  %v2364 = vadd.f32 0.0, %v2363
  %v2365 = vpop.f32.mrf.mxu0
  %v2366 = vadd.f32 0.0, %v2365
  %2367 = vmatmul.bf16.gmra.mxu0 %v1990
  %v2368 = vpop.f32.mrf.mxu0
  %v2369 = vadd.f32 0.0, %v2368
  %v2370 = vpop.f32.mrf.mxu0
  %v2371 = vadd.f32 0.0, %v2370
  %2372 = vmatmul.bf16.gmra.mxu0 %v1991
  %v2373 = vpop.f32.mrf.mxu0
  %v2374 = vadd.f32 0.0, %v2373
  %v2375 = vpop.f32.mrf.mxu0
  %v2376 = vadd.f32 0.0, %v2375
  %2377 = vmatmul.bf16.gmra.mxu0 %v1992
  %v2378 = vpop.f32.mrf.mxu0
  %v2379 = vadd.f32 0.0, %v2378
  %v2380 = vpop.f32.mrf.mxu0
  %v2381 = vadd.f32 0.0, %v2380
  %2382 = vmatmul.bf16.gmra.mxu0 %v1993
  %v2383 = vpop.f32.mrf.mxu0
  %v2384 = vadd.f32 0.0, %v2383
  %v2385 = vpop.f32.mrf.mxu0
  %v2386 = vadd.f32 0.0, %v2385
  %2387 = vmatmul.bf16.gmra.mxu0 %v1994
  %v2388 = vpop.f32.mrf.mxu0
  %v2389 = vadd.f32 0.0, %v2388
  %v2390 = vpop.f32.mrf.mxu0
  %v2391 = vadd.f32 0.0, %v2390
  %2392 = vmatmul.bf16.gmra.mxu0 %v1995
  %v2393 = vpop.f32.mrf.mxu0
  %v2394 = vadd.f32 0.0, %v2393
  %v2395 = vpop.f32.mrf.mxu0
  %v2396 = vadd.f32 0.0, %v2395
  %2397 = vmatmul.bf16.gmra.mxu0 %v1996
  %v2398 = vpop.f32.mrf.mxu0
  %v2399 = vadd.f32 0.0, %v2398
  %v2400 = vpop.f32.mrf.mxu0
  %v2401 = vadd.f32 0.0, %v2400
  %2402 = vdwg.mxu0
  %v2403 = vadd.f32 %v1672, %v2115
  %v2404 = vadd.f32 %v1673, %v2264
  %v2405 = vadd.f32 %v1674, %v2117
  %v2406 = vadd.f32 %v1675, %v2266
  %v2407 = vadd.f32 %v1676, %v2120
  %v2408 = vadd.f32 %v1677, %v2269
  %v2409 = vadd.f32 %v1678, %v2122
  %v2410 = vadd.f32 %v1679, %v2271
  %v2411 = vadd.f32 %v1680, %v2125
  %v2412 = vadd.f32 %v1681, %v2274
  %v2413 = vadd.f32 %v1682, %v2127
  %v2414 = vadd.f32 %v1683, %v2276
  %v2415 = vadd.f32 %v1684, %v2130
  %v2416 = vadd.f32 %v1685, %v2279
  %v2417 = vadd.f32 %v1686, %v2132
  %v2418 = vadd.f32 %v1687, %v2281
  %v2419 = vadd.f32 %v1688, %v2135
  %v2420 = vadd.f32 %v1689, %v2284
  %v2421 = vadd.f32 %v1690, %v2137
  %v2422 = vadd.f32 %v1691, %v2286
  %v2423 = vadd.f32 %v1692, %v2140
  %v2424 = vadd.f32 %v1693, %v2289
  %v2425 = vadd.f32 %v1694, %v2142
  %v2426 = vadd.f32 %v1695, %v2291
  %v2427 = vadd.f32 %v1696, %v2145
  %v2428 = vadd.f32 %v1697, %v2294
  %v2429 = vadd.f32 %v1698, %v2147
  %v2430 = vadd.f32 %v1699, %v2296
  %v2431 = vadd.f32 %v1700, %v2150
  %v2432 = vadd.f32 %v1701, %v2299
  %v2433 = vadd.f32 %v1702, %v2152
  %v2434 = vadd.f32 %v1703, %v2301
  %v2435 = vadd.f32 %v1704, %v2155
  %v2436 = vadd.f32 %v1705, %v2304
  %v2437 = vadd.f32 %v1706, %v2157
  %v2438 = vadd.f32 %v1707, %v2306
  %v2439 = vadd.f32 %v1708, %v2160
  %v2440 = vadd.f32 %v1709, %v2309
  %v2441 = vadd.f32 %v1710, %v2162
  %v2442 = vadd.f32 %v1711, %v2311
  %v2443 = vadd.f32 %v1712, %v2165
  %v2444 = vadd.f32 %v1713, %v2314
  %v2445 = vadd.f32 %v1714, %v2167
  %v2446 = vadd.f32 %v1715, %v2316
  %v2447 = vadd.f32 %v1716, %v2170
  %v2448 = vadd.f32 %v1717, %v2319
  %v2449 = vadd.f32 %v1718, %v2172
  %v2450 = vadd.f32 %v1719, %v2321
  %v2451 = vadd.f32 %v1720, %v2175
  %v2452 = vadd.f32 %v1721, %v2324
  %v2453 = vadd.f32 %v1722, %v2177
  %v2454 = vadd.f32 %v1723, %v2326
  %v2455 = vadd.f32 %v1724, %v2180
  %v2456 = vadd.f32 %v1725, %v2329
  %v2457 = vadd.f32 %v1726, %v2182
  %v2458 = vadd.f32 %v1727, %v2331
  %v2459 = vadd.f32 %v1728, %v2185
  %v2460 = vadd.f32 %v1729, %v2334
  %v2461 = vadd.f32 %v1730, %v2187
  %v2462 = vadd.f32 %v1731, %v2336
  %v2463 = vadd.f32 %v1732, %v2190
  %v2464 = vadd.f32 %v1733, %v2339
  %v2465 = vadd.f32 %v1734, %v2192
  %v2466 = vadd.f32 %v1735, %v2341
  %v2467 = vadd.f32 %v1736, %v2195
  %v2468 = vadd.f32 %v1737, %v2344
  %v2469 = vadd.f32 %v1738, %v2197
  %v2470 = vadd.f32 %v1739, %v2346
  %v2471 = vadd.f32 %v1740, %v2200
  %v2472 = vadd.f32 %v1741, %v2349
  %v2473 = vadd.f32 %v1742, %v2202
  %v2474 = vadd.f32 %v1743, %v2351
  %v2475 = vadd.f32 %v1744, %v2205
  %v2476 = vadd.f32 %v1745, %v2354
  %v2477 = vadd.f32 %v1746, %v2207
  %v2478 = vadd.f32 %v1747, %v2356
  %v2479 = vadd.f32 %v1748, %v2210
  %v2480 = vadd.f32 %v1749, %v2359
  %v2481 = vadd.f32 %v1750, %v2212
  %v2482 = vadd.f32 %v1751, %v2361
  %v2483 = vadd.f32 %v1752, %v2215
  %v2484 = vadd.f32 %v1753, %v2364
  %v2485 = vadd.f32 %v1754, %v2217
  %v2486 = vadd.f32 %v1755, %v2366
  %v2487 = vadd.f32 %v1756, %v2220
  %v2488 = vadd.f32 %v1757, %v2369
  %v2489 = vadd.f32 %v1758, %v2222
  %v2490 = vadd.f32 %v1759, %v2371
  %v2491 = vadd.f32 %v1760, %v2225
  %v2492 = vadd.f32 %v1761, %v2374
  %v2493 = vadd.f32 %v1762, %v2227
  %v2494 = vadd.f32 %v1763, %v2376
  %v2495 = vadd.f32 %v1764, %v2230
  %v2496 = vadd.f32 %v1765, %v2379
  %v2497 = vadd.f32 %v1766, %v2232
  %v2498 = vadd.f32 %v1767, %v2381
  %v2499 = vadd.f32 %v1768, %v2235
  %v2500 = vadd.f32 %v1769, %v2384
  %v2501 = vadd.f32 %v1770, %v2237
  %v2502 = vadd.f32 %v1771, %v2386
  %v2503 = vadd.f32 %v1772, %v2240
  %v2504 = vadd.f32 %v1773, %v2389
  %v2505 = vadd.f32 %v1774, %v2242
  %v2506 = vadd.f32 %v1775, %v2391
  %v2507 = vadd.f32 %v1776, %v2245
  %v2508 = vadd.f32 %v1777, %v2394
  %v2509 = vadd.f32 %v1778, %v2247
  %v2510 = vadd.f32 %v1779, %v2396
  %v2511 = vadd.f32 %v1780, %v2250
  %v2512 = vadd.f32 %v1781, %v2399
  %v2513 = vadd.f32 %v1782, %v2252
  %v2514 = vadd.f32 %v1783, %v2401
  %v2515 = vld [vmem:[%s0 + $0x20] sm:$0xf]
  %v2516 = vld [vmem:[%s0 + $0x24] sm:$0xf]
  %v2517 = vld [vmem:[%s0 + $0x28] sm:$0xf]
  %v2518 = vld [vmem:[%s0 + $0x2c] sm:$0xf]
  %v2519 = vld [vmem:[%s0 + $0x30] sm:$0xf]
  %v2520 = vld [vmem:[%s0 + $0x34] sm:$0xf]
  %v2521 = vld [vmem:[%s0 + $0x38] sm:$0xf]
  %v2522 = vld [vmem:[%s0 + $0x3c] sm:$0xf]
  %v2523 = vld [vmem:[%s0 + $0x40] sm:$0xf]
  %v2524 = vld [vmem:[%s0 + $0x44] sm:$0xf]
  %v2525 = vld [vmem:[%s0 + $0x48] sm:$0xf]
  %v2526 = vld [vmem:[%s0 + $0x4c] sm:$0xf]
  %v2527 = vld [vmem:[%s0 + $0x50] sm:$0xf]
  %v2528 = vld [vmem:[%s0 + $0x54] sm:$0xf]
  %v2529 = vld [vmem:[%s0 + $0x58] sm:$0xf]
  %v2530 = vld [vmem:[%s0 + $0x5c] sm:$0xf]
  %v2531 = vld [vmem:[%s0 + $0x60] sm:$0xf]
  %v2532 = vld [vmem:[%s0 + $0x64] sm:$0xf]
  %v2533 = vld [vmem:[%s0 + $0x68] sm:$0xf]
  %v2534 = vld [vmem:[%s0 + $0x6c] sm:$0xf]
  %v2535 = vld [vmem:[%s0 + $0x70] sm:$0xf]
  %v2536 = vld [vmem:[%s0 + $0x74] sm:$0xf]
  %v2537 = vld [vmem:[%s0 + $0x78] sm:$0xf]
  %v2538 = vld [vmem:[%s0 + $0x7c] sm:$0xf]
  %v2539 = vld [vmem:[%s0 + $0x80] sm:$0xf]
  %v2540 = vld [vmem:[%s0 + $0x84] sm:$0xf]
  %v2541 = vld [vmem:[%s0 + $0x88] sm:$0xf]
  %v2542 = vld [vmem:[%s0 + $0x8c] sm:$0xf]
  %v2543 = vld [vmem:[%s0 + $0x90] sm:$0xf]
  %v2544 = vld [vmem:[%s0 + $0x94] sm:$0xf]
  %v2545 = vld [vmem:[%s0 + $0x98] sm:$0xf]
  %v2546 = vld [vmem:[%s0 + $0x9c] sm:$0xf]
  %v2547 = vld [vmem:[%s0 + $0xa0] sm:$0xf]
  %v2548 = vld [vmem:[%s0 + $0xa4] sm:$0xf]
  %v2549 = vld [vmem:[%s0 + $0xa8] sm:$0xf]
  %v2550 = vld [vmem:[%s0 + $0xac] sm:$0xf]
  %v2551 = vld [vmem:[%s0 + $0xb0] sm:$0xf]
  %v2552 = vld [vmem:[%s0 + $0xb4] sm:$0xf]
  %v2553 = vld [vmem:[%s0 + $0xb8] sm:$0xf]
  %v2554 = vld [vmem:[%s0 + $0xbc] sm:$0xf]
  %v2555 = vld [vmem:[%s0 + $0xc0] sm:$0xf]
  %v2556 = vld [vmem:[%s0 + $0xc4] sm:$0xf]
  %v2557 = vld [vmem:[%s0 + $0xc8] sm:$0xf]
  %v2558 = vld [vmem:[%s0 + $0xcc] sm:$0xf]
  %v2559 = vld [vmem:[%s0 + $0xd0] sm:$0xf]
  %v2560 = vld [vmem:[%s0 + $0xd4] sm:$0xf]
  %v2561 = vld [vmem:[%s0 + $0xd8] sm:$0xf]
  %v2562 = vld [vmem:[%s0 + $0xdc] sm:$0xf]
  %v2563 = vld [vmem:[%s0 + $0xe0] sm:$0xf]
  %v2564 = vld [vmem:[%s0 + $0xe4] sm:$0xf]
  %v2565 = vld [vmem:[%s0 + $0xe8] sm:$0xf]
  %v2566 = vld [vmem:[%s0 + $0xec] sm:$0xf]
  %v2567 = vld [vmem:[%s0 + $0xf0] sm:$0xf]
  %v2568 = vld [vmem:[%s0 + $0xf4] sm:$0xf]
  %v2569 = vld [vmem:[%s0 + $0xf8] sm:$0xf]
  %v2570 = vld [vmem:[%s0 + $0xfc] sm:$0xf]
  %s2571 = scalar_lea.vmem %s1, 512
  %v2572 = vld [vmem:[%s2571] sm:$0xff]
  %v2573 = vld [vmem:[%s2571 + $0x8] sm:$0xff]
  %v2574 = vld [vmem:[%s2571 + $0x10] sm:$0xff]
  %v2575 = vld [vmem:[%s2571 + $0x18] sm:$0xff]
  %v2576 = vld [vmem:[%s2571 + $0x20] sm:$0xff]
  %v2577 = vld [vmem:[%s2571 + $0x28] sm:$0xff]
  %v2578 = vld [vmem:[%s2571 + $0x30] sm:$0xff]
  %v2579 = vld [vmem:[%s2571 + $0x38] sm:$0xff]
  %v2580 = vld [vmem:[%s2571 + $0x40] sm:$0xff]
  %v2581 = vld [vmem:[%s2571 + $0x48] sm:$0xff]
  %v2582 = vld [vmem:[%s2571 + $0x50] sm:$0xff]
  %v2583 = vld [vmem:[%s2571 + $0x58] sm:$0xff]
  %v2584 = vld [vmem:[%s2571 + $0x60] sm:$0xff]
  %v2585 = vld [vmem:[%s2571 + $0x68] sm:$0xff]
  %v2586 = vld [vmem:[%s2571 + $0x70] sm:$0xff]
  %v2587 = vld [vmem:[%s2571 + $0x78] sm:$0xff]
  %v2644 = vunpack.c.l.b16 %v2515
  %v2645 = vunpack.c.l.b16 %v2516
  %v2646 = vunpack.c.l.b16 %v2517
  %v2647 = vunpack.c.l.b16 %v2518
  %v2648 = vunpack.c.l.b16 %v2519
  %v2649 = vunpack.c.l.b16 %v2520
  %v2650 = vunpack.c.l.b16 %v2521
  %v2651 = vunpack.c.l.b16 %v2522
  %v2652 = vunpack.c.l.b16 %v2523
  %v2653 = vunpack.c.l.b16 %v2524
  %v2654 = vunpack.c.l.b16 %v2525
  %v2655 = vunpack.c.l.b16 %v2526
  %v2656 = vunpack.c.l.b16 %v2527
  %v2657 = vunpack.c.l.b16 %v2528
  %v2658 = vunpack.c.l.b16 %v2529
  %v2659 = vunpack.c.l.b16 %v2530
  %v2660 = vunpack.c.l.b16 %v2531
  %v2661 = vunpack.c.l.b16 %v2532
  %v2662 = vunpack.c.l.b16 %v2533
  %v2663 = vunpack.c.l.b16 %v2534
  %v2664 = vunpack.c.l.b16 %v2535
  %v2665 = vunpack.c.l.b16 %v2536
  %v2666 = vunpack.c.l.b16 %v2537
  %v2667 = vunpack.c.l.b16 %v2538
  %v2668 = vunpack.c.l.b16 %v2539
  %v2669 = vunpack.c.l.b16 %v2540
  %v2670 = vunpack.c.l.b16 %v2541
  %v2671 = vunpack.c.l.b16 %v2542
  %v2672 = vunpack.c.l.b16 %v2543
  %v2673 = vunpack.c.l.b16 %v2544
  %v2674 = vunpack.c.l.b16 %v2545
  %v2675 = vunpack.c.l.b16 %v2546
  %v2676 = vunpack.c.l.b16 %v2547
  %v2677 = vunpack.c.l.b16 %v2548
  %v2678 = vunpack.c.l.b16 %v2549
  %v2679 = vunpack.c.l.b16 %v2550
  %v2680 = vunpack.c.l.b16 %v2551
  %v2681 = vunpack.c.l.b16 %v2552
  %v2682 = vunpack.c.l.b16 %v2553
  %v2683 = vunpack.c.l.b16 %v2554
  %v2684 = vunpack.c.l.b16 %v2555
  %v2685 = vunpack.c.l.b16 %v2556
  %v2686 = vunpack.c.l.b16 %v2557
  %v2687 = vunpack.c.l.b16 %v2558
  %v2688 = vunpack.c.l.b16 %v2559
  %v2689 = vunpack.c.l.b16 %v2560
  %v2690 = vunpack.c.l.b16 %v2561
  %v2691 = vunpack.c.l.b16 %v2562
  %v2692 = vunpack.c.l.b16 %v2563
  %v2693 = vunpack.c.l.b16 %v2564
  %v2694 = vunpack.c.l.b16 %v2565
  %v2695 = vunpack.c.l.b16 %v2566
  %v2696 = vunpack.c.l.b16 %v2567
  %v2697 = vunpack.c.l.b16 %v2568
  %v2698 = vunpack.c.l.b16 %v2569
  %v2699 = vunpack.c.l.b16 %v2570
  %v2700 = vpack.c.b16 %v2645, %v2644
  %v2701 = vpack.c.b16 %v2647, %v2646
  %v2702 = vpack.c.b16 %v2649, %v2648
  %v2703 = vpack.c.b16 %v2651, %v2650
  %v2704 = vpack.c.b16 %v2653, %v2652
  %v2705 = vpack.c.b16 %v2655, %v2654
  %v2706 = vpack.c.b16 %v2657, %v2656
  %v2707 = vpack.c.b16 %v2659, %v2658
  %v2708 = vpack.c.b16 %v2661, %v2660
  %v2709 = vpack.c.b16 %v2663, %v2662
  %v2710 = vpack.c.b16 %v2665, %v2664
  %v2711 = vpack.c.b16 %v2667, %v2666
  %v2712 = vpack.c.b16 %v2669, %v2668
  %v2713 = vpack.c.b16 %v2671, %v2670
  %v2714 = vpack.c.b16 %v2673, %v2672
  %v2715 = vpack.c.b16 %v2675, %v2674
  %v2716 = vpack.c.b16 %v2677, %v2676
  %v2717 = vpack.c.b16 %v2679, %v2678
  %v2718 = vpack.c.b16 %v2681, %v2680
  %v2719 = vpack.c.b16 %v2683, %v2682
  %v2720 = vpack.c.b16 %v2685, %v2684
  %v2721 = vpack.c.b16 %v2687, %v2686
  %v2722 = vpack.c.b16 %v2689, %v2688
  %v2723 = vpack.c.b16 %v2691, %v2690
  %v2724 = vpack.c.b16 %v2693, %v2692
  %v2725 = vpack.c.b16 %v2695, %v2694
  %v2726 = vpack.c.b16 %v2697, %v2696
  %v2727 = vpack.c.b16 %v2699, %v2698
  %v2772 = vunpack.c.l.b16 %v2572
  %v2773 = vunpack.c.h.b16 %v2572
  %v2774 = vunpack.c.l.b16 %v2573
  %v2775 = vunpack.c.h.b16 %v2573
  %v2776 = vunpack.c.l.b16 %v2574
  %v2777 = vunpack.c.h.b16 %v2574
  %v2778 = vunpack.c.l.b16 %v2575
  %v2779 = vunpack.c.h.b16 %v2575
  %v2780 = vunpack.c.l.b16 %v2576
  %v2781 = vunpack.c.h.b16 %v2576
  %v2782 = vunpack.c.l.b16 %v2577
  %v2783 = vunpack.c.h.b16 %v2577
  %v2784 = vunpack.c.l.b16 %v2578
  %v2785 = vunpack.c.h.b16 %v2578
  %v2786 = vunpack.c.l.b16 %v2579
  %v2787 = vunpack.c.h.b16 %v2579
  %v2788 = vunpack.c.l.b16 %v2580
  %v2789 = vunpack.c.h.b16 %v2580
  %v2790 = vunpack.c.l.b16 %v2581
  %v2791 = vunpack.c.h.b16 %v2581
  %v2792 = vunpack.c.l.b16 %v2582
  %v2793 = vunpack.c.h.b16 %v2582
  %v2794 = vunpack.c.l.b16 %v2583
  %v2795 = vunpack.c.h.b16 %v2583
  %v2796 = vunpack.c.l.b16 %v2584
  %v2797 = vunpack.c.h.b16 %v2584
  %v2798 = vunpack.c.l.b16 %v2585
  %v2799 = vunpack.c.h.b16 %v2585
  %v2800 = vunpack.c.l.b16 %v2586
  %v2801 = vunpack.c.h.b16 %v2586
  %v2802 = vunpack.c.l.b16 %v2587
  %v2803 = vunpack.c.h.b16 %v2587
  %v2804 = vpack.c.b16 %v2774, %v2772
  %v2805 = vpack.c.b16 %v2775, %v2773
  %v2806 = vpack.c.b16 %v2778, %v2776
  %v2807 = vpack.c.b16 %v2779, %v2777
  %v2808 = vpack.c.b16 %v2782, %v2780
  %v2809 = vpack.c.b16 %v2783, %v2781
  %v2810 = vpack.c.b16 %v2786, %v2784
  %v2811 = vpack.c.b16 %v2787, %v2785
  %v2812 = vpack.c.b16 %v2790, %v2788
  %v2813 = vpack.c.b16 %v2791, %v2789
  %v2814 = vpack.c.b16 %v2794, %v2792
  %v2815 = vpack.c.b16 %v2795, %v2793
  %v2816 = vpack.c.b16 %v2798, %v2796
  %v2817 = vpack.c.b16 %v2799, %v2797
  %v2818 = vpack.c.b16 %v2802, %v2800
  %v2819 = vpack.c.b16 %v2803, %v2801
  %2836 = vmatpush.bf16.msra.mxu0 %v2818
  %2837 = vmatpush.bf16.msra.mxu0 %v2816
  %2838 = vmatpush.bf16.msra.mxu0 %v2814
  %2839 = vmatpush.bf16.msra.mxu0 %v2812
  %2840 = vmatpush.bf16.msra.mxu0 %v2810
  %2841 = vmatpush.bf16.msra.mxu0 %v2808
  %2842 = vmatpush.bf16.msra.mxu0 %v2806
  %2843 = vmatpush.bf16.msra.mxu0 %v2804
  %2844 = vmatmul.bf16.gmra.mxu0 %v2700
  %v2845 = vpop.f32.mrf.mxu0
  %v2846 = vadd.f32 0.0, %v2845
  %v2847 = vpop.f32.mrf.mxu0
  %v2848 = vadd.f32 0.0, %v2847
  %2849 = vmatmul.bf16.gmra.mxu0 %v2701
  %v2850 = vpop.f32.mrf.mxu0
  %v2851 = vadd.f32 0.0, %v2850
  %v2852 = vpop.f32.mrf.mxu0
  %v2853 = vadd.f32 0.0, %v2852
  %2854 = vmatmul.bf16.gmra.mxu0 %v2702
  %v2855 = vpop.f32.mrf.mxu0
  %v2856 = vadd.f32 0.0, %v2855
  %v2857 = vpop.f32.mrf.mxu0
  %v2858 = vadd.f32 0.0, %v2857
  %2859 = vmatmul.bf16.gmra.mxu0 %v2703
  %v2860 = vpop.f32.mrf.mxu0
  %v2861 = vadd.f32 0.0, %v2860
  %v2862 = vpop.f32.mrf.mxu0
  %v2863 = vadd.f32 0.0, %v2862
  %2864 = vmatmul.bf16.gmra.mxu0 %v2704
  %v2865 = vpop.f32.mrf.mxu0
  %v2866 = vadd.f32 0.0, %v2865
  %v2867 = vpop.f32.mrf.mxu0
  %v2868 = vadd.f32 0.0, %v2867
  %2869 = vmatmul.bf16.gmra.mxu0 %v2705
  %v2870 = vpop.f32.mrf.mxu0
  %v2871 = vadd.f32 0.0, %v2870
  %v2872 = vpop.f32.mrf.mxu0
  %v2873 = vadd.f32 0.0, %v2872
  %2874 = vmatmul.bf16.gmra.mxu0 %v2706
  %v2875 = vpop.f32.mrf.mxu0
  %v2876 = vadd.f32 0.0, %v2875
  %v2877 = vpop.f32.mrf.mxu0
  %v2878 = vadd.f32 0.0, %v2877
  %2879 = vmatmul.bf16.gmra.mxu0 %v2707
  %v2880 = vpop.f32.mrf.mxu0
  %v2881 = vadd.f32 0.0, %v2880
  %v2882 = vpop.f32.mrf.mxu0
  %v2883 = vadd.f32 0.0, %v2882
  %2884 = vmatmul.bf16.gmra.mxu0 %v2708
  %v2885 = vpop.f32.mrf.mxu0
  %v2886 = vadd.f32 0.0, %v2885
  %v2887 = vpop.f32.mrf.mxu0
  %v2888 = vadd.f32 0.0, %v2887
  %2889 = vmatmul.bf16.gmra.mxu0 %v2709
  %v2890 = vpop.f32.mrf.mxu0
  %v2891 = vadd.f32 0.0, %v2890
  %v2892 = vpop.f32.mrf.mxu0
  %v2893 = vadd.f32 0.0, %v2892
  %2894 = vmatmul.bf16.gmra.mxu0 %v2710
  %v2895 = vpop.f32.mrf.mxu0
  %v2896 = vadd.f32 0.0, %v2895
  %v2897 = vpop.f32.mrf.mxu0
  %v2898 = vadd.f32 0.0, %v2897
  %2899 = vmatmul.bf16.gmra.mxu0 %v2711
  %v2900 = vpop.f32.mrf.mxu0
  %v2901 = vadd.f32 0.0, %v2900
  %v2902 = vpop.f32.mrf.mxu0
  %v2903 = vadd.f32 0.0, %v2902
  %2904 = vmatmul.bf16.gmra.mxu0 %v2712
  %v2905 = vpop.f32.mrf.mxu0
  %v2906 = vadd.f32 0.0, %v2905
  %v2907 = vpop.f32.mrf.mxu0
  %v2908 = vadd.f32 0.0, %v2907
  %2909 = vmatmul.bf16.gmra.mxu0 %v2713
  %v2910 = vpop.f32.mrf.mxu0
  %v2911 = vadd.f32 0.0, %v2910
  %v2912 = vpop.f32.mrf.mxu0
  %v2913 = vadd.f32 0.0, %v2912
  %2914 = vmatmul.bf16.gmra.mxu0 %v2714
  %v2915 = vpop.f32.mrf.mxu0
  %v2916 = vadd.f32 0.0, %v2915
  %v2917 = vpop.f32.mrf.mxu0
  %v2918 = vadd.f32 0.0, %v2917
  %2919 = vmatmul.bf16.gmra.mxu0 %v2715
  %v2920 = vpop.f32.mrf.mxu0
  %v2921 = vadd.f32 0.0, %v2920
  %v2922 = vpop.f32.mrf.mxu0
  %v2923 = vadd.f32 0.0, %v2922
  %2924 = vmatmul.bf16.gmra.mxu0 %v2716
  %v2925 = vpop.f32.mrf.mxu0
  %v2926 = vadd.f32 0.0, %v2925
  %v2927 = vpop.f32.mrf.mxu0
  %v2928 = vadd.f32 0.0, %v2927
  %2929 = vmatmul.bf16.gmra.mxu0 %v2717
  %v2930 = vpop.f32.mrf.mxu0
  %v2931 = vadd.f32 0.0, %v2930
  %v2932 = vpop.f32.mrf.mxu0
  %v2933 = vadd.f32 0.0, %v2932
  %2934 = vmatmul.bf16.gmra.mxu0 %v2718
  %v2935 = vpop.f32.mrf.mxu0
  %v2936 = vadd.f32 0.0, %v2935
  %v2937 = vpop.f32.mrf.mxu0
  %v2938 = vadd.f32 0.0, %v2937
  %2939 = vmatmul.bf16.gmra.mxu0 %v2719
  %v2940 = vpop.f32.mrf.mxu0
  %v2941 = vadd.f32 0.0, %v2940
  %v2942 = vpop.f32.mrf.mxu0
  %v2943 = vadd.f32 0.0, %v2942
  %2944 = vmatmul.bf16.gmra.mxu0 %v2720
  %v2945 = vpop.f32.mrf.mxu0
  %v2946 = vadd.f32 0.0, %v2945
  %v2947 = vpop.f32.mrf.mxu0
  %v2948 = vadd.f32 0.0, %v2947
  %2949 = vmatmul.bf16.gmra.mxu0 %v2721
  %v2950 = vpop.f32.mrf.mxu0
  %v2951 = vadd.f32 0.0, %v2950
  %v2952 = vpop.f32.mrf.mxu0
  %v2953 = vadd.f32 0.0, %v2952
  %2954 = vmatmul.bf16.gmra.mxu0 %v2722
  %v2955 = vpop.f32.mrf.mxu0
  %v2956 = vadd.f32 0.0, %v2955
  %v2957 = vpop.f32.mrf.mxu0
  %v2958 = vadd.f32 0.0, %v2957
  %2959 = vmatmul.bf16.gmra.mxu0 %v2723
  %v2960 = vpop.f32.mrf.mxu0
  %v2961 = vadd.f32 0.0, %v2960
  %v2962 = vpop.f32.mrf.mxu0
  %v2963 = vadd.f32 0.0, %v2962
  %2964 = vmatmul.bf16.gmra.mxu0 %v2724
  %v2965 = vpop.f32.mrf.mxu0
  %v2966 = vadd.f32 0.0, %v2965
  %v2967 = vpop.f32.mrf.mxu0
  %v2968 = vadd.f32 0.0, %v2967
  %2969 = vmatmul.bf16.gmra.mxu0 %v2725
  %v2970 = vpop.f32.mrf.mxu0
  %v2971 = vadd.f32 0.0, %v2970
  %v2972 = vpop.f32.mrf.mxu0
  %v2973 = vadd.f32 0.0, %v2972
  %2974 = vmatmul.bf16.gmra.mxu0 %v2726
  %v2975 = vpop.f32.mrf.mxu0
  %v2976 = vadd.f32 0.0, %v2975
  %v2977 = vpop.f32.mrf.mxu0
  %v2978 = vadd.f32 0.0, %v2977
  %2979 = vmatmul.bf16.gmra.mxu0 %v2727
  %v2980 = vpop.f32.mrf.mxu0
  %v2981 = vadd.f32 0.0, %v2980
  %v2982 = vpop.f32.mrf.mxu0
  %v2983 = vadd.f32 0.0, %v2982
  %2984 = vdwg.mxu0
  %2985 = vmatpush.bf16.msra.mxu0 %v2819
  %2986 = vmatpush.bf16.msra.mxu0 %v2817
  %2987 = vmatpush.bf16.msra.mxu0 %v2815
  %2988 = vmatpush.bf16.msra.mxu0 %v2813
  %2989 = vmatpush.bf16.msra.mxu0 %v2811
  %2990 = vmatpush.bf16.msra.mxu0 %v2809
  %2991 = vmatpush.bf16.msra.mxu0 %v2807
  %2992 = vmatpush.bf16.msra.mxu0 %v2805
  %2993 = vmatmul.bf16.gmra.mxu0 %v2700
  %v2994 = vpop.f32.mrf.mxu0
  %v2995 = vadd.f32 0.0, %v2994
  %v2996 = vpop.f32.mrf.mxu0
  %v2997 = vadd.f32 0.0, %v2996
  %2998 = vmatmul.bf16.gmra.mxu0 %v2701
  %v2999 = vpop.f32.mrf.mxu0
  %v3000 = vadd.f32 0.0, %v2999
  %v3001 = vpop.f32.mrf.mxu0
  %v3002 = vadd.f32 0.0, %v3001
  %3003 = vmatmul.bf16.gmra.mxu0 %v2702
  %v3004 = vpop.f32.mrf.mxu0
  %v3005 = vadd.f32 0.0, %v3004
  %v3006 = vpop.f32.mrf.mxu0
  %v3007 = vadd.f32 0.0, %v3006
  %3008 = vmatmul.bf16.gmra.mxu0 %v2703
  %v3009 = vpop.f32.mrf.mxu0
  %v3010 = vadd.f32 0.0, %v3009
  %v3011 = vpop.f32.mrf.mxu0
  %v3012 = vadd.f32 0.0, %v3011
  %3013 = vmatmul.bf16.gmra.mxu0 %v2704
  %v3014 = vpop.f32.mrf.mxu0
  %v3015 = vadd.f32 0.0, %v3014
  %v3016 = vpop.f32.mrf.mxu0
  %v3017 = vadd.f32 0.0, %v3016
  %3018 = vmatmul.bf16.gmra.mxu0 %v2705
  %v3019 = vpop.f32.mrf.mxu0
  %v3020 = vadd.f32 0.0, %v3019
  %v3021 = vpop.f32.mrf.mxu0
  %v3022 = vadd.f32 0.0, %v3021
  %3023 = vmatmul.bf16.gmra.mxu0 %v2706
  %v3024 = vpop.f32.mrf.mxu0
  %v3025 = vadd.f32 0.0, %v3024
  %v3026 = vpop.f32.mrf.mxu0
  %v3027 = vadd.f32 0.0, %v3026
  %3028 = vmatmul.bf16.gmra.mxu0 %v2707
  %v3029 = vpop.f32.mrf.mxu0
  %v3030 = vadd.f32 0.0, %v3029
  %v3031 = vpop.f32.mrf.mxu0
  %v3032 = vadd.f32 0.0, %v3031
  %3033 = vmatmul.bf16.gmra.mxu0 %v2708
  %v3034 = vpop.f32.mrf.mxu0
  %v3035 = vadd.f32 0.0, %v3034
  %v3036 = vpop.f32.mrf.mxu0
  %v3037 = vadd.f32 0.0, %v3036
  %3038 = vmatmul.bf16.gmra.mxu0 %v2709
  %v3039 = vpop.f32.mrf.mxu0
  %v3040 = vadd.f32 0.0, %v3039
  %v3041 = vpop.f32.mrf.mxu0
  %v3042 = vadd.f32 0.0, %v3041
  %3043 = vmatmul.bf16.gmra.mxu0 %v2710
  %v3044 = vpop.f32.mrf.mxu0
  %v3045 = vadd.f32 0.0, %v3044
  %v3046 = vpop.f32.mrf.mxu0
  %v3047 = vadd.f32 0.0, %v3046
  %3048 = vmatmul.bf16.gmra.mxu0 %v2711
  %v3049 = vpop.f32.mrf.mxu0
  %v3050 = vadd.f32 0.0, %v3049
  %v3051 = vpop.f32.mrf.mxu0
  %v3052 = vadd.f32 0.0, %v3051
  %3053 = vmatmul.bf16.gmra.mxu0 %v2712
  %v3054 = vpop.f32.mrf.mxu0
  %v3055 = vadd.f32 0.0, %v3054
  %v3056 = vpop.f32.mrf.mxu0
  %v3057 = vadd.f32 0.0, %v3056
  %3058 = vmatmul.bf16.gmra.mxu0 %v2713
  %v3059 = vpop.f32.mrf.mxu0
  %v3060 = vadd.f32 0.0, %v3059
  %v3061 = vpop.f32.mrf.mxu0
  %v3062 = vadd.f32 0.0, %v3061
  %3063 = vmatmul.bf16.gmra.mxu0 %v2714
  %v3064 = vpop.f32.mrf.mxu0
  %v3065 = vadd.f32 0.0, %v3064
  %v3066 = vpop.f32.mrf.mxu0
  %v3067 = vadd.f32 0.0, %v3066
  %3068 = vmatmul.bf16.gmra.mxu0 %v2715
  %v3069 = vpop.f32.mrf.mxu0
  %v3070 = vadd.f32 0.0, %v3069
  %v3071 = vpop.f32.mrf.mxu0
  %v3072 = vadd.f32 0.0, %v3071
  %3073 = vmatmul.bf16.gmra.mxu0 %v2716
  %v3074 = vpop.f32.mrf.mxu0
  %v3075 = vadd.f32 0.0, %v3074
  %v3076 = vpop.f32.mrf.mxu0
  %v3077 = vadd.f32 0.0, %v3076
  %3078 = vmatmul.bf16.gmra.mxu0 %v2717
  %v3079 = vpop.f32.mrf.mxu0
  %v3080 = vadd.f32 0.0, %v3079
  %v3081 = vpop.f32.mrf.mxu0
  %v3082 = vadd.f32 0.0, %v3081
  %3083 = vmatmul.bf16.gmra.mxu0 %v2718
  %v3084 = vpop.f32.mrf.mxu0
  %v3085 = vadd.f32 0.0, %v3084
  %v3086 = vpop.f32.mrf.mxu0
  %v3087 = vadd.f32 0.0, %v3086
  %3088 = vmatmul.bf16.gmra.mxu0 %v2719
  %v3089 = vpop.f32.mrf.mxu0
  %v3090 = vadd.f32 0.0, %v3089
  %v3091 = vpop.f32.mrf.mxu0
  %v3092 = vadd.f32 0.0, %v3091
  %3093 = vmatmul.bf16.gmra.mxu0 %v2720
  %v3094 = vpop.f32.mrf.mxu0
  %v3095 = vadd.f32 0.0, %v3094
  %v3096 = vpop.f32.mrf.mxu0
  %v3097 = vadd.f32 0.0, %v3096
  %3098 = vmatmul.bf16.gmra.mxu0 %v2721
  %v3099 = vpop.f32.mrf.mxu0
  %v3100 = vadd.f32 0.0, %v3099
  %v3101 = vpop.f32.mrf.mxu0
  %v3102 = vadd.f32 0.0, %v3101
  %3103 = vmatmul.bf16.gmra.mxu0 %v2722
  %v3104 = vpop.f32.mrf.mxu0
  %v3105 = vadd.f32 0.0, %v3104
  %v3106 = vpop.f32.mrf.mxu0
  %v3107 = vadd.f32 0.0, %v3106
  %3108 = vmatmul.bf16.gmra.mxu0 %v2723
  %v3109 = vpop.f32.mrf.mxu0
  %v3110 = vadd.f32 0.0, %v3109
  %v3111 = vpop.f32.mrf.mxu0
  %v3112 = vadd.f32 0.0, %v3111
  %3113 = vmatmul.bf16.gmra.mxu0 %v2724
  %v3114 = vpop.f32.mrf.mxu0
  %v3115 = vadd.f32 0.0, %v3114
  %v3116 = vpop.f32.mrf.mxu0
  %v3117 = vadd.f32 0.0, %v3116
  %3118 = vmatmul.bf16.gmra.mxu0 %v2725
  %v3119 = vpop.f32.mrf.mxu0
  %v3120 = vadd.f32 0.0, %v3119
  %v3121 = vpop.f32.mrf.mxu0
  %v3122 = vadd.f32 0.0, %v3121
  %3123 = vmatmul.bf16.gmra.mxu0 %v2726
  %v3124 = vpop.f32.mrf.mxu0
  %v3125 = vadd.f32 0.0, %v3124
  %v3126 = vpop.f32.mrf.mxu0
  %v3127 = vadd.f32 0.0, %v3126
  %3128 = vmatmul.bf16.gmra.mxu0 %v2727
  %v3129 = vpop.f32.mrf.mxu0
  %v3130 = vadd.f32 0.0, %v3129
  %v3131 = vpop.f32.mrf.mxu0
  %v3132 = vadd.f32 0.0, %v3131
  %3133 = vdwg.mxu0
  %v3134 = vadd.f32 %v2403, %v2846
  %v3135 = vadd.f32 %v2404, %v2995
  %v3136 = vadd.f32 %v2405, %v2848
  %v3137 = vadd.f32 %v2406, %v2997
  %v3138 = vadd.f32 %v2407, %v2851
  %v3139 = vadd.f32 %v2408, %v3000
  %v3140 = vadd.f32 %v2409, %v2853
  %v3141 = vadd.f32 %v2410, %v3002
  %v3142 = vadd.f32 %v2411, %v2856
  %v3143 = vadd.f32 %v2412, %v3005
  %v3144 = vadd.f32 %v2413, %v2858
  %v3145 = vadd.f32 %v2414, %v3007
  %v3146 = vadd.f32 %v2415, %v2861
  %v3147 = vadd.f32 %v2416, %v3010
  %v3148 = vadd.f32 %v2417, %v2863
  %v3149 = vadd.f32 %v2418, %v3012
  %v3150 = vadd.f32 %v2419, %v2866
  %v3151 = vadd.f32 %v2420, %v3015
  %v3152 = vadd.f32 %v2421, %v2868
  %v3153 = vadd.f32 %v2422, %v3017
  %v3154 = vadd.f32 %v2423, %v2871
  %v3155 = vadd.f32 %v2424, %v3020
  %v3156 = vadd.f32 %v2425, %v2873
  %v3157 = vadd.f32 %v2426, %v3022
  %v3158 = vadd.f32 %v2427, %v2876
  %v3159 = vadd.f32 %v2428, %v3025
  %v3160 = vadd.f32 %v2429, %v2878
  %v3161 = vadd.f32 %v2430, %v3027
  %v3162 = vadd.f32 %v2431, %v2881
  %v3163 = vadd.f32 %v2432, %v3030
  %v3164 = vadd.f32 %v2433, %v2883
  %v3165 = vadd.f32 %v2434, %v3032
  %v3166 = vadd.f32 %v2435, %v2886
  %v3167 = vadd.f32 %v2436, %v3035
  %v3168 = vadd.f32 %v2437, %v2888
  %v3169 = vadd.f32 %v2438, %v3037
  %v3170 = vadd.f32 %v2439, %v2891
  %v3171 = vadd.f32 %v2440, %v3040
  %v3172 = vadd.f32 %v2441, %v2893
  %v3173 = vadd.f32 %v2442, %v3042
  %v3174 = vadd.f32 %v2443, %v2896
  %v3175 = vadd.f32 %v2444, %v3045
  %v3176 = vadd.f32 %v2445, %v2898
  %v3177 = vadd.f32 %v2446, %v3047
  %v3178 = vadd.f32 %v2447, %v2901
  %v3179 = vadd.f32 %v2448, %v3050
  %v3180 = vadd.f32 %v2449, %v2903
  %v3181 = vadd.f32 %v2450, %v3052
  %v3182 = vadd.f32 %v2451, %v2906
  %v3183 = vadd.f32 %v2452, %v3055
  %v3184 = vadd.f32 %v2453, %v2908
  %v3185 = vadd.f32 %v2454, %v3057
  %v3186 = vadd.f32 %v2455, %v2911
  %v3187 = vadd.f32 %v2456, %v3060
  %v3188 = vadd.f32 %v2457, %v2913
  %v3189 = vadd.f32 %v2458, %v3062
  %v3190 = vadd.f32 %v2459, %v2916
  %v3191 = vadd.f32 %v2460, %v3065
  %v3192 = vadd.f32 %v2461, %v2918
  %v3193 = vadd.f32 %v2462, %v3067
  %v3194 = vadd.f32 %v2463, %v2921
  %v3195 = vadd.f32 %v2464, %v3070
  %v3196 = vadd.f32 %v2465, %v2923
  %v3197 = vadd.f32 %v2466, %v3072
  %v3198 = vadd.f32 %v2467, %v2926
  %v3199 = vadd.f32 %v2468, %v3075
  %v3200 = vadd.f32 %v2469, %v2928
  %v3201 = vadd.f32 %v2470, %v3077
  %v3202 = vadd.f32 %v2471, %v2931
  %v3203 = vadd.f32 %v2472, %v3080
  %v3204 = vadd.f32 %v2473, %v2933
  %v3205 = vadd.f32 %v2474, %v3082
  %v3206 = vadd.f32 %v2475, %v2936
  %v3207 = vadd.f32 %v2476, %v3085
  %v3208 = vadd.f32 %v2477, %v2938
  %v3209 = vadd.f32 %v2478, %v3087
  %v3210 = vadd.f32 %v2479, %v2941
  %v3211 = vadd.f32 %v2480, %v3090
  %v3212 = vadd.f32 %v2481, %v2943
  %v3213 = vadd.f32 %v2482, %v3092
  %v3214 = vadd.f32 %v2483, %v2946
  %v3215 = vadd.f32 %v2484, %v3095
  %v3216 = vadd.f32 %v2485, %v2948
  %v3217 = vadd.f32 %v2486, %v3097
  %v3218 = vadd.f32 %v2487, %v2951
  %v3219 = vadd.f32 %v2488, %v3100
  %v3220 = vadd.f32 %v2489, %v2953
  %v3221 = vadd.f32 %v2490, %v3102
  %v3222 = vadd.f32 %v2491, %v2956
  %v3223 = vadd.f32 %v2492, %v3105
  %v3224 = vadd.f32 %v2493, %v2958
  %v3225 = vadd.f32 %v2494, %v3107
  %v3226 = vadd.f32 %v2495, %v2961
  %v3227 = vadd.f32 %v2496, %v3110
  %v3228 = vadd.f32 %v2497, %v2963
  %v3229 = vadd.f32 %v2498, %v3112
  %v3230 = vadd.f32 %v2499, %v2966
  %v3231 = vadd.f32 %v2500, %v3115
  %v3232 = vadd.f32 %v2501, %v2968
  %v3233 = vadd.f32 %v2502, %v3117
  %v3234 = vadd.f32 %v2503, %v2971
  %v3235 = vadd.f32 %v2504, %v3120
  %v3236 = vadd.f32 %v2505, %v2973
  %v3237 = vadd.f32 %v2506, %v3122
  %v3238 = vadd.f32 %v2507, %v2976
  %v3239 = vadd.f32 %v2508, %v3125
  %v3240 = vadd.f32 %v2509, %v2978
  %v3241 = vadd.f32 %v2510, %v3127
  %v3242 = vadd.f32 %v2511, %v2981
  %v3243 = vadd.f32 %v2512, %v3130
  %v3244 = vadd.f32 %v2513, %v2983
  %v3245 = vadd.f32 %v2514, %v3132
  %v3246 = vmax.f32 %v3134, %v3135
  %v3247 = vmax.f32 %v3136, %v3137
  %v3248 = vmax.f32 %v3138, %v3139
  %v3249 = vmax.f32 %v3140, %v3141
  %v3250 = vmax.f32 %v3142, %v3143
  %v3251 = vmax.f32 %v3144, %v3145
  %v3252 = vmax.f32 %v3146, %v3147
  %v3253 = vmax.f32 %v3148, %v3149
  %v3254 = vmax.f32 %v3150, %v3151
  %v3255 = vmax.f32 %v3152, %v3153
  %v3256 = vmax.f32 %v3154, %v3155
  %v3257 = vmax.f32 %v3156, %v3157
  %v3258 = vmax.f32 %v3158, %v3159
  %v3259 = vmax.f32 %v3160, %v3161
  %v3260 = vmax.f32 %v3162, %v3163
  %v3261 = vmax.f32 %v3164, %v3165
  %v3262 = vmax.f32 %v3166, %v3167
  %v3263 = vmax.f32 %v3168, %v3169
  %v3264 = vmax.f32 %v3170, %v3171
  %v3265 = vmax.f32 %v3172, %v3173
  %v3266 = vmax.f32 %v3174, %v3175
  %v3267 = vmax.f32 %v3176, %v3177
  %v3268 = vmax.f32 %v3178, %v3179
  %v3269 = vmax.f32 %v3180, %v3181
  %v3270 = vmax.f32 %v3182, %v3183
  %v3271 = vmax.f32 %v3184, %v3185
  %v3272 = vmax.f32 %v3186, %v3187
  %v3273 = vmax.f32 %v3188, %v3189
  %v3274 = vmax.f32 %v3190, %v3191
  %v3275 = vmax.f32 %v3192, %v3193
  %v3276 = vmax.f32 %v3194, %v3195
  %v3277 = vmax.f32 %v3196, %v3197
  %v3278 = vmax.f32 %v3198, %v3199
  %v3279 = vmax.f32 %v3200, %v3201
  %v3280 = vmax.f32 %v3202, %v3203
  %v3281 = vmax.f32 %v3204, %v3205
  %v3282 = vmax.f32 %v3206, %v3207
  %v3283 = vmax.f32 %v3208, %v3209
  %v3284 = vmax.f32 %v3210, %v3211
  %v3285 = vmax.f32 %v3212, %v3213
  %v3286 = vmax.f32 %v3214, %v3215
  %v3287 = vmax.f32 %v3216, %v3217
  %v3288 = vmax.f32 %v3218, %v3219
  %v3289 = vmax.f32 %v3220, %v3221
  %v3290 = vmax.f32 %v3222, %v3223
  %v3291 = vmax.f32 %v3224, %v3225
  %v3292 = vmax.f32 %v3226, %v3227
  %v3293 = vmax.f32 %v3228, %v3229
  %v3294 = vmax.f32 %v3230, %v3231
  %v3295 = vmax.f32 %v3232, %v3233
  %v3296 = vmax.f32 %v3234, %v3235
  %v3297 = vmax.f32 %v3236, %v3237
  %v3298 = vmax.f32 %v3238, %v3239
  %v3299 = vmax.f32 %v3240, %v3241
  %v3300 = vmax.f32 %v3242, %v3243
  %v3301 = vmax.f32 %v3244, %v3245
  %v3302 = vmax.f32 %v3246, %v3248
  %v3303 = vmax.f32 %v3247, %v3249
  %v3304 = vmax.f32 %v3250, %v3252
  %v3305 = vmax.f32 %v3251, %v3253
  %v3306 = vmax.f32 %v3254, %v3256
  %v3307 = vmax.f32 %v3255, %v3257
  %v3308 = vmax.f32 %v3258, %v3260
  %v3309 = vmax.f32 %v3259, %v3261
  %v3310 = vmax.f32 %v3262, %v3264
  %v3311 = vmax.f32 %v3263, %v3265
  %v3312 = vmax.f32 %v3266, %v3268
  %v3313 = vmax.f32 %v3267, %v3269
  %v3314 = vmax.f32 %v3270, %v3272
  %v3315 = vmax.f32 %v3271, %v3273
  %v3316 = vmax.f32 %v3274, %v3276
  %v3317 = vmax.f32 %v3275, %v3277
  %v3318 = vmax.f32 %v3278, %v3280
  %v3319 = vmax.f32 %v3279, %v3281
  %v3320 = vmax.f32 %v3282, %v3284
  %v3321 = vmax.f32 %v3283, %v3285
  %v3322 = vmax.f32 %v3286, %v3288
  %v3323 = vmax.f32 %v3287, %v3289
  %v3324 = vmax.f32 %v3290, %v3292
  %v3325 = vmax.f32 %v3291, %v3293
  %v3326 = vmax.f32 %v3294, %v3296
  %v3327 = vmax.f32 %v3295, %v3297
  %v3328 = vmax.f32 %v3298, %v3300
  %v3329 = vmax.f32 %v3299, %v3301
  %v3330 = vld [vmem:[%s2] sm:$0x1]
  %v3332 = vperm.slane %v3330, 0
  %v3334 = vadd.f32 %v3302, %v3332
  %v3335 = vadd.f32 %v3303, %v3332
  %v3336 = vadd.f32 %v3304, %v3332
  %v3337 = vadd.f32 %v3305, %v3332
  %v3338 = vadd.f32 %v3306, %v3332
  %v3339 = vadd.f32 %v3307, %v3332
  %v3340 = vadd.f32 %v3308, %v3332
  %v3341 = vadd.f32 %v3309, %v3332
  %v3342 = vadd.f32 %v3310, %v3332
  %v3343 = vadd.f32 %v3311, %v3332
  %v3344 = vadd.f32 %v3312, %v3332
  %v3345 = vadd.f32 %v3313, %v3332
  %v3346 = vadd.f32 %v3314, %v3332
  %v3347 = vadd.f32 %v3315, %v3332
  %v3348 = vadd.f32 %v3316, %v3332
  %v3349 = vadd.f32 %v3317, %v3332
  %v3350 = vadd.f32 %v3318, %v3332
  %v3351 = vadd.f32 %v3319, %v3332
  %v3352 = vadd.f32 %v3320, %v3332
  %v3353 = vadd.f32 %v3321, %v3332
  %v3354 = vadd.f32 %v3322, %v3332
  %v3355 = vadd.f32 %v3323, %v3332
  %v3356 = vadd.f32 %v3324, %v3332
  %v3357 = vadd.f32 %v3325, %v3332
  %v3358 = vadd.f32 %v3326, %v3332
  %v3359 = vadd.f32 %v3327, %v3332
  %v3360 = vadd.f32 %v3328, %v3332
  %v3361 = vadd.f32 %v3329, %v3332
  %v3362 = vmax.f32 %v3334, 0.0
  %v3363 = vmax.f32 %v3335, 0.0
  %v3364 = vmax.f32 %v3336, 0.0
  %v3365 = vmax.f32 %v3337, 0.0
  %v3366 = vmax.f32 %v3338, 0.0
  %v3367 = vmax.f32 %v3339, 0.0
  %v3368 = vmax.f32 %v3340, 0.0
  %v3369 = vmax.f32 %v3341, 0.0
  %v3370 = vmax.f32 %v3342, 0.0
  %v3371 = vmax.f32 %v3343, 0.0
  %v3372 = vmax.f32 %v3344, 0.0
  %v3373 = vmax.f32 %v3345, 0.0
  %v3374 = vmax.f32 %v3346, 0.0
  %v3375 = vmax.f32 %v3347, 0.0
  %v3376 = vmax.f32 %v3348, 0.0
  %v3377 = vmax.f32 %v3349, 0.0
  %v3378 = vmax.f32 %v3350, 0.0
  %v3379 = vmax.f32 %v3351, 0.0
  %v3380 = vmax.f32 %v3352, 0.0
  %v3381 = vmax.f32 %v3353, 0.0
  %v3382 = vmax.f32 %v3354, 0.0
  %v3383 = vmax.f32 %v3355, 0.0
  %v3384 = vmax.f32 %v3356, 0.0
  %v3385 = vmax.f32 %v3357, 0.0
  %v3386 = vmax.f32 %v3358, 0.0
  %v3387 = vmax.f32 %v3359, 0.0
  %v3388 = vmax.f32 %v3360, 0.0
  %v3389 = vmax.f32 %v3361, 0.0
  %v3390 = vpack.c.bf16 %v3362, %v3362
  %v3391 = vpack.c.bf16 %v3363, %v3363
  %v3392 = vpack.c.bf16 %v3364, %v3364
  %v3393 = vpack.c.bf16 %v3365, %v3365
  %v3394 = vpack.c.bf16 %v3366, %v3366
  %v3395 = vpack.c.bf16 %v3367, %v3367
  %v3396 = vpack.c.bf16 %v3368, %v3368
  %v3397 = vpack.c.bf16 %v3369, %v3369
  %v3398 = vpack.c.bf16 %v3370, %v3370
  %v3399 = vpack.c.bf16 %v3371, %v3371
  %v3400 = vpack.c.bf16 %v3372, %v3372
  %v3401 = vpack.c.bf16 %v3373, %v3373
  %v3402 = vpack.c.bf16 %v3374, %v3374
  %v3403 = vpack.c.bf16 %v3375, %v3375
  %v3404 = vpack.c.bf16 %v3376, %v3376
  %v3405 = vpack.c.bf16 %v3377, %v3377
  %v3406 = vpack.c.bf16 %v3378, %v3378
  %v3407 = vpack.c.bf16 %v3379, %v3379
  %v3408 = vpack.c.bf16 %v3380, %v3380
  %v3409 = vpack.c.bf16 %v3381, %v3381
  %v3410 = vpack.c.bf16 %v3382, %v3382
  %v3411 = vpack.c.bf16 %v3383, %v3383
  %v3412 = vpack.c.bf16 %v3384, %v3384
  %v3413 = vpack.c.bf16 %v3385, %v3385
  %v3414 = vpack.c.bf16 %v3386, %v3386
  %v3415 = vpack.c.bf16 %v3387, %v3387
  %v3416 = vpack.c.bf16 %v3388, %v3388
  %v3417 = vpack.c.bf16 %v3389, %v3389
  %3418 = vst [vmem:[#allocation2] sm:$0xf] %v3390
  %3419 = vst [vmem:[#allocation2 + $0x4] sm:$0xf] %v3391
  %3420 = vst [vmem:[#allocation2 + $0x8] sm:$0xf] %v3392
  %3421 = vst [vmem:[#allocation2 + $0xc] sm:$0xf] %v3393
  %3422 = vst [vmem:[#allocation2 + $0x10] sm:$0xf] %v3394
  %3423 = vst [vmem:[#allocation2 + $0x14] sm:$0xf] %v3395
  %3424 = vst [vmem:[#allocation2 + $0x18] sm:$0xf] %v3396
  %3425 = vst [vmem:[#allocation2 + $0x1c] sm:$0xf] %v3397
  %3426 = vst [vmem:[#allocation2 + $0x20] sm:$0xf] %v3398
  %3427 = vst [vmem:[#allocation2 + $0x24] sm:$0xf] %v3399
  %3428 = vst [vmem:[#allocation2 + $0x28] sm:$0xf] %v3400
  %3429 = vst [vmem:[#allocation2 + $0x2c] sm:$0xf] %v3401
  %3430 = vst [vmem:[#allocation2 + $0x30] sm:$0xf] %v3402
  %3431 = vst [vmem:[#allocation2 + $0x34] sm:$0xf] %v3403
  %3432 = vst [vmem:[#allocation2 + $0x38] sm:$0xf] %v3404
  %3433 = vst [vmem:[#allocation2 + $0x3c] sm:$0xf] %v3405
  %3434 = vst [vmem:[#allocation2 + $0x40] sm:$0xf] %v3406
  %3435 = vst [vmem:[#allocation2 + $0x44] sm:$0xf] %v3407
  %3436 = vst [vmem:[#allocation2 + $0x48] sm:$0xf] %v3408
  %3437 = vst [vmem:[#allocation2 + $0x4c] sm:$0xf] %v3409
  %3438 = vst [vmem:[#allocation2 + $0x50] sm:$0xf] %v3410
  %3439 = vst [vmem:[#allocation2 + $0x54] sm:$0xf] %v3411
  %3440 = vst [vmem:[#allocation2 + $0x58] sm:$0xf] %v3412
  %3441 = vst [vmem:[#allocation2 + $0x5c] sm:$0xf] %v3413
  %3442 = vst [vmem:[#allocation2 + $0x60] sm:$0xf] %v3414
  %3443 = vst [vmem:[#allocation2 + $0x64] sm:$0xf] %v3415
  %3444 = vst [vmem:[#allocation2 + $0x68] sm:$0xf] %v3416
  %3445 = vst [vmem:[#allocation2 + $0x6c] sm:$0xf] %v3417
  %v3446 = vld [vmem:[#allocation2] sm:$0xf]
  %v3447 = vld [vmem:[#allocation2 + $0x4] sm:$0xf]
  %v3448 = vld [vmem:[#allocation2 + $0x8] sm:$0xf]
  %v3449 = vld [vmem:[#allocation2 + $0xc] sm:$0xf]
  %v3450 = vld [vmem:[#allocation2 + $0x10] sm:$0xf]
  %v3451 = vld [vmem:[#allocation2 + $0x14] sm:$0xf]
  %v3452 = vld [vmem:[#allocation2 + $0x18] sm:$0xf]
  %v3453 = vld [vmem:[#allocation2 + $0x1c] sm:$0xf]
  %v3454 = vld [vmem:[#allocation2 + $0x20] sm:$0xf]
  %v3455 = vld [vmem:[#allocation2 + $0x24] sm:$0xf]
  %v3456 = vld [vmem:[#allocation2 + $0x28] sm:$0xf]
  %v3457 = vld [vmem:[#allocation2 + $0x2c] sm:$0xf]
  %v3458 = vld [vmem:[#allocation2 + $0x30] sm:$0xf]
  %v3459 = vld [vmem:[#allocation2 + $0x34] sm:$0xf]
  %v3460 = vld [vmem:[#allocation2 + $0x38] sm:$0xf]
  %v3461 = vld [vmem:[#allocation2 + $0x3c] sm:$0xf]
  %v3462 = vld [vmem:[#allocation2 + $0x40] sm:$0xf]
  %v3463 = vld [vmem:[#allocation2 + $0x44] sm:$0xf]
  %v3464 = vld [vmem:[#allocation2 + $0x48] sm:$0xf]
  %v3465 = vld [vmem:[#allocation2 + $0x4c] sm:$0xf]
  %v3466 = vld [vmem:[%s3] sm:$0xff]
  %v3467 = vld [vmem:[%s3 + $0x8] sm:$0xff]
  %v3468 = vld [vmem:[%s3 + $0x10] sm:$0xff]
  %v3469 = vld [vmem:[%s3 + $0x18] sm:$0xff]
  %v3470 = vld [vmem:[%s3 + $0x20] sm:$0xff]
  %v3471 = vld [vmem:[%s3 + $0x28] sm:$0xff]
  %v3472 = vld [vmem:[%s3 + $0x30] sm:$0xff]
  %v3473 = vld [vmem:[%s3 + $0x38] sm:$0xff]
  %v3474 = vld [vmem:[%s3 + $0x40] sm:$0xff]
  %v3475 = vld [vmem:[%s3 + $0x48] sm:$0xff]
  %v3476 = vld [vmem:[%s3 + $0x50] sm:$0xff]
  %v3477 = vld [vmem:[%s3 + $0x58] sm:$0xff]
  %v3478 = vld [vmem:[%s3 + $0x60] sm:$0xff]
  %v3479 = vld [vmem:[%s3 + $0x68] sm:$0xff]
  %v3480 = vld [vmem:[%s3 + $0x70] sm:$0xff]
  %v3481 = vld [vmem:[%s3 + $0x78] sm:$0xff]
  %v3482 = vld [vmem:[#allocation2 + $0x50] sm:$0xf]
  %v3483 = vld [vmem:[#allocation2 + $0x54] sm:$0xf]
  %s3484 = scalar_lea.vmem %s3, 128
  %v3485 = vld [vmem:[%s3484] sm:$0xff]
  %v3486 = vld [vmem:[%s3484 + $0x8] sm:$0xff]
  %v3487 = vld [vmem:[%s3484 + $0x10] sm:$0xff]
  %v3488 = vld [vmem:[%s3484 + $0x18] sm:$0xff]
  %v3489 = vld [vmem:[%s3484 + $0x20] sm:$0xff]
  %v3490 = vld [vmem:[%s3484 + $0x28] sm:$0xff]
  %v3491 = vld [vmem:[%s3484 + $0x30] sm:$0xff]
  %v3492 = vld [vmem:[%s3484 + $0x38] sm:$0xff]
  %v3493 = vld [vmem:[%s3484 + $0x40] sm:$0xff]
  %v3494 = vld [vmem:[%s3484 + $0x48] sm:$0xff]
  %v3495 = vld [vmem:[%s3484 + $0x50] sm:$0xff]
  %v3496 = vld [vmem:[%s3484 + $0x58] sm:$0xff]
  %v3497 = vld [vmem:[%s3484 + $0x60] sm:$0xff]
  %v3498 = vld [vmem:[%s3484 + $0x68] sm:$0xff]
  %v3499 = vld [vmem:[%s3484 + $0x70] sm:$0xff]
  %v3500 = vld [vmem:[%s3484 + $0x78] sm:$0xff]
  %v3521 = vunpack.c.l.b16 %v3448
  %v3522 = vunpack.c.l.b16 %v3449
  %v3523 = vunpack.c.l.b16 %v3450
  %v3524 = vunpack.c.l.b16 %v3451
  %v3525 = vunpack.c.l.b16 %v3452
  %v3526 = vunpack.c.l.b16 %v3453
  %v3527 = vunpack.c.l.b16 %v3454
  %v3528 = vunpack.c.l.b16 %v3455
  %v3529 = vunpack.c.l.b16 %v3456
  %v3530 = vunpack.c.l.b16 %v3457
  %v3531 = vunpack.c.l.b16 %v3458
  %v3532 = vunpack.c.l.b16 %v3459
  %v3533 = vunpack.c.l.b16 %v3460
  %v3534 = vunpack.c.l.b16 %v3461
  %v3535 = vunpack.c.l.b16 %v3462
  %v3536 = vunpack.c.l.b16 %v3463
  %v3537 = vunpack.c.l.b16 %v3464
  %v3538 = vunpack.c.l.b16 %v3465
  %v3539 = vunpack.c.l.b16 %v3482
  %v3540 = vunpack.c.l.b16 %v3483
  %v3541 = vpack.c.b16 %v3522, %v3521
  %v3542 = vpack.c.b16 %v3524, %v3523
  %v3543 = vpack.c.b16 %v3526, %v3525
  %v3544 = vpack.c.b16 %v3528, %v3527
  %v3545 = vpack.c.b16 %v3530, %v3529
  %v3546 = vpack.c.b16 %v3532, %v3531
  %v3547 = vpack.c.b16 %v3534, %v3533
  %v3548 = vpack.c.b16 %v3536, %v3535
  %v3549 = vpack.c.b16 %v3538, %v3537
  %v3550 = vpack.c.b16 %v3540, %v3539
  %v3577 = vunpack.c.l.b16 %v3485
  %v3578 = vunpack.c.h.b16 %v3485
  %v3579 = vunpack.c.l.b16 %v3486
  %v3580 = vunpack.c.h.b16 %v3486
  %v3581 = vunpack.c.l.b16 %v3487
  %v3582 = vunpack.c.h.b16 %v3487
  %v3583 = vunpack.c.l.b16 %v3488
  %v3584 = vunpack.c.h.b16 %v3488
  %v3585 = vunpack.c.l.b16 %v3489
  %v3586 = vunpack.c.h.b16 %v3489
  %v3587 = vunpack.c.l.b16 %v3490
  %v3588 = vunpack.c.h.b16 %v3490
  %v3589 = vunpack.c.l.b16 %v3491
  %v3590 = vunpack.c.h.b16 %v3491
  %v3591 = vunpack.c.l.b16 %v3492
  %v3592 = vunpack.c.h.b16 %v3492
  %v3593 = vunpack.c.l.b16 %v3493
  %v3594 = vunpack.c.h.b16 %v3493
  %v3595 = vunpack.c.l.b16 %v3494
  %v3596 = vunpack.c.h.b16 %v3494
  %v3597 = vunpack.c.l.b16 %v3495
  %v3598 = vunpack.c.h.b16 %v3495
  %v3599 = vunpack.c.l.b16 %v3496
  %v3600 = vunpack.c.h.b16 %v3496
  %v3601 = vunpack.c.l.b16 %v3497
  %v3602 = vunpack.c.h.b16 %v3497
  %v3603 = vunpack.c.l.b16 %v3498
  %v3604 = vunpack.c.h.b16 %v3498
  %v3605 = vunpack.c.l.b16 %v3499
  %v3606 = vunpack.c.h.b16 %v3499
  %v3607 = vunpack.c.l.b16 %v3500
  %v3608 = vunpack.c.h.b16 %v3500
  %v3609 = vpack.c.b16 %v3579, %v3577
  %v3610 = vpack.c.b16 %v3580, %v3578
  %v3611 = vpack.c.b16 %v3583, %v3581
  %v3612 = vpack.c.b16 %v3584, %v3582
  %v3613 = vpack.c.b16 %v3587, %v3585
  %v3614 = vpack.c.b16 %v3588, %v3586
  %v3615 = vpack.c.b16 %v3591, %v3589
  %v3616 = vpack.c.b16 %v3592, %v3590
  %v3617 = vpack.c.b16 %v3595, %v3593
  %v3618 = vpack.c.b16 %v3596, %v3594
  %v3619 = vpack.c.b16 %v3599, %v3597
  %v3620 = vpack.c.b16 %v3600, %v3598
  %v3621 = vpack.c.b16 %v3603, %v3601
  %v3622 = vpack.c.b16 %v3604, %v3602
  %v3623 = vpack.c.b16 %v3607, %v3605
  %v3624 = vpack.c.b16 %v3608, %v3606
  %3641 = vmatpush.bf16.msra.mxu0 %v3623
  %3642 = vmatpush.bf16.msra.mxu0 %v3621
  %3643 = vmatpush.bf16.msra.mxu0 %v3619
  %3644 = vmatpush.bf16.msra.mxu0 %v3617
  %3645 = vmatpush.bf16.msra.mxu0 %v3615
  %3646 = vmatpush.bf16.msra.mxu0 %v3613
  %3647 = vmatpush.bf16.msra.mxu0 %v3611
  %3648 = vmatpush.bf16.msra.mxu0 %v3609
  %3649 = vmatmul.bf16.gmra.mxu0 %v3541
  %v3650 = vpop.f32.mrf.mxu0
  %v3651 = vadd.f32 0.0, %v3650
  %v3652 = vpop.f32.mrf.mxu0
  %v3653 = vadd.f32 0.0, %v3652
  %3654 = vmatmul.bf16.gmra.mxu0 %v3542
  %v3655 = vpop.f32.mrf.mxu0
  %v3656 = vadd.f32 0.0, %v3655
  %v3657 = vpop.f32.mrf.mxu0
  %v3658 = vadd.f32 0.0, %v3657
  %3659 = vmatmul.bf16.gmra.mxu0 %v3543
  %v3660 = vpop.f32.mrf.mxu0
  %v3661 = vadd.f32 0.0, %v3660
  %v3662 = vpop.f32.mrf.mxu0
  %v3663 = vadd.f32 0.0, %v3662
  %3664 = vmatmul.bf16.gmra.mxu0 %v3544
  %v3665 = vpop.f32.mrf.mxu0
  %v3666 = vadd.f32 0.0, %v3665
  %v3667 = vpop.f32.mrf.mxu0
  %v3668 = vadd.f32 0.0, %v3667
  %3669 = vmatmul.bf16.gmra.mxu0 %v3545
  %v3670 = vpop.f32.mrf.mxu0
  %v3671 = vadd.f32 0.0, %v3670
  %v3672 = vpop.f32.mrf.mxu0
  %v3673 = vadd.f32 0.0, %v3672
  %3674 = vmatmul.bf16.gmra.mxu0 %v3546
  %v3675 = vpop.f32.mrf.mxu0
  %v3676 = vadd.f32 0.0, %v3675
  %v3677 = vpop.f32.mrf.mxu0
  %v3678 = vadd.f32 0.0, %v3677
  %3679 = vmatmul.bf16.gmra.mxu0 %v3547
  %v3680 = vpop.f32.mrf.mxu0
  %v3681 = vadd.f32 0.0, %v3680
  %v3682 = vpop.f32.mrf.mxu0
  %v3683 = vadd.f32 0.0, %v3682
  %3684 = vmatmul.bf16.gmra.mxu0 %v3548
  %v3685 = vpop.f32.mrf.mxu0
  %v3686 = vadd.f32 0.0, %v3685
  %v3687 = vpop.f32.mrf.mxu0
  %v3688 = vadd.f32 0.0, %v3687
  %3689 = vmatmul.bf16.gmra.mxu0 %v3549
  %v3690 = vpop.f32.mrf.mxu0
  %v3691 = vadd.f32 0.0, %v3690
  %v3692 = vpop.f32.mrf.mxu0
  %v3693 = vadd.f32 0.0, %v3692
  %3694 = vmatmul.bf16.gmra.mxu0 %v3550
  %v3695 = vpop.f32.mrf.mxu0
  %v3696 = vadd.f32 0.0, %v3695
  %v3697 = vpop.f32.mrf.mxu0
  %v3698 = vadd.f32 0.0, %v3697
  %3699 = vdwg.mxu0
  %3700 = vmatpush.bf16.msra.mxu0 %v3624
  %3701 = vmatpush.bf16.msra.mxu0 %v3622
  %3702 = vmatpush.bf16.msra.mxu0 %v3620
  %3703 = vmatpush.bf16.msra.mxu0 %v3618
  %3704 = vmatpush.bf16.msra.mxu0 %v3616
  %3705 = vmatpush.bf16.msra.mxu0 %v3614
  %3706 = vmatpush.bf16.msra.mxu0 %v3612
  %3707 = vmatpush.bf16.msra.mxu0 %v3610
  %3708 = vmatmul.bf16.gmra.mxu0 %v3541
  %v3709 = vpop.f32.mrf.mxu0
  %v3710 = vadd.f32 0.0, %v3709
  %v3711 = vpop.f32.mrf.mxu0
  %v3712 = vadd.f32 0.0, %v3711
  %3713 = vmatmul.bf16.gmra.mxu0 %v3542
  %v3714 = vpop.f32.mrf.mxu0
  %v3715 = vadd.f32 0.0, %v3714
  %v3716 = vpop.f32.mrf.mxu0
  %v3717 = vadd.f32 0.0, %v3716
  %3718 = vmatmul.bf16.gmra.mxu0 %v3543
  %v3719 = vpop.f32.mrf.mxu0
  %v3720 = vadd.f32 0.0, %v3719
  %v3721 = vpop.f32.mrf.mxu0
  %v3722 = vadd.f32 0.0, %v3721
  %3723 = vmatmul.bf16.gmra.mxu0 %v3544
  %v3724 = vpop.f32.mrf.mxu0
  %v3725 = vadd.f32 0.0, %v3724
  %v3726 = vpop.f32.mrf.mxu0
  %v3727 = vadd.f32 0.0, %v3726
  %3728 = vmatmul.bf16.gmra.mxu0 %v3545
  %v3729 = vpop.f32.mrf.mxu0
  %v3730 = vadd.f32 0.0, %v3729
  %v3731 = vpop.f32.mrf.mxu0
  %v3732 = vadd.f32 0.0, %v3731
  %3733 = vmatmul.bf16.gmra.mxu0 %v3546
  %v3734 = vpop.f32.mrf.mxu0
  %v3735 = vadd.f32 0.0, %v3734
  %v3736 = vpop.f32.mrf.mxu0
  %v3737 = vadd.f32 0.0, %v3736
  %3738 = vmatmul.bf16.gmra.mxu0 %v3547
  %v3739 = vpop.f32.mrf.mxu0
  %v3740 = vadd.f32 0.0, %v3739
  %v3741 = vpop.f32.mrf.mxu0
  %v3742 = vadd.f32 0.0, %v3741
  %3743 = vmatmul.bf16.gmra.mxu0 %v3548
  %v3744 = vpop.f32.mrf.mxu0
  %v3745 = vadd.f32 0.0, %v3744
  %v3746 = vpop.f32.mrf.mxu0
  %v3747 = vadd.f32 0.0, %v3746
  %3748 = vmatmul.bf16.gmra.mxu0 %v3549
  %v3749 = vpop.f32.mrf.mxu0
  %v3750 = vadd.f32 0.0, %v3749
  %v3751 = vpop.f32.mrf.mxu0
  %v3752 = vadd.f32 0.0, %v3751
  %3753 = vmatmul.bf16.gmra.mxu0 %v3550
  %v3754 = vpop.f32.mrf.mxu0
  %v3755 = vadd.f32 0.0, %v3754
  %v3756 = vpop.f32.mrf.mxu0
  %v3757 = vadd.f32 0.0, %v3756
  %3758 = vdwg.mxu0
  %v3761 = vunpack.c.l.b16 %v3446
  %v3762 = vunpack.c.l.b16 %v3447
  %v3763 = vpack.c.b16 %v3762, %v3761
  %v3781 = vunpack.c.l.b16 %v3466
  %v3782 = vunpack.c.h.b16 %v3466
  %v3783 = vunpack.c.l.b16 %v3467
  %v3784 = vunpack.c.h.b16 %v3467
  %v3785 = vunpack.c.l.b16 %v3468
  %v3786 = vunpack.c.h.b16 %v3468
  %v3787 = vunpack.c.l.b16 %v3469
  %v3788 = vunpack.c.h.b16 %v3469
  %v3789 = vunpack.c.l.b16 %v3470
  %v3790 = vunpack.c.h.b16 %v3470
  %v3791 = vunpack.c.l.b16 %v3471
  %v3792 = vunpack.c.h.b16 %v3471
  %v3793 = vunpack.c.l.b16 %v3472
  %v3794 = vunpack.c.h.b16 %v3472
  %v3795 = vunpack.c.l.b16 %v3473
  %v3796 = vunpack.c.h.b16 %v3473
  %v3797 = vunpack.c.l.b16 %v3474
  %v3798 = vunpack.c.h.b16 %v3474
  %v3799 = vunpack.c.l.b16 %v3475
  %v3800 = vunpack.c.h.b16 %v3475
  %v3801 = vunpack.c.l.b16 %v3476
  %v3802 = vunpack.c.h.b16 %v3476
  %v3803 = vunpack.c.l.b16 %v3477
  %v3804 = vunpack.c.h.b16 %v3477
  %v3805 = vunpack.c.l.b16 %v3478
  %v3806 = vunpack.c.h.b16 %v3478
  %v3807 = vunpack.c.l.b16 %v3479
  %v3808 = vunpack.c.h.b16 %v3479
  %v3809 = vunpack.c.l.b16 %v3480
  %v3810 = vunpack.c.h.b16 %v3480
  %v3811 = vunpack.c.l.b16 %v3481
  %v3812 = vunpack.c.h.b16 %v3481
  %v3813 = vpack.c.b16 %v3783, %v3781
  %v3814 = vpack.c.b16 %v3784, %v3782
  %v3815 = vpack.c.b16 %v3787, %v3785
  %v3816 = vpack.c.b16 %v3788, %v3786
  %v3817 = vpack.c.b16 %v3791, %v3789
  %v3818 = vpack.c.b16 %v3792, %v3790
  %v3819 = vpack.c.b16 %v3795, %v3793
  %v3820 = vpack.c.b16 %v3796, %v3794
  %v3821 = vpack.c.b16 %v3799, %v3797
  %v3822 = vpack.c.b16 %v3800, %v3798
  %v3823 = vpack.c.b16 %v3803, %v3801
  %v3824 = vpack.c.b16 %v3804, %v3802
  %v3825 = vpack.c.b16 %v3807, %v3805
  %v3826 = vpack.c.b16 %v3808, %v3806
  %v3827 = vpack.c.b16 %v3811, %v3809
  %v3828 = vpack.c.b16 %v3812, %v3810
  %3845 = vmatpush.bf16.msra.mxu0 %v3827
  %3846 = vmatpush.bf16.msra.mxu0 %v3825
  %3847 = vmatpush.bf16.msra.mxu0 %v3823
  %3848 = vmatpush.bf16.msra.mxu0 %v3821
  %3849 = vmatpush.bf16.msra.mxu0 %v3819
  %3850 = vmatpush.bf16.msra.mxu0 %v3817
  %3851 = vmatpush.bf16.msra.mxu0 %v3815
  %3852 = vmatpush.bf16.msra.mxu0 %v3813
  %3853 = vmatmul.bf16.gmra.mxu0 %v3763
  %v3854 = vpop.f32.mrf.mxu0
  %v3855 = vadd.f32 %v3651, %v3854
  %v3856 = vpop.f32.mrf.mxu0
  %v3857 = vadd.f32 %v3653, %v3856
  %3858 = vmatmul.bf16.gmra.mxu0 %v3541
  %v3859 = vpop.f32.mrf.mxu0
  %v3860 = vadd.f32 %v3656, %v3859
  %v3861 = vpop.f32.mrf.mxu0
  %v3862 = vadd.f32 %v3658, %v3861
  %3863 = vmatmul.bf16.gmra.mxu0 %v3542
  %v3864 = vpop.f32.mrf.mxu0
  %v3865 = vadd.f32 %v3661, %v3864
  %v3866 = vpop.f32.mrf.mxu0
  %v3867 = vadd.f32 %v3663, %v3866
  %3868 = vmatmul.bf16.gmra.mxu0 %v3543
  %v3869 = vpop.f32.mrf.mxu0
  %v3870 = vadd.f32 %v3666, %v3869
  %v3871 = vpop.f32.mrf.mxu0
  %v3872 = vadd.f32 %v3668, %v3871
  %3873 = vmatmul.bf16.gmra.mxu0 %v3544
  %v3874 = vpop.f32.mrf.mxu0
  %v3875 = vadd.f32 %v3671, %v3874
  %v3876 = vpop.f32.mrf.mxu0
  %v3877 = vadd.f32 %v3673, %v3876
  %3878 = vmatmul.bf16.gmra.mxu0 %v3545
  %v3879 = vpop.f32.mrf.mxu0
  %v3880 = vadd.f32 %v3676, %v3879
  %v3881 = vpop.f32.mrf.mxu0
  %v3882 = vadd.f32 %v3678, %v3881
  %3883 = vmatmul.bf16.gmra.mxu0 %v3546
  %v3884 = vpop.f32.mrf.mxu0
  %v3885 = vadd.f32 %v3681, %v3884
  %v3886 = vpop.f32.mrf.mxu0
  %v3887 = vadd.f32 %v3683, %v3886
  %3888 = vmatmul.bf16.gmra.mxu0 %v3547
  %v3889 = vpop.f32.mrf.mxu0
  %v3890 = vadd.f32 %v3686, %v3889
  %v3891 = vpop.f32.mrf.mxu0
  %v3892 = vadd.f32 %v3688, %v3891
  %3893 = vmatmul.bf16.gmra.mxu0 %v3548
  %v3894 = vpop.f32.mrf.mxu0
  %v3895 = vadd.f32 %v3691, %v3894
  %v3896 = vpop.f32.mrf.mxu0
  %v3897 = vadd.f32 %v3693, %v3896
  %3898 = vmatmul.bf16.gmra.mxu0 %v3549
  %v3899 = vpop.f32.mrf.mxu0
  %v3900 = vadd.f32 %v3696, %v3899
  %v3901 = vpop.f32.mrf.mxu0
  %v3902 = vadd.f32 %v3698, %v3901
  %3903 = vdwg.mxu0
  %3904 = vmatpush.bf16.msra.mxu0 %v3828
  %3905 = vmatpush.bf16.msra.mxu0 %v3826
  %3906 = vmatpush.bf16.msra.mxu0 %v3824
  %3907 = vmatpush.bf16.msra.mxu0 %v3822
  %3908 = vmatpush.bf16.msra.mxu0 %v3820
  %3909 = vmatpush.bf16.msra.mxu0 %v3818
  %3910 = vmatpush.bf16.msra.mxu0 %v3816
  %3911 = vmatpush.bf16.msra.mxu0 %v3814
  %3912 = vmatmul.bf16.gmra.mxu0 %v3763
  %v3913 = vpop.f32.mrf.mxu0
  %v3914 = vadd.f32 %v3710, %v3913
  %v3915 = vpop.f32.mrf.mxu0
  %v3916 = vadd.f32 %v3712, %v3915
  %3917 = vmatmul.bf16.gmra.mxu0 %v3541
  %v3918 = vpop.f32.mrf.mxu0
  %v3919 = vadd.f32 %v3715, %v3918
  %v3920 = vpop.f32.mrf.mxu0
  %v3921 = vadd.f32 %v3717, %v3920
  %3922 = vmatmul.bf16.gmra.mxu0 %v3542
  %v3923 = vpop.f32.mrf.mxu0
  %v3924 = vadd.f32 %v3720, %v3923
  %v3925 = vpop.f32.mrf.mxu0
  %v3926 = vadd.f32 %v3722, %v3925
  %3927 = vmatmul.bf16.gmra.mxu0 %v3543
  %v3928 = vpop.f32.mrf.mxu0
  %v3929 = vadd.f32 %v3725, %v3928
  %v3930 = vpop.f32.mrf.mxu0
  %v3931 = vadd.f32 %v3727, %v3930
  %3932 = vmatmul.bf16.gmra.mxu0 %v3544
  %v3933 = vpop.f32.mrf.mxu0
  %v3934 = vadd.f32 %v3730, %v3933
  %v3935 = vpop.f32.mrf.mxu0
  %v3936 = vadd.f32 %v3732, %v3935
  %3937 = vmatmul.bf16.gmra.mxu0 %v3545
  %v3938 = vpop.f32.mrf.mxu0
  %v3939 = vadd.f32 %v3735, %v3938
  %v3940 = vpop.f32.mrf.mxu0
  %v3941 = vadd.f32 %v3737, %v3940
  %3942 = vmatmul.bf16.gmra.mxu0 %v3546
  %v3943 = vpop.f32.mrf.mxu0
  %v3944 = vadd.f32 %v3740, %v3943
  %v3945 = vpop.f32.mrf.mxu0
  %v3946 = vadd.f32 %v3742, %v3945
  %3947 = vmatmul.bf16.gmra.mxu0 %v3547
  %v3948 = vpop.f32.mrf.mxu0
  %v3949 = vadd.f32 %v3745, %v3948
  %v3950 = vpop.f32.mrf.mxu0
  %v3951 = vadd.f32 %v3747, %v3950
  %3952 = vmatmul.bf16.gmra.mxu0 %v3548
  %v3953 = vpop.f32.mrf.mxu0
  %v3954 = vadd.f32 %v3750, %v3953
  %v3955 = vpop.f32.mrf.mxu0
  %v3956 = vadd.f32 %v3752, %v3955
  %3957 = vmatmul.bf16.gmra.mxu0 %v3549
  %v3958 = vpop.f32.mrf.mxu0
  %v3959 = vadd.f32 %v3755, %v3958
  %v3960 = vpop.f32.mrf.mxu0
  %v3961 = vadd.f32 %v3757, %v3960
  %3962 = vdwg.mxu0
  %v3963 = vld [vmem:[#allocation2 + $0x10] sm:$0xf]
  %v3964 = vld [vmem:[#allocation2 + $0x14] sm:$0xf]
  %v3965 = vld [vmem:[#allocation2 + $0x18] sm:$0xf]
  %v3966 = vld [vmem:[#allocation2 + $0x1c] sm:$0xf]
  %v3967 = vld [vmem:[#allocation2 + $0x20] sm:$0xf]
  %v3968 = vld [vmem:[#allocation2 + $0x24] sm:$0xf]
  %v3969 = vld [vmem:[#allocation2 + $0x28] sm:$0xf]
  %v3970 = vld [vmem:[#allocation2 + $0x2c] sm:$0xf]
  %v3971 = vld [vmem:[#allocation2 + $0x30] sm:$0xf]
  %v3972 = vld [vmem:[#allocation2 + $0x34] sm:$0xf]
  %v3973 = vld [vmem:[#allocation2 + $0x38] sm:$0xf]
  %v3974 = vld [vmem:[#allocation2 + $0x3c] sm:$0xf]
  %v3975 = vld [vmem:[#allocation2 + $0x40] sm:$0xf]
  %v3976 = vld [vmem:[#allocation2 + $0x44] sm:$0xf]
  %v3977 = vld [vmem:[#allocation2 + $0x48] sm:$0xf]
  %v3978 = vld [vmem:[#allocation2 + $0x4c] sm:$0xf]
  %v3979 = vld [vmem:[#allocation2 + $0x50] sm:$0xf]
  %v3980 = vld [vmem:[#allocation2 + $0x54] sm:$0xf]
  %v3981 = vld [vmem:[#allocation2 + $0x58] sm:$0xf]
  %v3982 = vld [vmem:[#allocation2 + $0x5c] sm:$0xf]
  %s3983 = scalar_lea.vmem %s3, 256
  %v3984 = vld [vmem:[%s3983] sm:$0xff]
  %v3985 = vld [vmem:[%s3983 + $0x8] sm:$0xff]
  %v3986 = vld [vmem:[%s3983 + $0x10] sm:$0xff]
  %v3987 = vld [vmem:[%s3983 + $0x18] sm:$0xff]
  %v3988 = vld [vmem:[%s3983 + $0x20] sm:$0xff]
  %v3989 = vld [vmem:[%s3983 + $0x28] sm:$0xff]
  %v3990 = vld [vmem:[%s3983 + $0x30] sm:$0xff]
  %v3991 = vld [vmem:[%s3983 + $0x38] sm:$0xff]
  %v3992 = vld [vmem:[%s3983 + $0x40] sm:$0xff]
  %v3993 = vld [vmem:[%s3983 + $0x48] sm:$0xff]
  %v3994 = vld [vmem:[%s3983 + $0x50] sm:$0xff]
  %v3995 = vld [vmem:[%s3983 + $0x58] sm:$0xff]
  %v3996 = vld [vmem:[%s3983 + $0x60] sm:$0xff]
  %v3997 = vld [vmem:[%s3983 + $0x68] sm:$0xff]
  %v3998 = vld [vmem:[%s3983 + $0x70] sm:$0xff]
  %v3999 = vld [vmem:[%s3983 + $0x78] sm:$0xff]
  %v4020 = vunpack.c.l.b16 %v3963
  %v4021 = vunpack.c.l.b16 %v3964
  %v4022 = vunpack.c.l.b16 %v3965
  %v4023 = vunpack.c.l.b16 %v3966
  %v4024 = vunpack.c.l.b16 %v3967
  %v4025 = vunpack.c.l.b16 %v3968
  %v4026 = vunpack.c.l.b16 %v3969
  %v4027 = vunpack.c.l.b16 %v3970
  %v4028 = vunpack.c.l.b16 %v3971
  %v4029 = vunpack.c.l.b16 %v3972
  %v4030 = vunpack.c.l.b16 %v3973
  %v4031 = vunpack.c.l.b16 %v3974
  %v4032 = vunpack.c.l.b16 %v3975
  %v4033 = vunpack.c.l.b16 %v3976
  %v4034 = vunpack.c.l.b16 %v3977
  %v4035 = vunpack.c.l.b16 %v3978
  %v4036 = vunpack.c.l.b16 %v3979
  %v4037 = vunpack.c.l.b16 %v3980
  %v4038 = vunpack.c.l.b16 %v3981
  %v4039 = vunpack.c.l.b16 %v3982
  %v4040 = vpack.c.b16 %v4021, %v4020
  %v4041 = vpack.c.b16 %v4023, %v4022
  %v4042 = vpack.c.b16 %v4025, %v4024
  %v4043 = vpack.c.b16 %v4027, %v4026
  %v4044 = vpack.c.b16 %v4029, %v4028
  %v4045 = vpack.c.b16 %v4031, %v4030
  %v4046 = vpack.c.b16 %v4033, %v4032
  %v4047 = vpack.c.b16 %v4035, %v4034
  %v4048 = vpack.c.b16 %v4037, %v4036
  %v4049 = vpack.c.b16 %v4039, %v4038
  %v4076 = vunpack.c.l.b16 %v3984
  %v4077 = vunpack.c.h.b16 %v3984
  %v4078 = vunpack.c.l.b16 %v3985
  %v4079 = vunpack.c.h.b16 %v3985
  %v4080 = vunpack.c.l.b16 %v3986
  %v4081 = vunpack.c.h.b16 %v3986
  %v4082 = vunpack.c.l.b16 %v3987
  %v4083 = vunpack.c.h.b16 %v3987
  %v4084 = vunpack.c.l.b16 %v3988
  %v4085 = vunpack.c.h.b16 %v3988
  %v4086 = vunpack.c.l.b16 %v3989
  %v4087 = vunpack.c.h.b16 %v3989
  %v4088 = vunpack.c.l.b16 %v3990
  %v4089 = vunpack.c.h.b16 %v3990
  %v4090 = vunpack.c.l.b16 %v3991
  %v4091 = vunpack.c.h.b16 %v3991
  %v4092 = vunpack.c.l.b16 %v3992
  %v4093 = vunpack.c.h.b16 %v3992
  %v4094 = vunpack.c.l.b16 %v3993
  %v4095 = vunpack.c.h.b16 %v3993
  %v4096 = vunpack.c.l.b16 %v3994
  %v4097 = vunpack.c.h.b16 %v3994
  %v4098 = vunpack.c.l.b16 %v3995
  %v4099 = vunpack.c.h.b16 %v3995
  %v4100 = vunpack.c.l.b16 %v3996
  %v4101 = vunpack.c.h.b16 %v3996
  %v4102 = vunpack.c.l.b16 %v3997
  %v4103 = vunpack.c.h.b16 %v3997
  %v4104 = vunpack.c.l.b16 %v3998
  %v4105 = vunpack.c.h.b16 %v3998
  %v4106 = vunpack.c.l.b16 %v3999
  %v4107 = vunpack.c.h.b16 %v3999
  %v4108 = vpack.c.b16 %v4078, %v4076
  %v4109 = vpack.c.b16 %v4079, %v4077
  %v4110 = vpack.c.b16 %v4082, %v4080
  %v4111 = vpack.c.b16 %v4083, %v4081
  %v4112 = vpack.c.b16 %v4086, %v4084
  %v4113 = vpack.c.b16 %v4087, %v4085
  %v4114 = vpack.c.b16 %v4090, %v4088
  %v4115 = vpack.c.b16 %v4091, %v4089
  %v4116 = vpack.c.b16 %v4094, %v4092
  %v4117 = vpack.c.b16 %v4095, %v4093
  %v4118 = vpack.c.b16 %v4098, %v4096
  %v4119 = vpack.c.b16 %v4099, %v4097
  %v4120 = vpack.c.b16 %v4102, %v4100
  %v4121 = vpack.c.b16 %v4103, %v4101
  %v4122 = vpack.c.b16 %v4106, %v4104
  %v4123 = vpack.c.b16 %v4107, %v4105
  %4140 = vmatpush.bf16.msra.mxu0 %v4122
  %4141 = vmatpush.bf16.msra.mxu0 %v4120
  %4142 = vmatpush.bf16.msra.mxu0 %v4118
  %4143 = vmatpush.bf16.msra.mxu0 %v4116
  %4144 = vmatpush.bf16.msra.mxu0 %v4114
  %4145 = vmatpush.bf16.msra.mxu0 %v4112
  %4146 = vmatpush.bf16.msra.mxu0 %v4110
  %4147 = vmatpush.bf16.msra.mxu0 %v4108
  %4148 = vmatmul.bf16.gmra.mxu0 %v4040
  %v4149 = vpop.f32.mrf.mxu0
  %v4150 = vadd.f32 0.0, %v4149
  %v4151 = vpop.f32.mrf.mxu0
  %v4152 = vadd.f32 0.0, %v4151
  %4153 = vmatmul.bf16.gmra.mxu0 %v4041
  %v4154 = vpop.f32.mrf.mxu0
  %v4155 = vadd.f32 0.0, %v4154
  %v4156 = vpop.f32.mrf.mxu0
  %v4157 = vadd.f32 0.0, %v4156
  %4158 = vmatmul.bf16.gmra.mxu0 %v4042
  %v4159 = vpop.f32.mrf.mxu0
  %v4160 = vadd.f32 0.0, %v4159
  %v4161 = vpop.f32.mrf.mxu0
  %v4162 = vadd.f32 0.0, %v4161
  %4163 = vmatmul.bf16.gmra.mxu0 %v4043
  %v4164 = vpop.f32.mrf.mxu0
  %v4165 = vadd.f32 0.0, %v4164
  %v4166 = vpop.f32.mrf.mxu0
  %v4167 = vadd.f32 0.0, %v4166
  %4168 = vmatmul.bf16.gmra.mxu0 %v4044
  %v4169 = vpop.f32.mrf.mxu0
  %v4170 = vadd.f32 0.0, %v4169
  %v4171 = vpop.f32.mrf.mxu0
  %v4172 = vadd.f32 0.0, %v4171
  %4173 = vmatmul.bf16.gmra.mxu0 %v4045
  %v4174 = vpop.f32.mrf.mxu0
  %v4175 = vadd.f32 0.0, %v4174
  %v4176 = vpop.f32.mrf.mxu0
  %v4177 = vadd.f32 0.0, %v4176
  %4178 = vmatmul.bf16.gmra.mxu0 %v4046
  %v4179 = vpop.f32.mrf.mxu0
  %v4180 = vadd.f32 0.0, %v4179
  %v4181 = vpop.f32.mrf.mxu0
  %v4182 = vadd.f32 0.0, %v4181
  %4183 = vmatmul.bf16.gmra.mxu0 %v4047
  %v4184 = vpop.f32.mrf.mxu0
  %v4185 = vadd.f32 0.0, %v4184
  %v4186 = vpop.f32.mrf.mxu0
  %v4187 = vadd.f32 0.0, %v4186
  %4188 = vmatmul.bf16.gmra.mxu0 %v4048
  %v4189 = vpop.f32.mrf.mxu0
  %v4190 = vadd.f32 0.0, %v4189
  %v4191 = vpop.f32.mrf.mxu0
  %v4192 = vadd.f32 0.0, %v4191
  %4193 = vmatmul.bf16.gmra.mxu0 %v4049
  %v4194 = vpop.f32.mrf.mxu0
  %v4195 = vadd.f32 0.0, %v4194
  %v4196 = vpop.f32.mrf.mxu0
  %v4197 = vadd.f32 0.0, %v4196
  %4198 = vdwg.mxu0
  %4199 = vmatpush.bf16.msra.mxu0 %v4123
  %4200 = vmatpush.bf16.msra.mxu0 %v4121
  %4201 = vmatpush.bf16.msra.mxu0 %v4119
  %4202 = vmatpush.bf16.msra.mxu0 %v4117
  %4203 = vmatpush.bf16.msra.mxu0 %v4115
  %4204 = vmatpush.bf16.msra.mxu0 %v4113
  %4205 = vmatpush.bf16.msra.mxu0 %v4111
  %4206 = vmatpush.bf16.msra.mxu0 %v4109
  %4207 = vmatmul.bf16.gmra.mxu0 %v4040
  %v4208 = vpop.f32.mrf.mxu0
  %v4209 = vadd.f32 0.0, %v4208
  %v4210 = vpop.f32.mrf.mxu0
  %v4211 = vadd.f32 0.0, %v4210
  %4212 = vmatmul.bf16.gmra.mxu0 %v4041
  %v4213 = vpop.f32.mrf.mxu0
  %v4214 = vadd.f32 0.0, %v4213
  %v4215 = vpop.f32.mrf.mxu0
  %v4216 = vadd.f32 0.0, %v4215
  %4217 = vmatmul.bf16.gmra.mxu0 %v4042
  %v4218 = vpop.f32.mrf.mxu0
  %v4219 = vadd.f32 0.0, %v4218
  %v4220 = vpop.f32.mrf.mxu0
  %v4221 = vadd.f32 0.0, %v4220
  %4222 = vmatmul.bf16.gmra.mxu0 %v4043
  %v4223 = vpop.f32.mrf.mxu0
  %v4224 = vadd.f32 0.0, %v4223
  %v4225 = vpop.f32.mrf.mxu0
  %v4226 = vadd.f32 0.0, %v4225
  %4227 = vmatmul.bf16.gmra.mxu0 %v4044
  %v4228 = vpop.f32.mrf.mxu0
  %v4229 = vadd.f32 0.0, %v4228
  %v4230 = vpop.f32.mrf.mxu0
  %v4231 = vadd.f32 0.0, %v4230
  %4232 = vmatmul.bf16.gmra.mxu0 %v4045
  %v4233 = vpop.f32.mrf.mxu0
  %v4234 = vadd.f32 0.0, %v4233
  %v4235 = vpop.f32.mrf.mxu0
  %v4236 = vadd.f32 0.0, %v4235
  %4237 = vmatmul.bf16.gmra.mxu0 %v4046
  %v4238 = vpop.f32.mrf.mxu0
  %v4239 = vadd.f32 0.0, %v4238
  %v4240 = vpop.f32.mrf.mxu0
  %v4241 = vadd.f32 0.0, %v4240
  %4242 = vmatmul.bf16.gmra.mxu0 %v4047
  %v4243 = vpop.f32.mrf.mxu0
  %v4244 = vadd.f32 0.0, %v4243
  %v4245 = vpop.f32.mrf.mxu0
  %v4246 = vadd.f32 0.0, %v4245
  %4247 = vmatmul.bf16.gmra.mxu0 %v4048
  %v4248 = vpop.f32.mrf.mxu0
  %v4249 = vadd.f32 0.0, %v4248
  %v4250 = vpop.f32.mrf.mxu0
  %v4251 = vadd.f32 0.0, %v4250
  %4252 = vmatmul.bf16.gmra.mxu0 %v4049
  %v4253 = vpop.f32.mrf.mxu0
  %v4254 = vadd.f32 0.0, %v4253
  %v4255 = vpop.f32.mrf.mxu0
  %v4256 = vadd.f32 0.0, %v4255
  %4257 = vdwg.mxu0
  %v4258 = vadd.f32 %v3855, %v4150
  %v4259 = vadd.f32 %v3914, %v4209
  %v4260 = vadd.f32 %v3857, %v4152
  %v4261 = vadd.f32 %v3916, %v4211
  %v4262 = vadd.f32 %v3860, %v4155
  %v4263 = vadd.f32 %v3919, %v4214
  %v4264 = vadd.f32 %v3862, %v4157
  %v4265 = vadd.f32 %v3921, %v4216
  %v4266 = vadd.f32 %v3865, %v4160
  %v4267 = vadd.f32 %v3924, %v4219
  %v4268 = vadd.f32 %v3867, %v4162
  %v4269 = vadd.f32 %v3926, %v4221
  %v4270 = vadd.f32 %v3870, %v4165
  %v4271 = vadd.f32 %v3929, %v4224
  %v4272 = vadd.f32 %v3872, %v4167
  %v4273 = vadd.f32 %v3931, %v4226
  %v4274 = vadd.f32 %v3875, %v4170
  %v4275 = vadd.f32 %v3934, %v4229
  %v4276 = vadd.f32 %v3877, %v4172
  %v4277 = vadd.f32 %v3936, %v4231
  %v4278 = vadd.f32 %v3880, %v4175
  %v4279 = vadd.f32 %v3939, %v4234
  %v4280 = vadd.f32 %v3882, %v4177
  %v4281 = vadd.f32 %v3941, %v4236
  %v4282 = vadd.f32 %v3885, %v4180
  %v4283 = vadd.f32 %v3944, %v4239
  %v4284 = vadd.f32 %v3887, %v4182
  %v4285 = vadd.f32 %v3946, %v4241
  %v4286 = vadd.f32 %v3890, %v4185
  %v4287 = vadd.f32 %v3949, %v4244
  %v4288 = vadd.f32 %v3892, %v4187
  %v4289 = vadd.f32 %v3951, %v4246
  %v4290 = vadd.f32 %v3895, %v4190
  %v4291 = vadd.f32 %v3954, %v4249
  %v4292 = vadd.f32 %v3897, %v4192
  %v4293 = vadd.f32 %v3956, %v4251
  %v4294 = vadd.f32 %v3900, %v4195
  %v4295 = vadd.f32 %v3959, %v4254
  %v4296 = vadd.f32 %v3902, %v4197
  %v4297 = vadd.f32 %v3961, %v4256
  %v4298 = vld [vmem:[#allocation2 + $0x18] sm:$0xf]
  %v4299 = vld [vmem:[#allocation2 + $0x1c] sm:$0xf]
  %v4300 = vld [vmem:[#allocation2 + $0x20] sm:$0xf]
  %v4301 = vld [vmem:[#allocation2 + $0x24] sm:$0xf]
  %v4302 = vld [vmem:[#allocation2 + $0x28] sm:$0xf]
  %v4303 = vld [vmem:[#allocation2 + $0x2c] sm:$0xf]
  %v4304 = vld [vmem:[#allocation2 + $0x30] sm:$0xf]
  %v4305 = vld [vmem:[#allocation2 + $0x34] sm:$0xf]
  %v4306 = vld [vmem:[#allocation2 + $0x38] sm:$0xf]
  %v4307 = vld [vmem:[#allocation2 + $0x3c] sm:$0xf]
  %v4308 = vld [vmem:[#allocation2 + $0x40] sm:$0xf]
  %v4309 = vld [vmem:[#allocation2 + $0x44] sm:$0xf]
  %v4310 = vld [vmem:[#allocation2 + $0x48] sm:$0xf]
  %v4311 = vld [vmem:[#allocation2 + $0x4c] sm:$0xf]
  %v4312 = vld [vmem:[#allocation2 + $0x50] sm:$0xf]
  %v4313 = vld [vmem:[#allocation2 + $0x54] sm:$0xf]
  %v4314 = vld [vmem:[#allocation2 + $0x58] sm:$0xf]
  %v4315 = vld [vmem:[#allocation2 + $0x5c] sm:$0xf]
  %v4316 = vld [vmem:[#allocation2 + $0x60] sm:$0xf]
  %v4317 = vld [vmem:[#allocation2 + $0x64] sm:$0xf]
  %s4318 = scalar_lea.vmem %s3, 384
  %v4319 = vld [vmem:[%s4318] sm:$0xff]
  %v4320 = vld [vmem:[%s4318 + $0x8] sm:$0xff]
  %v4321 = vld [vmem:[%s4318 + $0x10] sm:$0xff]
  %v4322 = vld [vmem:[%s4318 + $0x18] sm:$0xff]
  %v4323 = vld [vmem:[%s4318 + $0x20] sm:$0xff]
  %v4324 = vld [vmem:[%s4318 + $0x28] sm:$0xff]
  %v4325 = vld [vmem:[%s4318 + $0x30] sm:$0xff]
  %v4326 = vld [vmem:[%s4318 + $0x38] sm:$0xff]
  %v4327 = vld [vmem:[%s4318 + $0x40] sm:$0xff]
  %v4328 = vld [vmem:[%s4318 + $0x48] sm:$0xff]
  %v4329 = vld [vmem:[%s4318 + $0x50] sm:$0xff]
  %v4330 = vld [vmem:[%s4318 + $0x58] sm:$0xff]
  %v4331 = vld [vmem:[%s4318 + $0x60] sm:$0xff]
  %v4332 = vld [vmem:[%s4318 + $0x68] sm:$0xff]
  %v4333 = vld [vmem:[%s4318 + $0x70] sm:$0xff]
  %v4334 = vld [vmem:[%s4318 + $0x78] sm:$0xff]
  %v4355 = vunpack.c.l.b16 %v4298
  %v4356 = vunpack.c.l.b16 %v4299
  %v4357 = vunpack.c.l.b16 %v4300
  %v4358 = vunpack.c.l.b16 %v4301
  %v4359 = vunpack.c.l.b16 %v4302
  %v4360 = vunpack.c.l.b16 %v4303
  %v4361 = vunpack.c.l.b16 %v4304
  %v4362 = vunpack.c.l.b16 %v4305
  %v4363 = vunpack.c.l.b16 %v4306
  %v4364 = vunpack.c.l.b16 %v4307
  %v4365 = vunpack.c.l.b16 %v4308
  %v4366 = vunpack.c.l.b16 %v4309
  %v4367 = vunpack.c.l.b16 %v4310
  %v4368 = vunpack.c.l.b16 %v4311
  %v4369 = vunpack.c.l.b16 %v4312
  %v4370 = vunpack.c.l.b16 %v4313
  %v4371 = vunpack.c.l.b16 %v4314
  %v4372 = vunpack.c.l.b16 %v4315
  %v4373 = vunpack.c.l.b16 %v4316
  %v4374 = vunpack.c.l.b16 %v4317
  %v4375 = vpack.c.b16 %v4356, %v4355
  %v4376 = vpack.c.b16 %v4358, %v4357
  %v4377 = vpack.c.b16 %v4360, %v4359
  %v4378 = vpack.c.b16 %v4362, %v4361
  %v4379 = vpack.c.b16 %v4364, %v4363
  %v4380 = vpack.c.b16 %v4366, %v4365
  %v4381 = vpack.c.b16 %v4368, %v4367
  %v4382 = vpack.c.b16 %v4370, %v4369
  %v4383 = vpack.c.b16 %v4372, %v4371
  %v4384 = vpack.c.b16 %v4374, %v4373
  %v4411 = vunpack.c.l.b16 %v4319
  %v4412 = vunpack.c.h.b16 %v4319
  %v4413 = vunpack.c.l.b16 %v4320
  %v4414 = vunpack.c.h.b16 %v4320
  %v4415 = vunpack.c.l.b16 %v4321
  %v4416 = vunpack.c.h.b16 %v4321
  %v4417 = vunpack.c.l.b16 %v4322
  %v4418 = vunpack.c.h.b16 %v4322
  %v4419 = vunpack.c.l.b16 %v4323
  %v4420 = vunpack.c.h.b16 %v4323
  %v4421 = vunpack.c.l.b16 %v4324
  %v4422 = vunpack.c.h.b16 %v4324
  %v4423 = vunpack.c.l.b16 %v4325
  %v4424 = vunpack.c.h.b16 %v4325
  %v4425 = vunpack.c.l.b16 %v4326
  %v4426 = vunpack.c.h.b16 %v4326
  %v4427 = vunpack.c.l.b16 %v4327
  %v4428 = vunpack.c.h.b16 %v4327
  %v4429 = vunpack.c.l.b16 %v4328
  %v4430 = vunpack.c.h.b16 %v4328
  %v4431 = vunpack.c.l.b16 %v4329
  %v4432 = vunpack.c.h.b16 %v4329
  %v4433 = vunpack.c.l.b16 %v4330
  %v4434 = vunpack.c.h.b16 %v4330
  %v4435 = vunpack.c.l.b16 %v4331
  %v4436 = vunpack.c.h.b16 %v4331
  %v4437 = vunpack.c.l.b16 %v4332
  %v4438 = vunpack.c.h.b16 %v4332
  %v4439 = vunpack.c.l.b16 %v4333
  %v4440 = vunpack.c.h.b16 %v4333
  %v4441 = vunpack.c.l.b16 %v4334
  %v4442 = vunpack.c.h.b16 %v4334
  %v4443 = vpack.c.b16 %v4413, %v4411
  %v4444 = vpack.c.b16 %v4414, %v4412
  %v4445 = vpack.c.b16 %v4417, %v4415
  %v4446 = vpack.c.b16 %v4418, %v4416
  %v4447 = vpack.c.b16 %v4421, %v4419
  %v4448 = vpack.c.b16 %v4422, %v4420
  %v4449 = vpack.c.b16 %v4425, %v4423
  %v4450 = vpack.c.b16 %v4426, %v4424
  %v4451 = vpack.c.b16 %v4429, %v4427
  %v4452 = vpack.c.b16 %v4430, %v4428
  %v4453 = vpack.c.b16 %v4433, %v4431
  %v4454 = vpack.c.b16 %v4434, %v4432
  %v4455 = vpack.c.b16 %v4437, %v4435
  %v4456 = vpack.c.b16 %v4438, %v4436
  %v4457 = vpack.c.b16 %v4441, %v4439
  %v4458 = vpack.c.b16 %v4442, %v4440
  %4475 = vmatpush.bf16.msra.mxu0 %v4457
  %4476 = vmatpush.bf16.msra.mxu0 %v4455
  %4477 = vmatpush.bf16.msra.mxu0 %v4453
  %4478 = vmatpush.bf16.msra.mxu0 %v4451
  %4479 = vmatpush.bf16.msra.mxu0 %v4449
  %4480 = vmatpush.bf16.msra.mxu0 %v4447
  %4481 = vmatpush.bf16.msra.mxu0 %v4445
  %4482 = vmatpush.bf16.msra.mxu0 %v4443
  %4483 = vmatmul.bf16.gmra.mxu0 %v4375
  %v4484 = vpop.f32.mrf.mxu0
  %v4485 = vadd.f32 0.0, %v4484
  %v4486 = vpop.f32.mrf.mxu0
  %v4487 = vadd.f32 0.0, %v4486
  %4488 = vmatmul.bf16.gmra.mxu0 %v4376
  %v4489 = vpop.f32.mrf.mxu0
  %v4490 = vadd.f32 0.0, %v4489
  %v4491 = vpop.f32.mrf.mxu0
  %v4492 = vadd.f32 0.0, %v4491
  %4493 = vmatmul.bf16.gmra.mxu0 %v4377
  %v4494 = vpop.f32.mrf.mxu0
  %v4495 = vadd.f32 0.0, %v4494
  %v4496 = vpop.f32.mrf.mxu0
  %v4497 = vadd.f32 0.0, %v4496
  %4498 = vmatmul.bf16.gmra.mxu0 %v4378
  %v4499 = vpop.f32.mrf.mxu0
  %v4500 = vadd.f32 0.0, %v4499
  %v4501 = vpop.f32.mrf.mxu0
  %v4502 = vadd.f32 0.0, %v4501
  %4503 = vmatmul.bf16.gmra.mxu0 %v4379
  %v4504 = vpop.f32.mrf.mxu0
  %v4505 = vadd.f32 0.0, %v4504
  %v4506 = vpop.f32.mrf.mxu0
  %v4507 = vadd.f32 0.0, %v4506
  %4508 = vmatmul.bf16.gmra.mxu0 %v4380
  %v4509 = vpop.f32.mrf.mxu0
  %v4510 = vadd.f32 0.0, %v4509
  %v4511 = vpop.f32.mrf.mxu0
  %v4512 = vadd.f32 0.0, %v4511
  %4513 = vmatmul.bf16.gmra.mxu0 %v4381
  %v4514 = vpop.f32.mrf.mxu0
  %v4515 = vadd.f32 0.0, %v4514
  %v4516 = vpop.f32.mrf.mxu0
  %v4517 = vadd.f32 0.0, %v4516
  %4518 = vmatmul.bf16.gmra.mxu0 %v4382
  %v4519 = vpop.f32.mrf.mxu0
  %v4520 = vadd.f32 0.0, %v4519
  %v4521 = vpop.f32.mrf.mxu0
  %v4522 = vadd.f32 0.0, %v4521
  %4523 = vmatmul.bf16.gmra.mxu0 %v4383
  %v4524 = vpop.f32.mrf.mxu0
  %v4525 = vadd.f32 0.0, %v4524
  %v4526 = vpop.f32.mrf.mxu0
  %v4527 = vadd.f32 0.0, %v4526
  %4528 = vmatmul.bf16.gmra.mxu0 %v4384
  %v4529 = vpop.f32.mrf.mxu0
  %v4530 = vadd.f32 0.0, %v4529
  %v4531 = vpop.f32.mrf.mxu0
  %v4532 = vadd.f32 0.0, %v4531
  %4533 = vdwg.mxu0
  %4534 = vmatpush.bf16.msra.mxu0 %v4458
  %4535 = vmatpush.bf16.msra.mxu0 %v4456
  %4536 = vmatpush.bf16.msra.mxu0 %v4454
  %4537 = vmatpush.bf16.msra.mxu0 %v4452
  %4538 = vmatpush.bf16.msra.mxu0 %v4450
  %4539 = vmatpush.bf16.msra.mxu0 %v4448
  %4540 = vmatpush.bf16.msra.mxu0 %v4446
  %4541 = vmatpush.bf16.msra.mxu0 %v4444
  %4542 = vmatmul.bf16.gmra.mxu0 %v4375
  %v4543 = vpop.f32.mrf.mxu0
  %v4544 = vadd.f32 0.0, %v4543
  %v4545 = vpop.f32.mrf.mxu0
  %v4546 = vadd.f32 0.0, %v4545
  %4547 = vmatmul.bf16.gmra.mxu0 %v4376
  %v4548 = vpop.f32.mrf.mxu0
  %v4549 = vadd.f32 0.0, %v4548
  %v4550 = vpop.f32.mrf.mxu0
  %v4551 = vadd.f32 0.0, %v4550
  %4552 = vmatmul.bf16.gmra.mxu0 %v4377
  %v4553 = vpop.f32.mrf.mxu0
  %v4554 = vadd.f32 0.0, %v4553
  %v4555 = vpop.f32.mrf.mxu0
  %v4556 = vadd.f32 0.0, %v4555
  %4557 = vmatmul.bf16.gmra.mxu0 %v4378
  %v4558 = vpop.f32.mrf.mxu0
  %v4559 = vadd.f32 0.0, %v4558
  %v4560 = vpop.f32.mrf.mxu0
  %v4561 = vadd.f32 0.0, %v4560
  %4562 = vmatmul.bf16.gmra.mxu0 %v4379
  %v4563 = vpop.f32.mrf.mxu0
  %v4564 = vadd.f32 0.0, %v4563
  %v4565 = vpop.f32.mrf.mxu0
  %v4566 = vadd.f32 0.0, %v4565
  %4567 = vmatmul.bf16.gmra.mxu0 %v4380
  %v4568 = vpop.f32.mrf.mxu0
  %v4569 = vadd.f32 0.0, %v4568
  %v4570 = vpop.f32.mrf.mxu0
  %v4571 = vadd.f32 0.0, %v4570
  %4572 = vmatmul.bf16.gmra.mxu0 %v4381
  %v4573 = vpop.f32.mrf.mxu0
  %v4574 = vadd.f32 0.0, %v4573
  %v4575 = vpop.f32.mrf.mxu0
  %v4576 = vadd.f32 0.0, %v4575
  %4577 = vmatmul.bf16.gmra.mxu0 %v4382
  %v4578 = vpop.f32.mrf.mxu0
  %v4579 = vadd.f32 0.0, %v4578
  %v4580 = vpop.f32.mrf.mxu0
  %v4581 = vadd.f32 0.0, %v4580
  %4582 = vmatmul.bf16.gmra.mxu0 %v4383
  %v4583 = vpop.f32.mrf.mxu0
  %v4584 = vadd.f32 0.0, %v4583
  %v4585 = vpop.f32.mrf.mxu0
  %v4586 = vadd.f32 0.0, %v4585
  %4587 = vmatmul.bf16.gmra.mxu0 %v4384
  %v4588 = vpop.f32.mrf.mxu0
  %v4589 = vadd.f32 0.0, %v4588
  %v4590 = vpop.f32.mrf.mxu0
  %v4591 = vadd.f32 0.0, %v4590
  %4592 = vdwg.mxu0
  %v4593 = vadd.f32 %v4258, %v4485
  %v4594 = vadd.f32 %v4259, %v4544
  %v4595 = vadd.f32 %v4260, %v4487
  %v4596 = vadd.f32 %v4261, %v4546
  %v4597 = vadd.f32 %v4262, %v4490
  %v4598 = vadd.f32 %v4263, %v4549
  %v4599 = vadd.f32 %v4264, %v4492
  %v4600 = vadd.f32 %v4265, %v4551
  %v4601 = vadd.f32 %v4266, %v4495
  %v4602 = vadd.f32 %v4267, %v4554
  %v4603 = vadd.f32 %v4268, %v4497
  %v4604 = vadd.f32 %v4269, %v4556
  %v4605 = vadd.f32 %v4270, %v4500
  %v4606 = vadd.f32 %v4271, %v4559
  %v4607 = vadd.f32 %v4272, %v4502
  %v4608 = vadd.f32 %v4273, %v4561
  %v4609 = vadd.f32 %v4274, %v4505
  %v4610 = vadd.f32 %v4275, %v4564
  %v4611 = vadd.f32 %v4276, %v4507
  %v4612 = vadd.f32 %v4277, %v4566
  %v4613 = vadd.f32 %v4278, %v4510
  %v4614 = vadd.f32 %v4279, %v4569
  %v4615 = vadd.f32 %v4280, %v4512
  %v4616 = vadd.f32 %v4281, %v4571
  %v4617 = vadd.f32 %v4282, %v4515
  %v4618 = vadd.f32 %v4283, %v4574
  %v4619 = vadd.f32 %v4284, %v4517
  %v4620 = vadd.f32 %v4285, %v4576
  %v4621 = vadd.f32 %v4286, %v4520
  %v4622 = vadd.f32 %v4287, %v4579
  %v4623 = vadd.f32 %v4288, %v4522
  %v4624 = vadd.f32 %v4289, %v4581
  %v4625 = vadd.f32 %v4290, %v4525
  %v4626 = vadd.f32 %v4291, %v4584
  %v4627 = vadd.f32 %v4292, %v4527
  %v4628 = vadd.f32 %v4293, %v4586
  %v4629 = vadd.f32 %v4294, %v4530
  %v4630 = vadd.f32 %v4295, %v4589
  %v4631 = vadd.f32 %v4296, %v4532
  %v4632 = vadd.f32 %v4297, %v4591
  %v4633 = vld [vmem:[#allocation2 + $0x20] sm:$0xf]
  %v4634 = vld [vmem:[#allocation2 + $0x24] sm:$0xf]
  %v4635 = vld [vmem:[#allocation2 + $0x28] sm:$0xf]
  %v4636 = vld [vmem:[#allocation2 + $0x2c] sm:$0xf]
  %v4637 = vld [vmem:[#allocation2 + $0x30] sm:$0xf]
  %v4638 = vld [vmem:[#allocation2 + $0x34] sm:$0xf]
  %v4639 = vld [vmem:[#allocation2 + $0x38] sm:$0xf]
  %v4640 = vld [vmem:[#allocation2 + $0x3c] sm:$0xf]
  %v4641 = vld [vmem:[#allocation2 + $0x40] sm:$0xf]
  %v4642 = vld [vmem:[#allocation2 + $0x44] sm:$0xf]
  %v4643 = vld [vmem:[#allocation2 + $0x48] sm:$0xf]
  %v4644 = vld [vmem:[#allocation2 + $0x4c] sm:$0xf]
  %v4645 = vld [vmem:[#allocation2 + $0x50] sm:$0xf]
  %v4646 = vld [vmem:[#allocation2 + $0x54] sm:$0xf]
  %v4647 = vld [vmem:[#allocation2 + $0x58] sm:$0xf]
  %v4648 = vld [vmem:[#allocation2 + $0x5c] sm:$0xf]
  %v4649 = vld [vmem:[#allocation2 + $0x60] sm:$0xf]
  %v4650 = vld [vmem:[#allocation2 + $0x64] sm:$0xf]
  %v4651 = vld [vmem:[#allocation2 + $0x68] sm:$0xf]
  %v4652 = vld [vmem:[#allocation2 + $0x6c] sm:$0xf]
  %s4653 = scalar_lea.vmem %s3, 512
  %v4654 = vld [vmem:[%s4653] sm:$0xff]
  %v4655 = vld [vmem:[%s4653 + $0x8] sm:$0xff]
  %v4656 = vld [vmem:[%s4653 + $0x10] sm:$0xff]
  %v4657 = vld [vmem:[%s4653 + $0x18] sm:$0xff]
  %v4658 = vld [vmem:[%s4653 + $0x20] sm:$0xff]
  %v4659 = vld [vmem:[%s4653 + $0x28] sm:$0xff]
  %v4660 = vld [vmem:[%s4653 + $0x30] sm:$0xff]
  %v4661 = vld [vmem:[%s4653 + $0x38] sm:$0xff]
  %v4662 = vld [vmem:[%s4653 + $0x40] sm:$0xff]
  %v4663 = vld [vmem:[%s4653 + $0x48] sm:$0xff]
  %v4664 = vld [vmem:[%s4653 + $0x50] sm:$0xff]
  %v4665 = vld [vmem:[%s4653 + $0x58] sm:$0xff]
  %v4666 = vld [vmem:[%s4653 + $0x60] sm:$0xff]
  %v4667 = vld [vmem:[%s4653 + $0x68] sm:$0xff]
  %v4668 = vld [vmem:[%s4653 + $0x70] sm:$0xff]
  %v4669 = vld [vmem:[%s4653 + $0x78] sm:$0xff]
  %v4690 = vunpack.c.l.b16 %v4633
  %v4691 = vunpack.c.l.b16 %v4634
  %v4692 = vunpack.c.l.b16 %v4635
  %v4693 = vunpack.c.l.b16 %v4636
  %v4694 = vunpack.c.l.b16 %v4637
  %v4695 = vunpack.c.l.b16 %v4638
  %v4696 = vunpack.c.l.b16 %v4639
  %v4697 = vunpack.c.l.b16 %v4640
  %v4698 = vunpack.c.l.b16 %v4641
  %v4699 = vunpack.c.l.b16 %v4642
  %v4700 = vunpack.c.l.b16 %v4643
  %v4701 = vunpack.c.l.b16 %v4644
  %v4702 = vunpack.c.l.b16 %v4645
  %v4703 = vunpack.c.l.b16 %v4646
  %v4704 = vunpack.c.l.b16 %v4647
  %v4705 = vunpack.c.l.b16 %v4648
  %v4706 = vunpack.c.l.b16 %v4649
  %v4707 = vunpack.c.l.b16 %v4650
  %v4708 = vunpack.c.l.b16 %v4651
  %v4709 = vunpack.c.l.b16 %v4652
  %v4710 = vpack.c.b16 %v4691, %v4690
  %v4711 = vpack.c.b16 %v4693, %v4692
  %v4712 = vpack.c.b16 %v4695, %v4694
  %v4713 = vpack.c.b16 %v4697, %v4696
  %v4714 = vpack.c.b16 %v4699, %v4698
  %v4715 = vpack.c.b16 %v4701, %v4700
  %v4716 = vpack.c.b16 %v4703, %v4702
  %v4717 = vpack.c.b16 %v4705, %v4704
  %v4718 = vpack.c.b16 %v4707, %v4706
  %v4719 = vpack.c.b16 %v4709, %v4708
  %v4746 = vunpack.c.l.b16 %v4654
  %v4747 = vunpack.c.h.b16 %v4654
  %v4748 = vunpack.c.l.b16 %v4655
  %v4749 = vunpack.c.h.b16 %v4655
  %v4750 = vunpack.c.l.b16 %v4656
  %v4751 = vunpack.c.h.b16 %v4656
  %v4752 = vunpack.c.l.b16 %v4657
  %v4753 = vunpack.c.h.b16 %v4657
  %v4754 = vunpack.c.l.b16 %v4658
  %v4755 = vunpack.c.h.b16 %v4658
  %v4756 = vunpack.c.l.b16 %v4659
  %v4757 = vunpack.c.h.b16 %v4659
  %v4758 = vunpack.c.l.b16 %v4660
  %v4759 = vunpack.c.h.b16 %v4660
  %v4760 = vunpack.c.l.b16 %v4661
  %v4761 = vunpack.c.h.b16 %v4661
  %v4762 = vunpack.c.l.b16 %v4662
  %v4763 = vunpack.c.h.b16 %v4662
  %v4764 = vunpack.c.l.b16 %v4663
  %v4765 = vunpack.c.h.b16 %v4663
  %v4766 = vunpack.c.l.b16 %v4664
  %v4767 = vunpack.c.h.b16 %v4664
  %v4768 = vunpack.c.l.b16 %v4665
  %v4769 = vunpack.c.h.b16 %v4665
  %v4770 = vunpack.c.l.b16 %v4666
  %v4771 = vunpack.c.h.b16 %v4666
  %v4772 = vunpack.c.l.b16 %v4667
  %v4773 = vunpack.c.h.b16 %v4667
  %v4774 = vunpack.c.l.b16 %v4668
  %v4775 = vunpack.c.h.b16 %v4668
  %v4776 = vunpack.c.l.b16 %v4669
  %v4777 = vunpack.c.h.b16 %v4669
  %v4778 = vpack.c.b16 %v4748, %v4746
  %v4779 = vpack.c.b16 %v4749, %v4747
  %v4780 = vpack.c.b16 %v4752, %v4750
  %v4781 = vpack.c.b16 %v4753, %v4751
  %v4782 = vpack.c.b16 %v4756, %v4754
  %v4783 = vpack.c.b16 %v4757, %v4755
  %v4784 = vpack.c.b16 %v4760, %v4758
  %v4785 = vpack.c.b16 %v4761, %v4759
  %v4786 = vpack.c.b16 %v4764, %v4762
  %v4787 = vpack.c.b16 %v4765, %v4763
  %v4788 = vpack.c.b16 %v4768, %v4766
  %v4789 = vpack.c.b16 %v4769, %v4767
  %v4790 = vpack.c.b16 %v4772, %v4770
  %v4791 = vpack.c.b16 %v4773, %v4771
  %v4792 = vpack.c.b16 %v4776, %v4774
  %v4793 = vpack.c.b16 %v4777, %v4775
  %4810 = vmatpush.bf16.msra.mxu0 %v4792
  %4811 = vmatpush.bf16.msra.mxu0 %v4790
  %4812 = vmatpush.bf16.msra.mxu0 %v4788
  %4813 = vmatpush.bf16.msra.mxu0 %v4786
  %4814 = vmatpush.bf16.msra.mxu0 %v4784
  %4815 = vmatpush.bf16.msra.mxu0 %v4782
  %4816 = vmatpush.bf16.msra.mxu0 %v4780
  %4817 = vmatpush.bf16.msra.mxu0 %v4778
  %4818 = vmatmul.bf16.gmra.mxu0 %v4710
  %v4819 = vpop.f32.mrf.mxu0
  %v4820 = vadd.f32 0.0, %v4819
  %v4821 = vpop.f32.mrf.mxu0
  %v4822 = vadd.f32 0.0, %v4821
  %4823 = vmatmul.bf16.gmra.mxu0 %v4711
  %v4824 = vpop.f32.mrf.mxu0
  %v4825 = vadd.f32 0.0, %v4824
  %v4826 = vpop.f32.mrf.mxu0
  %v4827 = vadd.f32 0.0, %v4826
  %4828 = vmatmul.bf16.gmra.mxu0 %v4712
  %v4829 = vpop.f32.mrf.mxu0
  %v4830 = vadd.f32 0.0, %v4829
  %v4831 = vpop.f32.mrf.mxu0
  %v4832 = vadd.f32 0.0, %v4831
  %4833 = vmatmul.bf16.gmra.mxu0 %v4713
  %v4834 = vpop.f32.mrf.mxu0
  %v4835 = vadd.f32 0.0, %v4834
  %v4836 = vpop.f32.mrf.mxu0
  %v4837 = vadd.f32 0.0, %v4836
  %4838 = vmatmul.bf16.gmra.mxu0 %v4714
  %v4839 = vpop.f32.mrf.mxu0
  %v4840 = vadd.f32 0.0, %v4839
  %v4841 = vpop.f32.mrf.mxu0
  %v4842 = vadd.f32 0.0, %v4841
  %4843 = vmatmul.bf16.gmra.mxu0 %v4715
  %v4844 = vpop.f32.mrf.mxu0
  %v4845 = vadd.f32 0.0, %v4844
  %v4846 = vpop.f32.mrf.mxu0
  %v4847 = vadd.f32 0.0, %v4846
  %4848 = vmatmul.bf16.gmra.mxu0 %v4716
  %v4849 = vpop.f32.mrf.mxu0
  %v4850 = vadd.f32 0.0, %v4849
  %v4851 = vpop.f32.mrf.mxu0
  %v4852 = vadd.f32 0.0, %v4851
  %4853 = vmatmul.bf16.gmra.mxu0 %v4717
  %v4854 = vpop.f32.mrf.mxu0
  %v4855 = vadd.f32 0.0, %v4854
  %v4856 = vpop.f32.mrf.mxu0
  %v4857 = vadd.f32 0.0, %v4856
  %4858 = vmatmul.bf16.gmra.mxu0 %v4718
  %v4859 = vpop.f32.mrf.mxu0
  %v4860 = vadd.f32 0.0, %v4859
  %v4861 = vpop.f32.mrf.mxu0
  %v4862 = vadd.f32 0.0, %v4861
  %4863 = vmatmul.bf16.gmra.mxu0 %v4719
  %v4864 = vpop.f32.mrf.mxu0
  %v4865 = vadd.f32 0.0, %v4864
  %v4866 = vpop.f32.mrf.mxu0
  %v4867 = vadd.f32 0.0, %v4866
  %4868 = vdwg.mxu0
  %4869 = vmatpush.bf16.msra.mxu0 %v4793
  %4870 = vmatpush.bf16.msra.mxu0 %v4791
  %4871 = vmatpush.bf16.msra.mxu0 %v4789
  %4872 = vmatpush.bf16.msra.mxu0 %v4787
  %4873 = vmatpush.bf16.msra.mxu0 %v4785
  %4874 = vmatpush.bf16.msra.mxu0 %v4783
  %4875 = vmatpush.bf16.msra.mxu0 %v4781
  %4876 = vmatpush.bf16.msra.mxu0 %v4779
  %4877 = vmatmul.bf16.gmra.mxu0 %v4710
  %v4878 = vpop.f32.mrf.mxu0
  %v4879 = vadd.f32 0.0, %v4878
  %v4880 = vpop.f32.mrf.mxu0
  %v4881 = vadd.f32 0.0, %v4880
  %4882 = vmatmul.bf16.gmra.mxu0 %v4711
  %v4883 = vpop.f32.mrf.mxu0
  %v4884 = vadd.f32 0.0, %v4883
  %v4885 = vpop.f32.mrf.mxu0
  %v4886 = vadd.f32 0.0, %v4885
  %4887 = vmatmul.bf16.gmra.mxu0 %v4712
  %v4888 = vpop.f32.mrf.mxu0
  %v4889 = vadd.f32 0.0, %v4888
  %v4890 = vpop.f32.mrf.mxu0
  %v4891 = vadd.f32 0.0, %v4890
  %4892 = vmatmul.bf16.gmra.mxu0 %v4713
  %v4893 = vpop.f32.mrf.mxu0
  %v4894 = vadd.f32 0.0, %v4893
  %v4895 = vpop.f32.mrf.mxu0
  %v4896 = vadd.f32 0.0, %v4895
  %4897 = vmatmul.bf16.gmra.mxu0 %v4714
  %v4898 = vpop.f32.mrf.mxu0
  %v4899 = vadd.f32 0.0, %v4898
  %v4900 = vpop.f32.mrf.mxu0
  %v4901 = vadd.f32 0.0, %v4900
  %4902 = vmatmul.bf16.gmra.mxu0 %v4715
  %v4903 = vpop.f32.mrf.mxu0
  %v4904 = vadd.f32 0.0, %v4903
  %v4905 = vpop.f32.mrf.mxu0
  %v4906 = vadd.f32 0.0, %v4905
  %4907 = vmatmul.bf16.gmra.mxu0 %v4716
  %v4908 = vpop.f32.mrf.mxu0
  %v4909 = vadd.f32 0.0, %v4908
  %v4910 = vpop.f32.mrf.mxu0
  %v4911 = vadd.f32 0.0, %v4910
  %4912 = vmatmul.bf16.gmra.mxu0 %v4717
  %v4913 = vpop.f32.mrf.mxu0
  %v4914 = vadd.f32 0.0, %v4913
  %v4915 = vpop.f32.mrf.mxu0
  %v4916 = vadd.f32 0.0, %v4915
  %4917 = vmatmul.bf16.gmra.mxu0 %v4718
  %v4918 = vpop.f32.mrf.mxu0
  %v4919 = vadd.f32 0.0, %v4918
  %v4920 = vpop.f32.mrf.mxu0
  %v4921 = vadd.f32 0.0, %v4920
  %4922 = vmatmul.bf16.gmra.mxu0 %v4719
  %v4923 = vpop.f32.mrf.mxu0
  %v4924 = vadd.f32 0.0, %v4923
  %v4925 = vpop.f32.mrf.mxu0
  %v4926 = vadd.f32 0.0, %v4925
  %4927 = vdwg.mxu0
  %v4928 = vadd.f32 %v4593, %v4820
  %v4929 = vadd.f32 %v4594, %v4879
  %v4930 = vadd.f32 %v4595, %v4822
  %v4931 = vadd.f32 %v4596, %v4881
  %v4932 = vadd.f32 %v4597, %v4825
  %v4933 = vadd.f32 %v4598, %v4884
  %v4934 = vadd.f32 %v4599, %v4827
  %v4935 = vadd.f32 %v4600, %v4886
  %v4936 = vadd.f32 %v4601, %v4830
  %v4937 = vadd.f32 %v4602, %v4889
  %v4938 = vadd.f32 %v4603, %v4832
  %v4939 = vadd.f32 %v4604, %v4891
  %v4940 = vadd.f32 %v4605, %v4835
  %v4941 = vadd.f32 %v4606, %v4894
  %v4942 = vadd.f32 %v4607, %v4837
  %v4943 = vadd.f32 %v4608, %v4896
  %v4944 = vadd.f32 %v4609, %v4840
  %v4945 = vadd.f32 %v4610, %v4899
  %v4946 = vadd.f32 %v4611, %v4842
  %v4947 = vadd.f32 %v4612, %v4901
  %v4948 = vadd.f32 %v4613, %v4845
  %v4949 = vadd.f32 %v4614, %v4904
  %v4950 = vadd.f32 %v4615, %v4847
  %v4951 = vadd.f32 %v4616, %v4906
  %v4952 = vadd.f32 %v4617, %v4850
  %v4953 = vadd.f32 %v4618, %v4909
  %v4954 = vadd.f32 %v4619, %v4852
  %v4955 = vadd.f32 %v4620, %v4911
  %v4956 = vadd.f32 %v4621, %v4855
  %v4957 = vadd.f32 %v4622, %v4914
  %v4958 = vadd.f32 %v4623, %v4857
  %v4959 = vadd.f32 %v4624, %v4916
  %v4960 = vadd.f32 %v4625, %v4860
  %v4961 = vadd.f32 %v4626, %v4919
  %v4962 = vadd.f32 %v4627, %v4862
  %v4963 = vadd.f32 %v4628, %v4921
  %v4964 = vadd.f32 %v4629, %v4865
  %v4965 = vadd.f32 %v4630, %v4924
  %v4966 = vadd.f32 %v4631, %v4867
  %v4967 = vadd.f32 %v4632, %v4926
  %v4968 = vmax.f32 %v4928, %v4929
  %v4969 = vmax.f32 %v4930, %v4931
  %v4970 = vmax.f32 %v4932, %v4933
  %v4971 = vmax.f32 %v4934, %v4935
  %v4972 = vmax.f32 %v4936, %v4937
  %v4973 = vmax.f32 %v4938, %v4939
  %v4974 = vmax.f32 %v4940, %v4941
  %v4975 = vmax.f32 %v4942, %v4943
  %v4976 = vmax.f32 %v4944, %v4945
  %v4977 = vmax.f32 %v4946, %v4947
  %v4978 = vmax.f32 %v4948, %v4949
  %v4979 = vmax.f32 %v4950, %v4951
  %v4980 = vmax.f32 %v4952, %v4953
  %v4981 = vmax.f32 %v4954, %v4955
  %v4982 = vmax.f32 %v4956, %v4957
  %v4983 = vmax.f32 %v4958, %v4959
  %v4984 = vmax.f32 %v4960, %v4961
  %v4985 = vmax.f32 %v4962, %v4963
  %v4986 = vmax.f32 %v4964, %v4965
  %v4987 = vmax.f32 %v4966, %v4967
  %v4988 = vmax.f32 %v4968, %v4970
  %v4989 = vmax.f32 %v4969, %v4971
  %v4990 = vmax.f32 %v4972, %v4974
  %v4991 = vmax.f32 %v4973, %v4975
  %v4992 = vmax.f32 %v4976, %v4978
  %v4993 = vmax.f32 %v4977, %v4979
  %v4994 = vmax.f32 %v4980, %v4982
  %v4995 = vmax.f32 %v4981, %v4983
  %v4996 = vmax.f32 %v4984, %v4986
  %v4997 = vmax.f32 %v4985, %v4987
  %v4998 = vld [vmem:[%s4] sm:$0x1]
  %v5000 = vperm.slane %v4998, 0
  %v5002 = vadd.f32 %v4988, %v5000
  %v5003 = vadd.f32 %v4989, %v5000
  %v5004 = vadd.f32 %v4990, %v5000
  %v5005 = vadd.f32 %v4991, %v5000
  %v5006 = vadd.f32 %v4992, %v5000
  %v5007 = vadd.f32 %v4993, %v5000
  %v5008 = vadd.f32 %v4994, %v5000
  %v5009 = vadd.f32 %v4995, %v5000
  %v5010 = vadd.f32 %v4996, %v5000
  %v5011 = vadd.f32 %v4997, %v5000
  %v5012 = vmax.f32 %v5002, 0.0
  %v5013 = vmax.f32 %v5003, 0.0
  %v5014 = vmax.f32 %v5004, 0.0
  %v5015 = vmax.f32 %v5005, 0.0
  %v5016 = vmax.f32 %v5006, 0.0
  %v5017 = vmax.f32 %v5007, 0.0
  %v5018 = vmax.f32 %v5008, 0.0
  %v5019 = vmax.f32 %v5009, 0.0
  %v5020 = vmax.f32 %v5010, 0.0
  %v5021 = vmax.f32 %v5011, 0.0
  %v5022 = vpack.c.bf16 %v5012, %v5012
  %v5023 = vpack.c.bf16 %v5013, %v5013
  %v5024 = vpack.c.bf16 %v5014, %v5014
  %v5025 = vpack.c.bf16 %v5015, %v5015
  %v5026 = vpack.c.bf16 %v5016, %v5016
  %v5027 = vpack.c.bf16 %v5017, %v5017
  %v5028 = vpack.c.bf16 %v5018, %v5018
  %v5029 = vpack.c.bf16 %v5019, %v5019
  %v5030 = vpack.c.bf16 %v5020, %v5020
  %v5031 = vpack.c.bf16 %v5021, %v5021
  %5032 = vst [vmem:[#allocation3] sm:$0xf] %v5022
  %5033 = vst [vmem:[#allocation3 + $0x4] sm:$0xf] %v5023
  %5034 = vst [vmem:[#allocation3 + $0x8] sm:$0xf] %v5024
  %5035 = vst [vmem:[#allocation3 + $0xc] sm:$0xf] %v5025
  %5036 = vst [vmem:[#allocation3 + $0x10] sm:$0xf] %v5026
  %5037 = vst [vmem:[#allocation3 + $0x14] sm:$0xf] %v5027
  %5038 = vst [vmem:[#allocation3 + $0x18] sm:$0xf] %v5028
  %5039 = vst [vmem:[#allocation3 + $0x1c] sm:$0xf] %v5029
  %5040 = vst [vmem:[#allocation3 + $0x20] sm:$0xf] %v5030
  %5041 = vst [vmem:[#allocation3 + $0x24] sm:$0xf] %v5031
  %v5042 = vld [vmem:[#allocation3] sm:$0xf]
  %v5043 = vld [vmem:[#allocation3 + $0x4] sm:$0xf]
  %v5044 = vld [vmem:[%s5] sm:$0xff]
  %v5045 = vld [vmem:[%s5 + $0x8] sm:$0xff]
  %v5046 = vld [vmem:[%s5 + $0x10] sm:$0xff]
  %v5047 = vld [vmem:[%s5 + $0x18] sm:$0xff]
  %v5048 = vld [vmem:[%s5 + $0x20] sm:$0xff]
  %v5049 = vld [vmem:[%s5 + $0x28] sm:$0xff]
  %v5050 = vld [vmem:[%s5 + $0x30] sm:$0xff]
  %v5051 = vld [vmem:[%s5 + $0x38] sm:$0xff]
  %v5052 = vld [vmem:[%s5 + $0x40] sm:$0xff]
  %v5053 = vld [vmem:[%s5 + $0x48] sm:$0xff]
  %v5054 = vld [vmem:[%s5 + $0x50] sm:$0xff]
  %v5055 = vld [vmem:[%s5 + $0x58] sm:$0xff]
  %v5056 = vld [vmem:[%s5 + $0x60] sm:$0xff]
  %v5057 = vld [vmem:[%s5 + $0x68] sm:$0xff]
  %v5058 = vld [vmem:[%s5 + $0x70] sm:$0xff]
  %v5059 = vld [vmem:[%s5 + $0x78] sm:$0xff]
  %v5060 = vld [vmem:[#allocation3 + $0x8] sm:$0xf]
  %v5061 = vld [vmem:[#allocation3 + $0xc] sm:$0xf]
  %s5062 = scalar_lea.vmem %s5, 128
  %v5063 = vld [vmem:[%s5062] sm:$0xff]
  %v5064 = vld [vmem:[%s5062 + $0x8] sm:$0xff]
  %v5065 = vld [vmem:[%s5062 + $0x10] sm:$0xff]
  %v5066 = vld [vmem:[%s5062 + $0x18] sm:$0xff]
  %v5067 = vld [vmem:[%s5062 + $0x20] sm:$0xff]
  %v5068 = vld [vmem:[%s5062 + $0x28] sm:$0xff]
  %v5069 = vld [vmem:[%s5062 + $0x30] sm:$0xff]
  %v5070 = vld [vmem:[%s5062 + $0x38] sm:$0xff]
  %v5071 = vld [vmem:[%s5062 + $0x40] sm:$0xff]
  %v5072 = vld [vmem:[%s5062 + $0x48] sm:$0xff]
  %v5073 = vld [vmem:[%s5062 + $0x50] sm:$0xff]
  %v5074 = vld [vmem:[%s5062 + $0x58] sm:$0xff]
  %v5075 = vld [vmem:[%s5062 + $0x60] sm:$0xff]
  %v5076 = vld [vmem:[%s5062 + $0x68] sm:$0xff]
  %v5077 = vld [vmem:[%s5062 + $0x70] sm:$0xff]
  %v5078 = vld [vmem:[%s5062 + $0x78] sm:$0xff]
  %v5081 = vunpack.c.l.b16 %v5060
  %v5082 = vunpack.c.l.b16 %v5061
  %v5083 = vpack.c.b16 %v5082, %v5081
  %v5101 = vunpack.c.l.b16 %v5063
  %v5102 = vunpack.c.h.b16 %v5063
  %v5103 = vunpack.c.l.b16 %v5064
  %v5104 = vunpack.c.h.b16 %v5064
  %v5105 = vunpack.c.l.b16 %v5065
  %v5106 = vunpack.c.h.b16 %v5065
  %v5107 = vunpack.c.l.b16 %v5066
  %v5108 = vunpack.c.h.b16 %v5066
  %v5109 = vunpack.c.l.b16 %v5067
  %v5110 = vunpack.c.h.b16 %v5067
  %v5111 = vunpack.c.l.b16 %v5068
  %v5112 = vunpack.c.h.b16 %v5068
  %v5113 = vunpack.c.l.b16 %v5069
  %v5114 = vunpack.c.h.b16 %v5069
  %v5115 = vunpack.c.l.b16 %v5070
  %v5116 = vunpack.c.h.b16 %v5070
  %v5117 = vunpack.c.l.b16 %v5071
  %v5118 = vunpack.c.h.b16 %v5071
  %v5119 = vunpack.c.l.b16 %v5072
  %v5120 = vunpack.c.h.b16 %v5072
  %v5121 = vunpack.c.l.b16 %v5073
  %v5122 = vunpack.c.h.b16 %v5073
  %v5123 = vunpack.c.l.b16 %v5074
  %v5124 = vunpack.c.h.b16 %v5074
  %v5125 = vunpack.c.l.b16 %v5075
  %v5126 = vunpack.c.h.b16 %v5075
  %v5127 = vunpack.c.l.b16 %v5076
  %v5128 = vunpack.c.h.b16 %v5076
  %v5129 = vunpack.c.l.b16 %v5077
  %v5130 = vunpack.c.h.b16 %v5077
  %v5131 = vunpack.c.l.b16 %v5078
  %v5132 = vunpack.c.h.b16 %v5078
  %v5133 = vpack.c.b16 %v5103, %v5101
  %v5134 = vpack.c.b16 %v5104, %v5102
  %v5135 = vpack.c.b16 %v5107, %v5105
  %v5136 = vpack.c.b16 %v5108, %v5106
  %v5137 = vpack.c.b16 %v5111, %v5109
  %v5138 = vpack.c.b16 %v5112, %v5110
  %v5139 = vpack.c.b16 %v5115, %v5113
  %v5140 = vpack.c.b16 %v5116, %v5114
  %v5141 = vpack.c.b16 %v5119, %v5117
  %v5142 = vpack.c.b16 %v5120, %v5118
  %v5143 = vpack.c.b16 %v5123, %v5121
  %v5144 = vpack.c.b16 %v5124, %v5122
  %v5145 = vpack.c.b16 %v5127, %v5125
  %v5146 = vpack.c.b16 %v5128, %v5126
  %v5147 = vpack.c.b16 %v5131, %v5129
  %v5148 = vpack.c.b16 %v5132, %v5130
  %5165 = vmatpush.bf16.msra.mxu0 %v5147
  %5166 = vmatpush.bf16.msra.mxu0 %v5145
  %5167 = vmatpush.bf16.msra.mxu0 %v5143
  %5168 = vmatpush.bf16.msra.mxu0 %v5141
  %5169 = vmatpush.bf16.msra.mxu0 %v5139
  %5170 = vmatpush.bf16.msra.mxu0 %v5137
  %5171 = vmatpush.bf16.msra.mxu0 %v5135
  %5172 = vmatpush.bf16.msra.mxu0 %v5133
  %5173 = vmatmul.bf16.gmra.mxu0 %v5083
  %v5174 = vpop.f32.mrf.mxu0
  %v5175 = vadd.f32 0.0, %v5174
  %v5176 = vpop.f32.mrf.mxu0
  %v5177 = vadd.f32 0.0, %v5176
  %5178 = vdwg.mxu0
  %5179 = vmatpush.bf16.msra.mxu0 %v5148
  %5180 = vmatpush.bf16.msra.mxu0 %v5146
  %5181 = vmatpush.bf16.msra.mxu0 %v5144
  %5182 = vmatpush.bf16.msra.mxu0 %v5142
  %5183 = vmatpush.bf16.msra.mxu0 %v5140
  %5184 = vmatpush.bf16.msra.mxu0 %v5138
  %5185 = vmatpush.bf16.msra.mxu0 %v5136
  %5186 = vmatpush.bf16.msra.mxu0 %v5134
  %5187 = vmatmul.bf16.gmra.mxu0 %v5083
  %v5188 = vpop.f32.mrf.mxu0
  %v5189 = vadd.f32 0.0, %v5188
  %v5190 = vpop.f32.mrf.mxu0
  %v5191 = vadd.f32 0.0, %v5190
  %5192 = vdwg.mxu0
  %v5195 = vunpack.c.l.b16 %v5042
  %v5196 = vunpack.c.l.b16 %v5043
  %v5197 = vpack.c.b16 %v5196, %v5195
  %v5215 = vunpack.c.l.b16 %v5044
  %v5216 = vunpack.c.h.b16 %v5044
  %v5217 = vunpack.c.l.b16 %v5045
  %v5218 = vunpack.c.h.b16 %v5045
  %v5219 = vunpack.c.l.b16 %v5046
  %v5220 = vunpack.c.h.b16 %v5046
  %v5221 = vunpack.c.l.b16 %v5047
  %v5222 = vunpack.c.h.b16 %v5047
  %v5223 = vunpack.c.l.b16 %v5048
  %v5224 = vunpack.c.h.b16 %v5048
  %v5225 = vunpack.c.l.b16 %v5049
  %v5226 = vunpack.c.h.b16 %v5049
  %v5227 = vunpack.c.l.b16 %v5050
  %v5228 = vunpack.c.h.b16 %v5050
  %v5229 = vunpack.c.l.b16 %v5051
  %v5230 = vunpack.c.h.b16 %v5051
  %v5231 = vunpack.c.l.b16 %v5052
  %v5232 = vunpack.c.h.b16 %v5052
  %v5233 = vunpack.c.l.b16 %v5053
  %v5234 = vunpack.c.h.b16 %v5053
  %v5235 = vunpack.c.l.b16 %v5054
  %v5236 = vunpack.c.h.b16 %v5054
  %v5237 = vunpack.c.l.b16 %v5055
  %v5238 = vunpack.c.h.b16 %v5055
  %v5239 = vunpack.c.l.b16 %v5056
  %v5240 = vunpack.c.h.b16 %v5056
  %v5241 = vunpack.c.l.b16 %v5057
  %v5242 = vunpack.c.h.b16 %v5057
  %v5243 = vunpack.c.l.b16 %v5058
  %v5244 = vunpack.c.h.b16 %v5058
  %v5245 = vunpack.c.l.b16 %v5059
  %v5246 = vunpack.c.h.b16 %v5059
  %v5247 = vpack.c.b16 %v5217, %v5215
  %v5248 = vpack.c.b16 %v5218, %v5216
  %v5249 = vpack.c.b16 %v5221, %v5219
  %v5250 = vpack.c.b16 %v5222, %v5220
  %v5251 = vpack.c.b16 %v5225, %v5223
  %v5252 = vpack.c.b16 %v5226, %v5224
  %v5253 = vpack.c.b16 %v5229, %v5227
  %v5254 = vpack.c.b16 %v5230, %v5228
  %v5255 = vpack.c.b16 %v5233, %v5231
  %v5256 = vpack.c.b16 %v5234, %v5232
  %v5257 = vpack.c.b16 %v5237, %v5235
  %v5258 = vpack.c.b16 %v5238, %v5236
  %v5259 = vpack.c.b16 %v5241, %v5239
  %v5260 = vpack.c.b16 %v5242, %v5240
  %v5261 = vpack.c.b16 %v5245, %v5243
  %v5262 = vpack.c.b16 %v5246, %v5244
  %5279 = vmatpush.bf16.msra.mxu0 %v5261
  %5280 = vmatpush.bf16.msra.mxu0 %v5259
  %5281 = vmatpush.bf16.msra.mxu0 %v5257
  %5282 = vmatpush.bf16.msra.mxu0 %v5255
  %5283 = vmatpush.bf16.msra.mxu0 %v5253
  %5284 = vmatpush.bf16.msra.mxu0 %v5251
  %5285 = vmatpush.bf16.msra.mxu0 %v5249
  %5286 = vmatpush.bf16.msra.mxu0 %v5247
  %5287 = vmatmul.bf16.gmra.mxu0 %v5197
  %v5288 = vpop.f32.mrf.mxu0
  %v5289 = vadd.f32 %v5175, %v5288
  %v5290 = vpop.f32.mrf.mxu0
  %v5291 = vadd.f32 %v5177, %v5290
  %5292 = vdwg.mxu0
  %5293 = vmatpush.bf16.msra.mxu0 %v5262
  %5294 = vmatpush.bf16.msra.mxu0 %v5260
  %5295 = vmatpush.bf16.msra.mxu0 %v5258
  %5296 = vmatpush.bf16.msra.mxu0 %v5256
  %5297 = vmatpush.bf16.msra.mxu0 %v5254
  %5298 = vmatpush.bf16.msra.mxu0 %v5252
  %5299 = vmatpush.bf16.msra.mxu0 %v5250
  %5300 = vmatpush.bf16.msra.mxu0 %v5248
  %5301 = vmatmul.bf16.gmra.mxu0 %v5197
  %v5302 = vpop.f32.mrf.mxu0
  %v5303 = vadd.f32 %v5189, %v5302
  %v5304 = vpop.f32.mrf.mxu0
  %v5305 = vadd.f32 %v5191, %v5304
  %5306 = vdwg.mxu0
  %v5307 = vld [vmem:[#allocation3 + $0x10] sm:$0xf]
  %v5308 = vld [vmem:[#allocation3 + $0x14] sm:$0xf]
  %s5309 = scalar_lea.vmem %s5, 256
  %v5310 = vld [vmem:[%s5309] sm:$0xff]
  %v5311 = vld [vmem:[%s5309 + $0x8] sm:$0xff]
  %v5312 = vld [vmem:[%s5309 + $0x10] sm:$0xff]
  %v5313 = vld [vmem:[%s5309 + $0x18] sm:$0xff]
  %v5314 = vld [vmem:[%s5309 + $0x20] sm:$0xff]
  %v5315 = vld [vmem:[%s5309 + $0x28] sm:$0xff]
  %v5316 = vld [vmem:[%s5309 + $0x30] sm:$0xff]
  %v5317 = vld [vmem:[%s5309 + $0x38] sm:$0xff]
  %v5318 = vld [vmem:[%s5309 + $0x40] sm:$0xff]
  %v5319 = vld [vmem:[%s5309 + $0x48] sm:$0xff]
  %v5320 = vld [vmem:[%s5309 + $0x50] sm:$0xff]
  %v5321 = vld [vmem:[%s5309 + $0x58] sm:$0xff]
  %v5322 = vld [vmem:[%s5309 + $0x60] sm:$0xff]
  %v5323 = vld [vmem:[%s5309 + $0x68] sm:$0xff]
  %v5324 = vld [vmem:[%s5309 + $0x70] sm:$0xff]
  %v5325 = vld [vmem:[%s5309 + $0x78] sm:$0xff]
  %v5328 = vunpack.c.l.b16 %v5307
  %v5329 = vunpack.c.l.b16 %v5308
  %v5330 = vpack.c.b16 %v5329, %v5328
  %v5348 = vunpack.c.l.b16 %v5310
  %v5349 = vunpack.c.h.b16 %v5310
  %v5350 = vunpack.c.l.b16 %v5311
  %v5351 = vunpack.c.h.b16 %v5311
  %v5352 = vunpack.c.l.b16 %v5312
  %v5353 = vunpack.c.h.b16 %v5312
  %v5354 = vunpack.c.l.b16 %v5313
  %v5355 = vunpack.c.h.b16 %v5313
  %v5356 = vunpack.c.l.b16 %v5314
  %v5357 = vunpack.c.h.b16 %v5314
  %v5358 = vunpack.c.l.b16 %v5315
  %v5359 = vunpack.c.h.b16 %v5315
  %v5360 = vunpack.c.l.b16 %v5316
  %v5361 = vunpack.c.h.b16 %v5316
  %v5362 = vunpack.c.l.b16 %v5317
  %v5363 = vunpack.c.h.b16 %v5317
  %v5364 = vunpack.c.l.b16 %v5318
  %v5365 = vunpack.c.h.b16 %v5318
  %v5366 = vunpack.c.l.b16 %v5319
  %v5367 = vunpack.c.h.b16 %v5319
  %v5368 = vunpack.c.l.b16 %v5320
  %v5369 = vunpack.c.h.b16 %v5320
  %v5370 = vunpack.c.l.b16 %v5321
  %v5371 = vunpack.c.h.b16 %v5321
  %v5372 = vunpack.c.l.b16 %v5322
  %v5373 = vunpack.c.h.b16 %v5322
  %v5374 = vunpack.c.l.b16 %v5323
  %v5375 = vunpack.c.h.b16 %v5323
  %v5376 = vunpack.c.l.b16 %v5324
  %v5377 = vunpack.c.h.b16 %v5324
  %v5378 = vunpack.c.l.b16 %v5325
  %v5379 = vunpack.c.h.b16 %v5325
  %v5380 = vpack.c.b16 %v5350, %v5348
  %v5381 = vpack.c.b16 %v5351, %v5349
  %v5382 = vpack.c.b16 %v5354, %v5352
  %v5383 = vpack.c.b16 %v5355, %v5353
  %v5384 = vpack.c.b16 %v5358, %v5356
  %v5385 = vpack.c.b16 %v5359, %v5357
  %v5386 = vpack.c.b16 %v5362, %v5360
  %v5387 = vpack.c.b16 %v5363, %v5361
  %v5388 = vpack.c.b16 %v5366, %v5364
  %v5389 = vpack.c.b16 %v5367, %v5365
  %v5390 = vpack.c.b16 %v5370, %v5368
  %v5391 = vpack.c.b16 %v5371, %v5369
  %v5392 = vpack.c.b16 %v5374, %v5372
  %v5393 = vpack.c.b16 %v5375, %v5373
  %v5394 = vpack.c.b16 %v5378, %v5376
  %v5395 = vpack.c.b16 %v5379, %v5377
  %5412 = vmatpush.bf16.msra.mxu0 %v5394
  %5413 = vmatpush.bf16.msra.mxu0 %v5392
  %5414 = vmatpush.bf16.msra.mxu0 %v5390
  %5415 = vmatpush.bf16.msra.mxu0 %v5388
  %5416 = vmatpush.bf16.msra.mxu0 %v5386
  %5417 = vmatpush.bf16.msra.mxu0 %v5384
  %5418 = vmatpush.bf16.msra.mxu0 %v5382
  %5419 = vmatpush.bf16.msra.mxu0 %v5380
  %5420 = vmatmul.bf16.gmra.mxu0 %v5330
  %v5421 = vpop.f32.mrf.mxu0
  %v5422 = vadd.f32 0.0, %v5421
  %v5423 = vpop.f32.mrf.mxu0
  %v5424 = vadd.f32 0.0, %v5423
  %5425 = vdwg.mxu0
  %5426 = vmatpush.bf16.msra.mxu0 %v5395
  %5427 = vmatpush.bf16.msra.mxu0 %v5393
  %5428 = vmatpush.bf16.msra.mxu0 %v5391
  %5429 = vmatpush.bf16.msra.mxu0 %v5389
  %5430 = vmatpush.bf16.msra.mxu0 %v5387
  %5431 = vmatpush.bf16.msra.mxu0 %v5385
  %5432 = vmatpush.bf16.msra.mxu0 %v5383
  %5433 = vmatpush.bf16.msra.mxu0 %v5381
  %5434 = vmatmul.bf16.gmra.mxu0 %v5330
  %v5435 = vpop.f32.mrf.mxu0
  %v5436 = vadd.f32 0.0, %v5435
  %v5437 = vpop.f32.mrf.mxu0
  %v5438 = vadd.f32 0.0, %v5437
  %5439 = vdwg.mxu0
  %v5440 = vadd.f32 %v5289, %v5422
  %v5441 = vadd.f32 %v5303, %v5436
  %v5442 = vadd.f32 %v5291, %v5424
  %v5443 = vadd.f32 %v5305, %v5438
  %v5444 = vld [vmem:[#allocation3 + $0x18] sm:$0xf]
  %v5445 = vld [vmem:[#allocation3 + $0x1c] sm:$0xf]
  %s5446 = scalar_lea.vmem %s5, 384
  %v5447 = vld [vmem:[%s5446] sm:$0xff]
  %v5448 = vld [vmem:[%s5446 + $0x8] sm:$0xff]
  %v5449 = vld [vmem:[%s5446 + $0x10] sm:$0xff]
  %v5450 = vld [vmem:[%s5446 + $0x18] sm:$0xff]
  %v5451 = vld [vmem:[%s5446 + $0x20] sm:$0xff]
  %v5452 = vld [vmem:[%s5446 + $0x28] sm:$0xff]
  %v5453 = vld [vmem:[%s5446 + $0x30] sm:$0xff]
  %v5454 = vld [vmem:[%s5446 + $0x38] sm:$0xff]
  %v5455 = vld [vmem:[%s5446 + $0x40] sm:$0xff]
  %v5456 = vld [vmem:[%s5446 + $0x48] sm:$0xff]
  %v5457 = vld [vmem:[%s5446 + $0x50] sm:$0xff]
  %v5458 = vld [vmem:[%s5446 + $0x58] sm:$0xff]
  %v5459 = vld [vmem:[%s5446 + $0x60] sm:$0xff]
  %v5460 = vld [vmem:[%s5446 + $0x68] sm:$0xff]
  %v5461 = vld [vmem:[%s5446 + $0x70] sm:$0xff]
  %v5462 = vld [vmem:[%s5446 + $0x78] sm:$0xff]
  %v5465 = vunpack.c.l.b16 %v5444
  %v5466 = vunpack.c.l.b16 %v5445
  %v5467 = vpack.c.b16 %v5466, %v5465
  %v5485 = vunpack.c.l.b16 %v5447
  %v5486 = vunpack.c.h.b16 %v5447
  %v5487 = vunpack.c.l.b16 %v5448
  %v5488 = vunpack.c.h.b16 %v5448
  %v5489 = vunpack.c.l.b16 %v5449
  %v5490 = vunpack.c.h.b16 %v5449
  %v5491 = vunpack.c.l.b16 %v5450
  %v5492 = vunpack.c.h.b16 %v5450
  %v5493 = vunpack.c.l.b16 %v5451
  %v5494 = vunpack.c.h.b16 %v5451
  %v5495 = vunpack.c.l.b16 %v5452
  %v5496 = vunpack.c.h.b16 %v5452
  %v5497 = vunpack.c.l.b16 %v5453
  %v5498 = vunpack.c.h.b16 %v5453
  %v5499 = vunpack.c.l.b16 %v5454
  %v5500 = vunpack.c.h.b16 %v5454
  %v5501 = vunpack.c.l.b16 %v5455
  %v5502 = vunpack.c.h.b16 %v5455
  %v5503 = vunpack.c.l.b16 %v5456
  %v5504 = vunpack.c.h.b16 %v5456
  %v5505 = vunpack.c.l.b16 %v5457
  %v5506 = vunpack.c.h.b16 %v5457
  %v5507 = vunpack.c.l.b16 %v5458
  %v5508 = vunpack.c.h.b16 %v5458
  %v5509 = vunpack.c.l.b16 %v5459
  %v5510 = vunpack.c.h.b16 %v5459
  %v5511 = vunpack.c.l.b16 %v5460
  %v5512 = vunpack.c.h.b16 %v5460
  %v5513 = vunpack.c.l.b16 %v5461
  %v5514 = vunpack.c.h.b16 %v5461
  %v5515 = vunpack.c.l.b16 %v5462
  %v5516 = vunpack.c.h.b16 %v5462
  %v5517 = vpack.c.b16 %v5487, %v5485
  %v5518 = vpack.c.b16 %v5488, %v5486
  %v5519 = vpack.c.b16 %v5491, %v5489
  %v5520 = vpack.c.b16 %v5492, %v5490
  %v5521 = vpack.c.b16 %v5495, %v5493
  %v5522 = vpack.c.b16 %v5496, %v5494
  %v5523 = vpack.c.b16 %v5499, %v5497
  %v5524 = vpack.c.b16 %v5500, %v5498
  %v5525 = vpack.c.b16 %v5503, %v5501
  %v5526 = vpack.c.b16 %v5504, %v5502
  %v5527 = vpack.c.b16 %v5507, %v5505
  %v5528 = vpack.c.b16 %v5508, %v5506
  %v5529 = vpack.c.b16 %v5511, %v5509
  %v5530 = vpack.c.b16 %v5512, %v5510
  %v5531 = vpack.c.b16 %v5515, %v5513
  %v5532 = vpack.c.b16 %v5516, %v5514
  %5549 = vmatpush.bf16.msra.mxu0 %v5531
  %5550 = vmatpush.bf16.msra.mxu0 %v5529
  %5551 = vmatpush.bf16.msra.mxu0 %v5527
  %5552 = vmatpush.bf16.msra.mxu0 %v5525
  %5553 = vmatpush.bf16.msra.mxu0 %v5523
  %5554 = vmatpush.bf16.msra.mxu0 %v5521
  %5555 = vmatpush.bf16.msra.mxu0 %v5519
  %5556 = vmatpush.bf16.msra.mxu0 %v5517
  %5557 = vmatmul.bf16.gmra.mxu0 %v5467
  %v5558 = vpop.f32.mrf.mxu0
  %v5559 = vadd.f32 0.0, %v5558
  %v5560 = vpop.f32.mrf.mxu0
  %v5561 = vadd.f32 0.0, %v5560
  %5562 = vdwg.mxu0
  %5563 = vmatpush.bf16.msra.mxu0 %v5532
  %5564 = vmatpush.bf16.msra.mxu0 %v5530
  %5565 = vmatpush.bf16.msra.mxu0 %v5528
  %5566 = vmatpush.bf16.msra.mxu0 %v5526
  %5567 = vmatpush.bf16.msra.mxu0 %v5524
  %5568 = vmatpush.bf16.msra.mxu0 %v5522
  %5569 = vmatpush.bf16.msra.mxu0 %v5520
  %5570 = vmatpush.bf16.msra.mxu0 %v5518
  %5571 = vmatmul.bf16.gmra.mxu0 %v5467
  %v5572 = vpop.f32.mrf.mxu0
  %v5573 = vadd.f32 0.0, %v5572
  %v5574 = vpop.f32.mrf.mxu0
  %v5575 = vadd.f32 0.0, %v5574
  %5576 = vdwg.mxu0
  %v5577 = vadd.f32 %v5440, %v5559
  %v5578 = vadd.f32 %v5441, %v5573
  %v5579 = vadd.f32 %v5442, %v5561
  %v5580 = vadd.f32 %v5443, %v5575
  %v5581 = vld [vmem:[#allocation3 + $0x20] sm:$0xf]
  %v5582 = vld [vmem:[#allocation3 + $0x24] sm:$0xf]
  %s5583 = scalar_lea.vmem %s5, 512
  %v5584 = vld [vmem:[%s5583] sm:$0xff]
  %v5585 = vld [vmem:[%s5583 + $0x8] sm:$0xff]
  %v5586 = vld [vmem:[%s5583 + $0x10] sm:$0xff]
  %v5587 = vld [vmem:[%s5583 + $0x18] sm:$0xff]
  %v5588 = vld [vmem:[%s5583 + $0x20] sm:$0xff]
  %v5589 = vld [vmem:[%s5583 + $0x28] sm:$0xff]
  %v5590 = vld [vmem:[%s5583 + $0x30] sm:$0xff]
  %v5591 = vld [vmem:[%s5583 + $0x38] sm:$0xff]
  %v5592 = vld [vmem:[%s5583 + $0x40] sm:$0xff]
  %v5593 = vld [vmem:[%s5583 + $0x48] sm:$0xff]
  %v5594 = vld [vmem:[%s5583 + $0x50] sm:$0xff]
  %v5595 = vld [vmem:[%s5583 + $0x58] sm:$0xff]
  %v5596 = vld [vmem:[%s5583 + $0x60] sm:$0xff]
  %v5597 = vld [vmem:[%s5583 + $0x68] sm:$0xff]
  %v5598 = vld [vmem:[%s5583 + $0x70] sm:$0xff]
  %v5599 = vld [vmem:[%s5583 + $0x78] sm:$0xff]
  %v5602 = vunpack.c.l.b16 %v5581
  %v5603 = vunpack.c.l.b16 %v5582
  %v5604 = vpack.c.b16 %v5603, %v5602
  %v5622 = vunpack.c.l.b16 %v5584
  %v5623 = vunpack.c.h.b16 %v5584
  %v5624 = vunpack.c.l.b16 %v5585
  %v5625 = vunpack.c.h.b16 %v5585
  %v5626 = vunpack.c.l.b16 %v5586
  %v5627 = vunpack.c.h.b16 %v5586
  %v5628 = vunpack.c.l.b16 %v5587
  %v5629 = vunpack.c.h.b16 %v5587
  %v5630 = vunpack.c.l.b16 %v5588
  %v5631 = vunpack.c.h.b16 %v5588
  %v5632 = vunpack.c.l.b16 %v5589
  %v5633 = vunpack.c.h.b16 %v5589
  %v5634 = vunpack.c.l.b16 %v5590
  %v5635 = vunpack.c.h.b16 %v5590
  %v5636 = vunpack.c.l.b16 %v5591
  %v5637 = vunpack.c.h.b16 %v5591
  %v5638 = vunpack.c.l.b16 %v5592
  %v5639 = vunpack.c.h.b16 %v5592
  %v5640 = vunpack.c.l.b16 %v5593
  %v5641 = vunpack.c.h.b16 %v5593
  %v5642 = vunpack.c.l.b16 %v5594
  %v5643 = vunpack.c.h.b16 %v5594
  %v5644 = vunpack.c.l.b16 %v5595
  %v5645 = vunpack.c.h.b16 %v5595
  %v5646 = vunpack.c.l.b16 %v5596
  %v5647 = vunpack.c.h.b16 %v5596
  %v5648 = vunpack.c.l.b16 %v5597
  %v5649 = vunpack.c.h.b16 %v5597
  %v5650 = vunpack.c.l.b16 %v5598
  %v5651 = vunpack.c.h.b16 %v5598
  %v5652 = vunpack.c.l.b16 %v5599
  %v5653 = vunpack.c.h.b16 %v5599
  %v5654 = vpack.c.b16 %v5624, %v5622
  %v5655 = vpack.c.b16 %v5625, %v5623
  %v5656 = vpack.c.b16 %v5628, %v5626
  %v5657 = vpack.c.b16 %v5629, %v5627
  %v5658 = vpack.c.b16 %v5632, %v5630
  %v5659 = vpack.c.b16 %v5633, %v5631
  %v5660 = vpack.c.b16 %v5636, %v5634
  %v5661 = vpack.c.b16 %v5637, %v5635
  %v5662 = vpack.c.b16 %v5640, %v5638
  %v5663 = vpack.c.b16 %v5641, %v5639
  %v5664 = vpack.c.b16 %v5644, %v5642
  %v5665 = vpack.c.b16 %v5645, %v5643
  %v5666 = vpack.c.b16 %v5648, %v5646
  %v5667 = vpack.c.b16 %v5649, %v5647
  %v5668 = vpack.c.b16 %v5652, %v5650
  %v5669 = vpack.c.b16 %v5653, %v5651
  %5686 = vmatpush.bf16.msra.mxu0 %v5668
  %5687 = vmatpush.bf16.msra.mxu0 %v5666
  %5688 = vmatpush.bf16.msra.mxu0 %v5664
  %5689 = vmatpush.bf16.msra.mxu0 %v5662
  %5690 = vmatpush.bf16.msra.mxu0 %v5660
  %5691 = vmatpush.bf16.msra.mxu0 %v5658
  %5692 = vmatpush.bf16.msra.mxu0 %v5656
  %5693 = vmatpush.bf16.msra.mxu0 %v5654
  %5694 = vmatmul.bf16.gmra.mxu0 %v5604
  %v5695 = vpop.f32.mrf.mxu0
  %v5696 = vadd.f32 0.0, %v5695
  %v5697 = vpop.f32.mrf.mxu0
  %v5698 = vadd.f32 0.0, %v5697
  %5699 = vdwg.mxu0
  %5700 = vmatpush.bf16.msra.mxu0 %v5669
  %5701 = vmatpush.bf16.msra.mxu0 %v5667
  %5702 = vmatpush.bf16.msra.mxu0 %v5665
  %5703 = vmatpush.bf16.msra.mxu0 %v5663
  %5704 = vmatpush.bf16.msra.mxu0 %v5661
  %5705 = vmatpush.bf16.msra.mxu0 %v5659
  %5706 = vmatpush.bf16.msra.mxu0 %v5657
  %5707 = vmatpush.bf16.msra.mxu0 %v5655
  %5708 = vmatmul.bf16.gmra.mxu0 %v5604
  %v5709 = vpop.f32.mrf.mxu0
  %v5710 = vadd.f32 0.0, %v5709
  %v5711 = vpop.f32.mrf.mxu0
  %v5712 = vadd.f32 0.0, %v5711
  %5713 = vdwg.mxu0
  %v5714 = vadd.f32 %v5577, %v5696
  %v5715 = vadd.f32 %v5578, %v5710
  %v5716 = vadd.f32 %v5579, %v5698
  %v5717 = vadd.f32 %v5580, %v5712
  %v5718 = vld [vmem:[%s6] sm:$0x3]
  %v5720 = vperm.slane %v5718, 0
  %v5721 = vperm.slane %v5718, 1
  %v5724 = vadd.f32 %v5714, %v5720
  %v5725 = vadd.f32 %v5715, %v5721
  %v5726 = vadd.f32 %v5716, %v5720
  %v5727 = vadd.f32 %v5717, %v5721
  %v5728 = vmax.f32 %v5724, 0.0
  %v5729 = vmax.f32 %v5725, 0.0
  %v5730 = vmax.f32 %v5726, 0.0
  %v5731 = vmax.f32 %v5727, 0.0
  %v5732 = vpack.c.bf16 %v5730, %v5728
  %v5733 = vpack.c.bf16 %v5731, %v5729
  %v5734 = vld [vmem:[%s7] sm:$0xf]
  %v5735 = vld [vmem:[%s7 + $0x4] sm:$0xf]
  %v5736 = vld [vmem:[%s7 + $0x8] sm:$0xf]
  %v5737 = vld [vmem:[%s7 + $0xc] sm:$0xf]
  %v5738 = vld [vmem:[%s7 + $0x10] sm:$0xf]
  %v5739 = vld [vmem:[%s7 + $0x14] sm:$0xf]
  %v5740 = vld [vmem:[%s7 + $0x18] sm:$0xf]
  %v5741 = vld [vmem:[%s7 + $0x1c] sm:$0xf]
  %v5742 = vld [vmem:[%s7 + $0x20] sm:$0xf]
  %v5743 = vld [vmem:[%s7 + $0x24] sm:$0xf]
  %v5744 = vld [vmem:[%s7 + $0x28] sm:$0xf]
  %v5745 = vld [vmem:[%s7 + $0x2c] sm:$0xf]
  %v5746 = vld [vmem:[%s7 + $0x30] sm:$0xf]
  %v5747 = vld [vmem:[%s7 + $0x34] sm:$0xf]
  %v5748 = vld [vmem:[%s7 + $0x38] sm:$0xf]
  %v5749 = vld [vmem:[%s7 + $0x3c] sm:$0xf]
  %v5750 = vld [vmem:[%s7 + $0x40] sm:$0xf]
  %v5751 = vld [vmem:[%s7 + $0x44] sm:$0xf]
  %v5752 = vld [vmem:[%s7 + $0x48] sm:$0xf]
  %v5753 = vld [vmem:[%s7 + $0x4c] sm:$0xf]
  %v5754 = vld [vmem:[%s7 + $0x50] sm:$0xf]
  %v5755 = vld [vmem:[%s7 + $0x54] sm:$0xf]
  %v5756 = vld [vmem:[%s7 + $0x58] sm:$0xf]
  %v5757 = vld [vmem:[%s7 + $0x5c] sm:$0xf]
  %v5758 = vld [vmem:[%s7 + $0x60] sm:$0xf]
  %v5759 = vld [vmem:[%s7 + $0x64] sm:$0xf]
  %v5760 = vld [vmem:[%s7 + $0x68] sm:$0xf]
  %v5761 = vld [vmem:[%s7 + $0x6c] sm:$0xf]
  %v5762 = vld [vmem:[%s7 + $0x70] sm:$0xf]
  %v5763 = vld [vmem:[%s7 + $0x74] sm:$0xf]
  %v5764 = vld [vmem:[%s7 + $0x78] sm:$0xf]
  %v5765 = vld [vmem:[%s7 + $0x7c] sm:$0xf]
  %v5766 = vld [vmem:[%s8] sm:$0x1]
  %v5768 = vperm.slane %v5766, 0
  %v5802 = vunpack.c.l.b16 %v5734
  %v5803 = vunpack.c.l.b16 %v5735
  %v5804 = vunpack.c.l.b16 %v5736
  %v5805 = vunpack.c.l.b16 %v5737
  %v5806 = vunpack.c.l.b16 %v5738
  %v5807 = vunpack.c.l.b16 %v5739
  %v5808 = vunpack.c.l.b16 %v5740
  %v5809 = vunpack.c.l.b16 %v5741
  %v5810 = vunpack.c.l.b16 %v5742
  %v5811 = vunpack.c.l.b16 %v5743
  %v5812 = vunpack.c.l.b16 %v5744
  %v5813 = vunpack.c.l.b16 %v5745
  %v5814 = vunpack.c.l.b16 %v5746
  %v5815 = vunpack.c.l.b16 %v5747
  %v5816 = vunpack.c.l.b16 %v5748
  %v5817 = vunpack.c.l.b16 %v5749
  %v5818 = vunpack.c.l.b16 %v5750
  %v5819 = vunpack.c.l.b16 %v5751
  %v5820 = vunpack.c.l.b16 %v5752
  %v5821 = vunpack.c.l.b16 %v5753
  %v5822 = vunpack.c.l.b16 %v5754
  %v5823 = vunpack.c.l.b16 %v5755
  %v5824 = vunpack.c.l.b16 %v5756
  %v5825 = vunpack.c.l.b16 %v5757
  %v5826 = vunpack.c.l.b16 %v5758
  %v5827 = vunpack.c.l.b16 %v5759
  %v5828 = vunpack.c.l.b16 %v5760
  %v5829 = vunpack.c.l.b16 %v5761
  %v5830 = vunpack.c.l.b16 %v5762
  %v5831 = vunpack.c.l.b16 %v5763
  %v5832 = vunpack.c.l.b16 %v5764
  %v5833 = vunpack.c.l.b16 %v5765
  %v5834 = vpack.c.b16 %v5803, %v5802
  %v5835 = vpack.c.b16 %v5805, %v5804
  %v5836 = vpack.c.b16 %v5807, %v5806
  %v5837 = vpack.c.b16 %v5809, %v5808
  %v5838 = vpack.c.b16 %v5811, %v5810
  %v5839 = vpack.c.b16 %v5813, %v5812
  %v5840 = vpack.c.b16 %v5815, %v5814
  %v5841 = vpack.c.b16 %v5817, %v5816
  %v5842 = vpack.c.b16 %v5819, %v5818
  %v5843 = vpack.c.b16 %v5821, %v5820
  %v5844 = vpack.c.b16 %v5823, %v5822
  %v5845 = vpack.c.b16 %v5825, %v5824
  %v5846 = vpack.c.b16 %v5827, %v5826
  %v5847 = vpack.c.b16 %v5829, %v5828
  %v5848 = vpack.c.b16 %v5831, %v5830
  %v5849 = vpack.c.b16 %v5833, %v5832
  %5866 = vmatpush.bf16.msra.mxu0 %v5841
  %5867 = vmatpush.bf16.msra.mxu0 %v5840
  %5868 = vmatpush.bf16.msra.mxu0 %v5839
  %5869 = vmatpush.bf16.msra.mxu0 %v5838
  %5870 = vmatpush.bf16.msra.mxu0 %v5837
  %5871 = vmatpush.bf16.msra.mxu0 %v5836
  %5872 = vmatpush.bf16.msra.mxu0 %v5835
  %5873 = vmatpush.bf16.msra.mxu0 %v5834
  %5874 = vmatmul.bf16.gmra.mxu0 %v5732
  %v5875 = vpop.f32.mrf.mxu0
  %v5876 = vadd.f32 %v5768, %v5875
  %v5877 = vpop.f32.mrf.mxu0
  %v5878 = vadd.f32 %v5768, %v5877
  %5879 = vdwg.mxu0
  %5880 = vmatpush.bf16.msra.mxu0 %v5849
  %5881 = vmatpush.bf16.msra.mxu0 %v5848
  %5882 = vmatpush.bf16.msra.mxu0 %v5847
  %5883 = vmatpush.bf16.msra.mxu0 %v5846
  %5884 = vmatpush.bf16.msra.mxu0 %v5845
  %5885 = vmatpush.bf16.msra.mxu0 %v5844
  %5886 = vmatpush.bf16.msra.mxu0 %v5843
  %5887 = vmatpush.bf16.msra.mxu0 %v5842
  %5888 = vmatmul.bf16.gmra.mxu0 %v5733
  %v5889 = vpop.f32.mrf.mxu0
  %v5890 = vadd.f32 %v5876, %v5889
  %v5891 = vpop.f32.mrf.mxu0
  %v5892 = vadd.f32 %v5878, %v5891
  %5893 = vdwg.mxu0
  %5894 = vst [vmem:[%s9] sm:$0xff] %v5890
  %5895 = vst [vmem:[%s9 + $0x8] sm:$0xff] %v5892
  // Predicated region
  $region38: #{net_forward.1} parent=0 // pred_check
    _
  $region39: #{net_forward.1} parent=0 // pred_check_branch
    %5897 = sbr.rel (0) target = $region41
  $region40: #{net_forward.1} parent=0 // pred_region
    _
  $region41: #{net_forward.1} parent=0 // pred_fallthru
    _
  // Predicated region
  $region42: #{net_forward.1} parent=0 // pred_check
    _
  $region43: #{net_forward.1} parent=0 // pred_check_branch
    %5899 = sbr.rel (0) target = $region45
  $region44: #{net_forward.1} parent=0 // pred_region
    _
  $region45: #{net_forward.1} parent=0 // pred_fallthru
    _

</llo_original>
